<compile_context>
chip_gen: v6e
topology: v6e:2x2x1
jax: 0.10.0
libtpu: 0.0.40
codegen_flags: <defaults>
</compile_context>

<pallas_src>
import math
import functools

import jax
import jax.numpy as jnp
import numpy as np
from jax import lax
from jax.experimental import pallas as pl
from jax.experimental.pallas import tpu as pltpu

# "NT": contract the last dim of both operands == A @ B.T without a transpose.
_NT = (((1,), (1,)), ((), ()))
# "NN": plain A @ B.
_NN = (((1,), (0,)), ((), ()))


def _attn_kernel(q_ref, k_ref, v_ref, wot_ref, out_ref, o_scr, *, num_head):
    """One grid step == (batch b, query tile qi).

    q_ref   : (1, tq, dim_q)  bf16  pre-projected queries for this tile
    k_ref   : (1, S,  dim_k)  bf16  pre-projected keys   (block-invariant in qi)
    v_ref   : (1, S,  dim_v)  bf16  pre-projected values (block-invariant in qi)
    wot_ref : (dim_v, dim_v)  bf16  == wo.T * (1/sqrt(dim_q))  (scale folded in)
    out_ref : (1, tq, dim_v)  x.dtype
    o_scr   : (tq, dim_v)     bf16  VMEM scratch: concatenated per-head outputs
    """
    dim_q = q_ref.shape[2]
    dim_k = k_ref.shape[2]
    dim_v = v_ref.shape[2]
    dhq = dim_q // num_head
    dhk = dim_k // num_head
    dhv = dim_v // num_head

    q = q_ref[0]            # (tq, dim_q) bf16
    k = k_ref[0]            # (S,  dim_k) bf16
    v = v_ref[0]            # (S,  dim_v) bf16

    # num_head is small & static -> unrolled loop.  Head slices are lane slices
    # at 128-aligned offsets (per-head dim is a multiple of 128 here), so they
    # do not cross (8,128) tiles and are effectively free.
    for h in range(num_head):
        q_h = q[:, h * dhq:(h + 1) * dhq]                  # (tq, dhq)
        k_h = k[:, h * dhk:(h + 1) * dhk]                  # (S,  dhk)
        v_h = v[:, h * dhv:(h + 1) * dhv]                  # (S,  dhv)

        # Scores + softmax (f32 elementwise math).  The reference applies
        # 1/sqrt(dim_q) AFTER the softmax; that scale lives in wot_ref.
        s = lax.dot_general(q_h, k_h, _NT,
                            preferred_element_type=jnp.float32)    # (tq, S)
        m = jnp.max(s, axis=-1, keepdims=True)
        e = jnp.exp(s - m)
        denom = jnp.sum(e, axis=-1, keepdims=True)                 # (tq, 1)

        # Unnormalized PV matmul; normalize the narrow (tq, dhv) result with an
        # EUP approximate reciprocal instead of dividing the (tq, S) tensor.
        pv = lax.dot_general(e.astype(jnp.bfloat16), v_h, _NN,
                             preferred_element_type=jnp.float32)   # (tq, dhv)
        o_h = pv * pl.reciprocal(denom, approx=True)

        # Drop this head's output into its 128-lane-aligned column slice.
        o_scr[:, h * dhv:(h + 1) * dhv] = o_h.astype(jnp.bfloat16)

    # Single dim_v-deep output projection (fills the 256-deep v6e/v7x MXU),
    # replacing per-head 128-deep accumulations into a live f32 accumulator.
    out = lax.dot_general(o_scr[...], wot_ref[...], _NN,
                          preferred_element_type=jnp.float32)      # (tq, dim_v)
    out_ref[0] = out.astype(out_ref.dtype)


def _vmem_capacity_bytes():
    """Physical VMEM per TensorCore; conservative fallback if the query fails."""
    try:
        cap = getattr(pltpu.get_tpu_info(), "vmem_capacity_bytes", None)
        if cap:
            return int(cap)
    except Exception:
        pass
    return 64 * 1024 * 1024      # v7x-sized conservative default


def _pick_tq(S, max_tq):
    """Largest power-of-two query tile <= max_tq dividing S (else all of S)."""
    t = max_tq
    while t >= 8:
        if S % t == 0:
            return t
        t //= 2
    return S


def multi_head_attention(x, wq, wk, wv, wo, *, num_head):
    B, S, D_in = x.shape
    dim_q, dim_k, dim_v = wq.shape[0], wk.shape[0], wv.shape[0]
    assert dim_q % num_head == 0 and dim_k % num_head == 0 and dim_v % num_head == 0
    assert dim_q // num_head == dim_k // num_head, "per-head Q/K dims must match"

    vmem_cap = _vmem_capacity_bytes()
    # v5e/v6e (128 MiB VMEM): 256-row query tiles; v7x (64 MiB): 128 rows.
    tq = _pick_tq(S, 256 if vmem_cap > 80 * 1024 * 1024 else 128)
    nq = S // tq

    # ---- Projections: once per (b, s), fused wide bf16 matmuls in XLA ------
    # (f32 MXU accumulation, rounded to bf16 — exactly what the reference
    #  feeds its score / PV matmuls after its own bf16 cast.)
    xb = x.astype(jnp.bfloat16)
    wqb, wkb, wvb = (w.astype(jnp.bfloat16) for w in (wq, wk, wv))
    q = jnp.einsum("bsd,od->bso", xb, wqb,
                   preferred_element_type=jnp.float32).astype(jnp.bfloat16)
    k = jnp.einsum("bsd,od->bso", xb, wkb,
                   preferred_element_type=jnp.float32).astype(jnp.bfloat16)
    v = jnp.einsum("bsd,od->bso", xb, wvb,
                   preferred_element_type=jnp.float32).astype(jnp.bfloat16)

    # Post-softmax 1/sqrt(dim_q) folded into the (pre-transposed) output proj.
    wot = (wo.T * (1.0 / math.sqrt(dim_q))).astype(jnp.bfloat16)

    # ---- VMEM budget derived from the actual block / scratch shapes --------
    out_itemsize = jnp.dtype(x.dtype).itemsize
    blocks = 2 * (tq * dim_q * 2            # q tile   (double-buffered)
                  + S * dim_k * 2           # k
                  + S * dim_v * 2           # v
                  + dim_v * dim_v * 2       # wot
                  + tq * dim_v * out_itemsize)
    scratch = tq * dim_v * 2
    temps = 2 * tq * S * 4 + tq * (dim_v // num_head) * 4 + 4 * tq * 4
    est = blocks + scratch + temps
    headroom = (10 * 1024 * 1024 if vmem_cap <= 64 * 1024 * 1024
                else 16 * 1024 * 1024)
    vmem_limit = int(min(vmem_cap - headroom,
                         max(32 * 1024 * 1024, int(1.5 * est))))

    kernel = functools.partial(_attn_kernel, num_head=num_head)

    # Output kept in x.dtype (f32) for fidelity with the module; switch the
    # out_shape dtype to bf16 if the consumer tolerates it (halves writeback).
    return pl.pallas_call(
        kernel,
        out_shape=jax.ShapeDtypeStruct((B, S, dim_v), x.dtype),
        grid_spec=pltpu.PrefetchScalarGridSpec(
            num_scalar_prefetch=0,
            grid=(B, nq),
            in_specs=[
                # Query tile staged by the pipeline (no in-kernel pl.ds slice).
                pl.BlockSpec((1, tq, dim_q), lambda b, qi: (b, qi, 0)),
                # Full-sequence K / V, block-invariant along the q-tile axis so
                # they are DMA'd once per batch (revisit skip), not per tile.
                pl.BlockSpec((1, S, dim_k), lambda b, qi: (b, 0, 0)),
                pl.BlockSpec((1, S, dim_v), lambda b, qi: (b, 0, 0)),
                # Grid-invariant output-projection weight (DMA'd once; its
                # redundant double-buffer is ~0.5 MiB at these shapes).
                pl.BlockSpec((dim_v, dim_v), lambda b, qi: (0, 0)),
            ],
            out_specs=pl.BlockSpec((1, tq, dim_v), lambda b, qi: (b, qi, 0)),
            scratch_shapes=[pltpu.VMEM((tq, dim_v), jnp.bfloat16)],
        ),
        compiler_params=pltpu.CompilerParams(
            # Both axes independent: feeds v7x's two TensorCores even at B==1.
            dimension_semantics=("parallel", "parallel"),
            vmem_limit_bytes=vmem_limit,
        ),
    )(q, k, v, wot)


def _reference(x, wq, wk, wv, wo, *, num_head):
    """Pure-JAX replica of the PyTorch forward (same bf16/f32 precision mix)."""
    f32 = jnp.float32
    xb, wqb, wkb, wvb, wob = (a.astype(jnp.bfloat16) for a in (x, wq, wk, wv, wo))
    B, S, _ = x.shape
    dim_q, dim_k, dim_v = wq.shape[0], wk.shape[0], wv.shape[0]
    H = num_head
    Q = jnp.einsum("bsd,qd->bsq", xb, wqb, preferred_element_type=f32)
    K = jnp.einsum("bsd,kd->bsk", xb, wkb, preferred_element_type=f32)
    V = jnp.einsum("bsd,vd->bsv", xb, wvb, preferred_element_type=f32)
    mQ = Q.reshape(B, S, H, dim_q // H).transpose(0, 2, 1, 3)
    mK = K.reshape(B, S, H, dim_k // H).transpose(0, 2, 1, 3)
    mV = V.reshape(B, S, H, dim_v // H).transpose(0, 2, 1, 3)
    scores = jnp.einsum("bhqd,bhkd->bhqk", mQ.astype(jnp.bfloat16),
                        mK.astype(jnp.bfloat16), preferred_element_type=f32)
    attn = jax.nn.softmax(scores, axis=-1)
    attn = attn / math.sqrt(dim_q)          # quirk: scale AFTER softmax
    out = jnp.einsum("bhqk,bhkd->bhqd", attn.astype(jnp.bfloat16),
                     mV.astype(jnp.bfloat16), preferred_element_type=f32)
    out = out.transpose(0, 2, 1, 3).reshape(B, S, -1)
    return jnp.einsum("bsv,ov->bso", out.astype(jnp.bfloat16), wob,
                      preferred_element_type=f32)


if __name__ == "__main__":
    # Small but lane-dense shapes: per-head dim = 128, dim_v = 512.
    B, S = 2, 256
    dim_input = 128
    num_head = 4
    dim_q = dim_k = 512
    dim_v = 512

    key = jax.random.PRNGKey(0)
    kx, kq, kk, kv, ko = jax.random.split(key, 5)

    x = jax.random.normal(kx, (B, S, dim_input), dtype=jnp.float32)
    # PyTorch-style (out_features, in_features) weights, deterministic init.
    bound_i = 1.0 / math.sqrt(dim_input)
    wq = jax.random.uniform(kq, (dim_q, dim_input), jnp.float32, -bound_i, bound_i)
    wk = jax.random.uniform(kk, (dim_k, dim_input), jnp.float32, -bound_i, bound_i)
    wv = jax.random.uniform(kv, (dim_v, dim_input), jnp.float32, -bound_i, bound_i)
    bound_o = 1.0 / math.sqrt(dim_v)
    wo = jax.random.uniform(ko, (dim_v, dim_v), jnp.float32, -bound_o, bound_o)

    out = multi_head_attention(x, wq, wk, wv, wo, num_head=num_head)
    out = jax.block_until_ready(out)

    ref = _reference(x, wq, wk, wv, wo, num_head=num_head)
    np.testing.assert_allclose(np.asarray(out), np.asarray(ref),
                               rtol=5e-2, atol=3e-3)
    print("KERNEL_OK")
</pallas_src>

<mosaic_0001>
module attributes {stable_mosaic.version = 11 : i64} {
  func.func @_attn_kernel(%arg0: i32, %arg1: i32, %arg2: memref<1x128x512xbf16, #tpu.memory_space<vmem>>, %arg3: memref<1x256x512xbf16, #tpu.memory_space<vmem>>, %arg4: memref<1x256x512xbf16, #tpu.memory_space<vmem>>, %arg5: memref<512x512xbf16, #tpu.memory_space<vmem>>, %arg6: memref<1x128x512xf32, #tpu.memory_space<vmem>>, %arg7: memref<128x512xbf16, #tpu.memory_space<vmem>>) attributes {dimension_semantics = [#tpu.dimension_semantics<parallel>, #tpu.dimension_semantics<parallel>], iteration_bounds = array<i64: 2, 2>, scalar_prefetch = 0 : i64, scratch_operands = 1 : i64, tpu.core_type = #tpu.core_type<tc>, window_params = [{transform_indices = @transform_0, window_bounds = array<i64: 1, 128, 512>}, {transform_indices = @transform_1, window_bounds = array<i64: 1, 256, 512>}, {transform_indices = @transform_2, window_bounds = array<i64: 1, 256, 512>}, {pipeline_mode = #tpu.pipeline_mode<synchronous>, transform_indices = @transform_3, window_bounds = array<i64: 512, 512>}, {transform_indices = @transform_4, window_bounds = array<i64: 1, 128, 512>}]} {
    %c0 = arith.constant 0 : index
    %c0_0 = arith.constant 0 : index
    %c0_1 = arith.constant 0 : index
    %0 = vector.load %arg2[%c0, %c0_0, %c0_1] : memref<1x128x512xbf16, #tpu.memory_space<vmem>>, vector<1x128x512xbf16>
    %1 = vector.shape_cast %0 : vector<1x128x512xbf16> to vector<128x512xbf16>
    %c0_2 = arith.constant 0 : index
    %c0_3 = arith.constant 0 : index
    %c0_4 = arith.constant 0 : index
    %2 = vector.load %arg3[%c0_2, %c0_3, %c0_4] : memref<1x256x512xbf16, #tpu.memory_space<vmem>>, vector<1x256x512xbf16>
    %3 = vector.shape_cast %2 : vector<1x256x512xbf16> to vector<256x512xbf16>
    %c0_5 = arith.constant 0 : index
    %c0_6 = arith.constant 0 : index
    %c0_7 = arith.constant 0 : index
    %4 = vector.load %arg4[%c0_5, %c0_6, %c0_7] : memref<1x256x512xbf16, #tpu.memory_space<vmem>>, vector<1x256x512xbf16>
    %5 = vector.shape_cast %4 : vector<1x256x512xbf16> to vector<256x512xbf16>
    %6 = vector.extract_strided_slice %1 {offsets = [0, 0], sizes = [128, 128], strides = [1, 1]} : vector<128x512xbf16> to vector<128x128xbf16>
    %7 = vector.extract_strided_slice %3 {offsets = [0, 0], sizes = [256, 128], strides = [1, 1]} : vector<256x512xbf16> to vector<256x128xbf16>
    %8 = vector.extract_strided_slice %5 {offsets = [0, 0], sizes = [256, 128], strides = [1, 1]} : vector<256x512xbf16> to vector<256x128xbf16>
    %cst = arith.constant dense<0.000000e+00> : vector<128x256xf32>
    %9 = tpu.matmul %6, %7, %cst {dimension_numbers = #tpu.dot_dimension_numbers<[1], [1], [0], [0], [0, 0, 1, 0], [], []>} : vector<128x128xbf16>, vector<256x128xbf16>, vector<128x256xf32> -> vector<128x256xf32>
    %cst_8 = arith.constant dense<0xFF800000> : vector<128xf32>
    %10 = vector.multi_reduction <maximumf>, %9, %cst_8 [1] : vector<128x256xf32> to vector<128xf32>
    %11 = vector.shape_cast %10 : vector<128xf32> to vector<128x1xf32>
    %12 = vector.broadcast %11 : vector<128x1xf32> to vector<128x256xf32>
    %13 = arith.subf %9, %12 : vector<128x256xf32>
    %14 = math.exp %13 : vector<128x256xf32>
    %cst_9 = arith.constant dense<0.000000e+00> : vector<128xf32>
    %15 = vector.multi_reduction <add>, %14, %cst_9 [1] : vector<128x256xf32> to vector<128xf32>
    %16 = vector.shape_cast %15 : vector<128xf32> to vector<128x1xf32>
    %17 = arith.truncf %14 : vector<128x256xf32> to vector<128x256xbf16>
    %cst_10 = arith.constant dense<0.000000e+00> : vector<128x128xf32>
    %18 = tpu.matmul %17, %8, %cst_10 {dimension_numbers = #tpu.dot_dimension_numbers<[1], [0], [0], [1], [0, 0, 1, 1], [], []>} : vector<128x256xbf16>, vector<256x128xbf16>, vector<128x128xf32> -> vector<128x128xf32>
    %19 = tpu.reciprocal %16 {approx = true} : vector<128x1xf32> -> vector<128x1xf32>
    %20 = vector.broadcast %19 : vector<128x1xf32> to vector<128x128xf32>
    %21 = arith.mulf %18, %20 : vector<128x128xf32>
    %22 = arith.truncf %21 : vector<128x128xf32> to vector<128x128xbf16>
    %c0_11 = arith.constant 0 : index
    %c0_12 = arith.constant 0 : index
    %23 = vector.load %arg7[%c0_11, %c0_12] : memref<128x512xbf16, #tpu.memory_space<vmem>>, vector<128x128xbf16>
    tpu.vector_store %arg7[%c0_11, %c0_12], %22 {strides = array<i32>} : memref<128x512xbf16, #tpu.memory_space<vmem>>, vector<128x128xbf16>,
    %24 = vector.extract_strided_slice %1 {offsets = [0, 128], sizes = [128, 128], strides = [1, 1]} : vector<128x512xbf16> to vector<128x128xbf16>
    %25 = vector.extract_strided_slice %3 {offsets = [0, 128], sizes = [256, 128], strides = [1, 1]} : vector<256x512xbf16> to vector<256x128xbf16>
    %26 = vector.extract_strided_slice %5 {offsets = [0, 128], sizes = [256, 128], strides = [1, 1]} : vector<256x512xbf16> to vector<256x128xbf16>
    %cst_13 = arith.constant dense<0.000000e+00> : vector<128x256xf32>
    %27 = tpu.matmul %24, %25, %cst_13 {dimension_numbers = #tpu.dot_dimension_numbers<[1], [1], [0], [0], [0, 0, 1, 0], [], []>} : vector<128x128xbf16>, vector<256x128xbf16>, vector<128x256xf32> -> vector<128x256xf32>
    %cst_14 = arith.constant dense<0xFF800000> : vector<128xf32>
    %28 = vector.multi_reduction <maximumf>, %27, %cst_14 [1] : vector<128x256xf32> to vector<128xf32>
    %29 = vector.shape_cast %28 : vector<128xf32> to vector<128x1xf32>
    %30 = vector.broadcast %29 : vector<128x1xf32> to vector<128x256xf32>
    %31 = arith.subf %27, %30 : vector<128x256xf32>
    %32 = math.exp %31 : vector<128x256xf32>
    %cst_15 = arith.constant dense<0.000000e+00> : vector<128xf32>
    %33 = vector.multi_reduction <add>, %32, %cst_15 [1] : vector<128x256xf32> to vector<128xf32>
    %34 = vector.shape_cast %33 : vector<128xf32> to vector<128x1xf32>
    %35 = arith.truncf %32 : vector<128x256xf32> to vector<128x256xbf16>
    %cst_16 = arith.constant dense<0.000000e+00> : vector<128x128xf32>
    %36 = tpu.matmul %35, %26, %cst_16 {dimension_numbers = #tpu.dot_dimension_numbers<[1], [0], [0], [1], [0, 0, 1, 1], [], []>} : vector<128x256xbf16>, vector<256x128xbf16>, vector<128x128xf32> -> vector<128x128xf32>
    %37 = tpu.reciprocal %34 {approx = true} : vector<128x1xf32> -> vector<128x1xf32>
    %38 = vector.broadcast %37 : vector<128x1xf32> to vector<128x128xf32>
    %39 = arith.mulf %36, %38 : vector<128x128xf32>
    %40 = arith.truncf %39 : vector<128x128xf32> to vector<128x128xbf16>
    %c0_17 = arith.constant 0 : index
    %c128 = arith.constant 128 : index
    %41 = vector.load %arg7[%c0_17, %c128] : memref<128x512xbf16, #tpu.memory_space<vmem>>, vector<128x128xbf16>
    tpu.vector_store %arg7[%c0_17, %c128], %40 {strides = array<i32>} : memref<128x512xbf16, #tpu.memory_space<vmem>>, vector<128x128xbf16>,
    %42 = vector.extract_strided_slice %1 {offsets = [0, 256], sizes = [128, 128], strides = [1, 1]} : vector<128x512xbf16> to vector<128x128xbf16>
    %43 = vector.extract_strided_slice %3 {offsets = [0, 256], sizes = [256, 128], strides = [1, 1]} : vector<256x512xbf16> to vector<256x128xbf16>
    %44 = vector.extract_strided_slice %5 {offsets = [0, 256], sizes = [256, 128], strides = [1, 1]} : vector<256x512xbf16> to vector<256x128xbf16>
    %cst_18 = arith.constant dense<0.000000e+00> : vector<128x256xf32>
    %45 = tpu.matmul %42, %43, %cst_18 {dimension_numbers = #tpu.dot_dimension_numbers<[1], [1], [0], [0], [0, 0, 1, 0], [], []>} : vector<128x128xbf16>, vector<256x128xbf16>, vector<128x256xf32> -> vector<128x256xf32>
    %cst_19 = arith.constant dense<0xFF800000> : vector<128xf32>
    %46 = vector.multi_reduction <maximumf>, %45, %cst_19 [1] : vector<128x256xf32> to vector<128xf32>
    %47 = vector.shape_cast %46 : vector<128xf32> to vector<128x1xf32>
    %48 = vector.broadcast %47 : vector<128x1xf32> to vector<128x256xf32>
    %49 = arith.subf %45, %48 : vector<128x256xf32>
    %50 = math.exp %49 : vector<128x256xf32>
    %cst_20 = arith.constant dense<0.000000e+00> : vector<128xf32>
    %51 = vector.multi_reduction <add>, %50, %cst_20 [1] : vector<128x256xf32> to vector<128xf32>
    %52 = vector.shape_cast %51 : vector<128xf32> to vector<128x1xf32>
    %53 = arith.truncf %50 : vector<128x256xf32> to vector<128x256xbf16>
    %cst_21 = arith.constant dense<0.000000e+00> : vector<128x128xf32>
    %54 = tpu.matmul %53, %44, %cst_21 {dimension_numbers = #tpu.dot_dimension_numbers<[1], [0], [0], [1], [0, 0, 1, 1], [], []>} : vector<128x256xbf16>, vector<256x128xbf16>, vector<128x128xf32> -> vector<128x128xf32>
    %55 = tpu.reciprocal %52 {approx = true} : vector<128x1xf32> -> vector<128x1xf32>
    %56 = vector.broadcast %55 : vector<128x1xf32> to vector<128x128xf32>
    %57 = arith.mulf %54, %56 : vector<128x128xf32>
    %58 = arith.truncf %57 : vector<128x128xf32> to vector<128x128xbf16>
    %c0_22 = arith.constant 0 : index
    %c256 = arith.constant 256 : index
    %59 = vector.load %arg7[%c0_22, %c256] : memref<128x512xbf16, #tpu.memory_space<vmem>>, vector<128x128xbf16>
    tpu.vector_store %arg7[%c0_22, %c256], %58 {strides = array<i32>} : memref<128x512xbf16, #tpu.memory_space<vmem>>, vector<128x128xbf16>,
    %60 = vector.extract_strided_slice %1 {offsets = [0, 384], sizes = [128, 128], strides = [1, 1]} : vector<128x512xbf16> to vector<128x128xbf16>
    %61 = vector.extract_strided_slice %3 {offsets = [0, 384], sizes = [256, 128], strides = [1, 1]} : vector<256x512xbf16> to vector<256x128xbf16>
    %62 = vector.extract_strided_slice %5 {offsets = [0, 384], sizes = [256, 128], strides = [1, 1]} : vector<256x512xbf16> to vector<256x128xbf16>
    %cst_23 = arith.constant dense<0.000000e+00> : vector<128x256xf32>
    %63 = tpu.matmul %60, %61, %cst_23 {dimension_numbers = #tpu.dot_dimension_numbers<[1], [1], [0], [0], [0, 0, 1, 0], [], []>} : vector<128x128xbf16>, vector<256x128xbf16>, vector<128x256xf32> -> vector<128x256xf32>
    %cst_24 = arith.constant dense<0xFF800000> : vector<128xf32>
    %64 = vector.multi_reduction <maximumf>, %63, %cst_24 [1] : vector<128x256xf32> to vector<128xf32>
    %65 = vector.shape_cast %64 : vector<128xf32> to vector<128x1xf32>
    %66 = vector.broadcast %65 : vector<128x1xf32> to vector<128x256xf32>
    %67 = arith.subf %63, %66 : vector<128x256xf32>
    %68 = math.exp %67 : vector<128x256xf32>
    %cst_25 = arith.constant dense<0.000000e+00> : vector<128xf32>
    %69 = vector.multi_reduction <add>, %68, %cst_25 [1] : vector<128x256xf32> to vector<128xf32>
    %70 = vector.shape_cast %69 : vector<128xf32> to vector<128x1xf32>
    %71 = arith.truncf %68 : vector<128x256xf32> to vector<128x256xbf16>
    %cst_26 = arith.constant dense<0.000000e+00> : vector<128x128xf32>
    %72 = tpu.matmul %71, %62, %cst_26 {dimension_numbers = #tpu.dot_dimension_numbers<[1], [0], [0], [1], [0, 0, 1, 1], [], []>} : vector<128x256xbf16>, vector<256x128xbf16>, vector<128x128xf32> -> vector<128x128xf32>
    %73 = tpu.reciprocal %70 {approx = true} : vector<128x1xf32> -> vector<128x1xf32>
    %74 = vector.broadcast %73 : vector<128x1xf32> to vector<128x128xf32>
    %75 = arith.mulf %72, %74 : vector<128x128xf32>
    %76 = arith.truncf %75 : vector<128x128xf32> to vector<128x128xbf16>
    %c0_27 = arith.constant 0 : index
    %c384 = arith.constant 384 : index
    %77 = vector.load %arg7[%c0_27, %c384] : memref<128x512xbf16, #tpu.memory_space<vmem>>, vector<128x128xbf16>
    tpu.vector_store %arg7[%c0_27, %c384], %76 {strides = array<i32>} : memref<128x512xbf16, #tpu.memory_space<vmem>>, vector<128x128xbf16>,
    %c0_28 = arith.constant 0 : index
    %c0_29 = arith.constant 0 : index
    %78 = vector.load %arg7[%c0_28, %c0_29] : memref<128x512xbf16, #tpu.memory_space<vmem>>, vector<128x512xbf16>
    %c0_30 = arith.constant 0 : index
    %c0_31 = arith.constant 0 : index
    %79 = vector.load %arg5[%c0_30, %c0_31] : memref<512x512xbf16, #tpu.memory_space<vmem>>, vector<512x512xbf16>
    %cst_32 = arith.constant dense<0.000000e+00> : vector<128x512xf32>
    %80 = tpu.matmul %78, %79, %cst_32 {dimension_numbers = #tpu.dot_dimension_numbers<[1], [0], [0], [1], [0, 0, 1, 1], [], []>} : vector<128x512xbf16>, vector<512x512xbf16>, vector<128x512xf32> -> vector<128x512xf32>
    %c0_33 = arith.constant 0 : index
    %c0_34 = arith.constant 0 : index
    %c0_35 = arith.constant 0 : index
    %81 = vector.load %arg6[%c0_33, %c0_34, %c0_35] : memref<1x128x512xf32, #tpu.memory_space<vmem>>, vector<1x128x512xf32>
    %82 = vector.shape_cast %81 : vector<1x128x512xf32> to vector<128x512xf32>
    %83 = vector.shape_cast %80 : vector<128x512xf32> to vector<1x128x512xf32>
    tpu.vector_store %arg6[%c0_33, %c0_34, %c0_35], %83 {strides = array<i32>} : memref<1x128x512xf32, #tpu.memory_space<vmem>>, vector<1x128x512xf32>,
    return
  }
  func.func @transform_0(%arg0: i32, %arg1: i32) -> (i32, i32, i32) {
    %c0_i32 = arith.constant 0 : i32
    %c0_i32_0 = arith.constant 0 : i32
    return %arg0, %arg1, %c0_i32 : i32, i32, i32
  }
  func.func @transform_1(%arg0: i32, %arg1: i32) -> (i32, i32, i32) {
    %c0_i32 = arith.constant 0 : i32
    %c0_i32_0 = arith.constant 0 : i32
    %c0_i32_1 = arith.constant 0 : i32
    return %arg0, %c0_i32, %c0_i32_0 : i32, i32, i32
  }
  func.func @transform_2(%arg0: i32, %arg1: i32) -> (i32, i32, i32) {
    %c0_i32 = arith.constant 0 : i32
    %c0_i32_0 = arith.constant 0 : i32
    %c0_i32_1 = arith.constant 0 : i32
    return %arg0, %c0_i32, %c0_i32_0 : i32, i32, i32
  }
  func.func @transform_3(%arg0: i32, %arg1: i32) -> (i32, i32) {
    %c0_i32 = arith.constant 0 : i32
    %c0_i32_0 = arith.constant 0 : i32
    %c0_i32_1 = arith.constant 0 : i32
    return %c0_i32, %c0_i32_0 : i32, i32
  }
  func.func @transform_4(%arg0: i32, %arg1: i32) -> (i32, i32, i32) {
    %c0_i32 = arith.constant 0 : i32
    %c0_i32_0 = arith.constant 0 : i32
    return %arg0, %arg1, %c0_i32 : i32, i32, i32
  }
}

</mosaic_0001>

<llo_original>
// kernel: tpu_custom_call.1
$region0: #{tpu_custom_call.1}
  #allocation0 [shape = 'u32[]', space=smem, size = 0x4, offset = 0x4, fixed_abs, tag = 'smem constant byte address 0x4 - core index']
  #allocation1 [shape = 'u32[144,128]{1,0:T(1,128)}', space=vmem, size = 0x12000, scoped, tag = 'internal scratch']
  #allocation2 [shape = 'bf16[128,512]{1,0:T(8,128)(2,1)}', space=vmem, size = 0x20000, scoped, tag = 'scratch operand']
  %s0 = inlined_call_operand.hbm [shape: bf16[2,256,512], index: 0, kind: input, shape index: {}]
  %s1 = inlined_call_operand.hbm [shape: bf16[2,256,512], index: 1, kind: input, shape index: {}]
  %s2 = inlined_call_operand.hbm [shape: bf16[2,256,512], index: 2, kind: input, shape index: {}]
  %s3 = inlined_call_operand.hbm [shape: bf16[512,512], index: 3, kind: input, shape index: {}]
  %s4 = inlined_call_operand.hbm [shape: f32[2,256,512], index: 4, kind: output, shape index: {}]
  %s5 = sld [smem:[#allocation0]]
  $region65: #{tpu_custom_call.1} parent=0
    _
  %s7 = ssub.s32 1, %s5
  %s8 = scalar_select 0, %s7, %s5
  $region1: #{tpu_custom_call.1} parent=0
    #allocation3 [shape = 'u8[262144]{0}', space=vmem, size = 0x40000, scoped, tag = 'input window, operand 0']
    #allocation4 [shape = 's32[2]{0}', space=sflag, size = 0x8, scoped, tag = 'scoped memory for tpu_custom_call.1']
    #allocation5 [shape = 's32[2]{0}', space=sflag, size = 0x8, scoped, tag = 'scoped memory for tpu_custom_call.1']
    #allocation6 [shape = 'u8[524288]{0}', space=vmem, size = 0x80000, scoped, tag = 'input window, operand 1']
    #allocation7 [shape = 's32[2]{0}', space=sflag, size = 0x8, scoped, tag = 'scoped memory for tpu_custom_call.1']
    #allocation8 [shape = 'u8[524288]{0}', space=vmem, size = 0x80000, scoped, tag = 'input window, operand 2']
    #allocation9 [shape = 'u8[524288]{0}', space=vmem, size = 0x80000, scoped, tag = 'input window, operand 3, single buffered']
    #allocation10 [shape = 's32[1]{0}', space=sflag, size = 0x4, scoped, tag = 'scoped memory for tpu_custom_call.1']
    #allocation11 [shape = 'u8[524288]{0}', space=vmem, size = 0x80000, scoped, tag = 'output window, operand 0']
    %9 = vsyncpa [#allocation4], 0
    %s10 = scalar_lea.sflag [#allocation4], 1
    %11 = vsyncpa %s10, 0
    %12 = vsyncpa [#allocation7], 0
    %s13 = scalar_lea.sflag [#allocation7], 1
    %14 = vsyncpa %s13, 0
    %15 = vsyncpa [#allocation10], 0
    %16 = vsyncpa [#allocation5], 0
    %s17 = scalar_lea.sflag [#allocation5], 1
    %18 = vsyncpa %s17, 0
    loop: start=0, step=1, limit=6
    $region2: #{tpu_custom_call.1} parent=1 // loop_pre_header
      _
    $region3: #{tpu_custom_call.1} parent=1 // loop_header
      %s20 = sphi 0, %s24
      %p21 = scmp.ge.s32.totalorder %s20, 6
      %s27 = sphi 0, %s39
      %s28 = sphi 0, %s35
      %s29 = sphi 0, %s27
      %s30 = sphi 0, %s28
      %s31 = sphi 0, %s29
      %s32 = sphi 0, %s30
      %s44 = sphi 0, %s46
      %s47 = sphi 0, %s44
      %s48 = sphi 0, %s47
      %s64 = sphi 0, %s48
      %s70 = sphi 0, %s72
      %s73 = sphi 0, %s70
      %s74 = sphi 0, %s73
      %s90 = sphi 0, %s74
      %s96 = sphi 0, %s98
      %s99 = sphi 0, %s96
      %s100 = sphi 0, %s99
      %s116 = sphi 0, %s100
      %s120 = sphi 0, %s120
      %s122 = sphi 0, %s120
      %s123 = sphi 0, %s122
      %s137 = sphi 0, %s123
      %s145 = sphi 0, %s147
      %s148 = sphi 0, %s145
      %s149 = sphi 0, %s148
      %s165 = sphi 0, %s149
    $region4: #{tpu_custom_call.1} parent=1 // loop_header_branch
      %23 = sbr.rel (%p21) target = $region8
    $region5: #{tpu_custom_call.1} parent=1 // loop_body
      %s25 = ssub.s32 %s20, 1
      %s26 = ssub.s32 %s20, 2
      %s33 = sadd.s32 1, %s28
      %p34 = scmp.ge.s32.totalorder %s33, 2
      %s35 = scalar_select %p34, 0, %s33
      %s36 = sadd.s32 1, %s27
      %s37 = scalar_select %p34, %s36, %s27
      %p38 = scmp.ge.s32.totalorder %s37, 2
      %s39 = scalar_select %p38, 0, %s37
      %s40 = ssub.s32 %s27, %s39
      %s41 = ssub.s32 %s28, %s35
      %s42 = sor.u32 %s40, %s41
      %p43 = scmp.eq.s32.totalorder %s42, 0
      %s45 = sadd.s32 %s44, 1
      %s46 = scalar_select %p43, %s44, %s45
      %p49 = pneg %p43
      %p50 = scmp.eq.s32.totalorder %s20, 3
      %p51 = por %p49, %p50
      %p52 = scmp.ne.s32.totalorder %s44, %s47
      %p53 = scmp.eq.s32.totalorder %s20, 0
      %p54 = por %p52, %p53
      %p55 = scmp.ne.s32.totalorder %s44, %s47
      %p56 = scmp.eq.s32.totalorder %s25, 3
      %p57 = por %p55, %p56
      %p58 = scmp.ne.s32.totalorder %s47, %s48
      %p59 = scmp.eq.s32.totalorder %s25, 0
      %p60 = por %p58, %p59
      %p61 = scmp.ne.s32.totalorder %s47, %s48
      %p62 = scmp.eq.s32.totalorder %s26, 3
      %p63 = por %p61, %p62
      %p65 = scmp.ne.s32.totalorder %s48, %s64
      %p66 = scmp.eq.s32.totalorder %s26, 0
      %p67 = por %p65, %p66
      %s68 = ssub.s32 %s27, %s39
      %p69 = scmp.eq.s32.totalorder %s68, 0
      %s71 = sadd.s32 %s70, 1
      %s72 = scalar_select %p69, %s70, %s71
      %p75 = pneg %p69
      %p76 = scmp.eq.s32.totalorder %s20, 3
      %p77 = por %p75, %p76
      %p78 = scmp.ne.s32.totalorder %s70, %s73
      %p79 = scmp.eq.s32.totalorder %s20, 0
      %p80 = por %p78, %p79
      %p81 = scmp.ne.s32.totalorder %s70, %s73
      %p82 = scmp.eq.s32.totalorder %s25, 3
      %p83 = por %p81, %p82
      %p84 = scmp.ne.s32.totalorder %s73, %s74
      %p85 = scmp.eq.s32.totalorder %s25, 0
      %p86 = por %p84, %p85
      %p87 = scmp.ne.s32.totalorder %s73, %s74
      %p88 = scmp.eq.s32.totalorder %s26, 3
      %p89 = por %p87, %p88
      %p91 = scmp.ne.s32.totalorder %s74, %s90
      %p92 = scmp.eq.s32.totalorder %s26, 0
      %p93 = por %p91, %p92
      %s94 = ssub.s32 %s27, %s39
      %p95 = scmp.eq.s32.totalorder %s94, 0
      %s97 = sadd.s32 %s96, 1
      %s98 = scalar_select %p95, %s96, %s97
      %p101 = pneg %p95
      %p102 = scmp.eq.s32.totalorder %s20, 3
      %p103 = por %p101, %p102
      %p104 = scmp.ne.s32.totalorder %s96, %s99
      %p105 = scmp.eq.s32.totalorder %s20, 0
      %p106 = por %p104, %p105
      %p107 = scmp.ne.s32.totalorder %s96, %s99
      %p108 = scmp.eq.s32.totalorder %s25, 3
      %p109 = por %p107, %p108
      %p110 = scmp.ne.s32.totalorder %s99, %s100
      %p111 = scmp.eq.s32.totalorder %s25, 0
      %p112 = por %p110, %p111
      %p113 = scmp.ne.s32.totalorder %s99, %s100
      %p114 = scmp.eq.s32.totalorder %s26, 3
      %p115 = por %p113, %p114
      %p117 = scmp.ne.s32.totalorder %s100, %s116
      %p118 = scmp.eq.s32.totalorder %s26, 0
      %p119 = por %p117, %p118
      %s121 = sadd.s32 %s120, 1
      %p124 = scmp.eq.s32.totalorder %s20, 3
      %p125 = scmp.ne.s32.totalorder %s120, %s122
      %p126 = scmp.eq.s32.totalorder %s20, 0
      %p127 = por %p125, %p126
      %p128 = scmp.ne.s32.totalorder %s120, %s122
      %p129 = scmp.eq.s32.totalorder %s25, 3
      %p130 = por %p128, %p129
      %p131 = scmp.ne.s32.totalorder %s122, %s123
      %p132 = scmp.eq.s32.totalorder %s25, 0
      %p133 = por %p131, %p132
      %p134 = scmp.ne.s32.totalorder %s122, %s123
      %p135 = scmp.eq.s32.totalorder %s26, 3
      %p136 = por %p134, %p135
      %p138 = scmp.ne.s32.totalorder %s123, %s137
      %p139 = scmp.eq.s32.totalorder %s26, 0
      %p140 = por %p138, %p139
      %s141 = ssub.s32 %s27, %s39
      %s142 = ssub.s32 %s28, %s35
      %s143 = sor.u32 %s141, %s142
      %p144 = scmp.eq.s32.totalorder %s143, 0
      %s146 = sadd.s32 %s145, 1
      %s147 = scalar_select %p144, %s145, %s146
      %p150 = pneg %p144
      %p151 = scmp.eq.s32.totalorder %s20, 3
      %p152 = por %p150, %p151
      %p153 = scmp.ne.s32.totalorder %s145, %s148
      %p154 = scmp.eq.s32.totalorder %s20, 0
      %p155 = por %p153, %p154
      %p156 = scmp.ne.s32.totalorder %s145, %s148
      %p157 = scmp.eq.s32.totalorder %s25, 3
      %p158 = por %p156, %p157
      %p159 = scmp.ne.s32.totalorder %s148, %s149
      %p160 = scmp.eq.s32.totalorder %s25, 0
      %p161 = por %p159, %p160
      %p162 = scmp.ne.s32.totalorder %s148, %s149
      %p163 = scmp.eq.s32.totalorder %s26, 3
      %p164 = por %p162, %p163
      %p166 = scmp.ne.s32.totalorder %s149, %s165
      %p167 = scmp.eq.s32.totalorder %s26, 0
      %p168 = por %p166, %p167
      %p169 = scmp.le.s32.totalorder 1, %s20
      %p170 = scmp.lt.s32.totalorder %s20, 5
      %p171 = pnand %p169, %p170
      %p172 = pneg %p171
      // Predicated region
      $region9: #{tpu_custom_call.1} parent=5 // pred_check
        _
      $region10: #{tpu_custom_call.1} parent=5 // pred_check_branch
        %174 = sbr.rel (%p171) target = $region12
      $region11: #{tpu_custom_call.1} parent=5 // pred_region
        %s175 = ssub.s32 %s20, 1
        // Predicated region
        $region13: #{tpu_custom_call.1} parent=11 // pred_check
          %p176 = pneg %p133
        $region14: #{tpu_custom_call.1} parent=11 // pred_check_branch
          %178 = sbr.rel (%p176) target = $region16
        $region15: #{tpu_custom_call.1} parent=11 // pred_region
          %s180 = ssub.s32 16384, 16384
          %181 = vsyncadd [#allocation10], %s180
          %s182 = sshll.u32 [#allocation9], 4
          %s183 = int_to_ptr.vmem [resolvable:$true] %s182
          %188 = dma.hbm_to_vmem [thread:$0]  %s3, 16384, %s183, [#allocation10], 256, 256, 16
        $region16: #{tpu_custom_call.1} parent=11 // pred_fallthru
          _
      $region12: #{tpu_custom_call.1} parent=5 // pred_fallthru
        _
      %p189 = scmp.lt.s32.totalorder %s20, 4
      // Predicated region
      $region17: #{tpu_custom_call.1} parent=5 // pred_check
        %p190 = pneg %p189
      $region18: #{tpu_custom_call.1} parent=5 // pred_check_branch
        %192 = sbr.rel (%p190) target = $region20
      $region19: #{tpu_custom_call.1} parent=5 // pred_region
        // Predicated region
        $region21: #{tpu_custom_call.1} parent=19 // pred_check
          %p193 = pneg %p54
        $region22: #{tpu_custom_call.1} parent=19 // pred_check_branch
          %195 = sbr.rel (%p193) target = $region24
        $region23: #{tpu_custom_call.1} parent=19 // pred_region
          %s196 = sand.u32 %s44, 1
          %s197 = scalar_lea.sflag [#allocation4], %s196
          %s198 = sand.u32 %s44, 1
          %s199 = smul.addr %s198, 256
          %s200 = scalar_lea.vmem [#allocation3], %s199
          %s201 = smul.u32 16, %s28
          %s203 = ssub.s32 4096, 4096
          %204 = vsyncadd %s197, %s203
          %s205 = smul.addr %s201, 4
          %s206 = smul.addr %s27, 128
          %s207 = sadd.s32 %s205, %s206
          %s208 = smul.addr %s207, 64
          %s209 = scalar_lea.hbm %s0, %s208
          %s210 = sshll.u32 %s200, 4
          %s211 = int_to_ptr.vmem [resolvable:$true] %s210
          %216 = dma.hbm_to_vmem [thread:$0]  %s209, 4096, %s211, %s197, 256, 256, 16
        $region24: #{tpu_custom_call.1} parent=19 // pred_fallthru
          _
        // Predicated region
        $region25: #{tpu_custom_call.1} parent=19 // pred_check
          %p217 = pneg %p80
        $region26: #{tpu_custom_call.1} parent=19 // pred_check_branch
          %219 = sbr.rel (%p217) target = $region28
        $region27: #{tpu_custom_call.1} parent=19 // pred_region
          %s220 = sand.u32 %s20, 1
          %s221 = scalar_lea.sflag [#allocation7], %s220
          %s222 = sand.u32 %s70, 1
          %s223 = smul.addr %s222, 512
          %s224 = scalar_lea.vmem [#allocation6], %s223
          %s226 = ssub.s32 8192, 8192
          %227 = vsyncadd %s221, %s226
          %s228 = smul.addr %s27, 128
          %s229 = smul.addr %s228, 64
          %s230 = scalar_lea.hbm %s1, %s229
          %s231 = sshll.u32 %s224, 4
          %s232 = int_to_ptr.vmem [resolvable:$true] %s231
          %237 = dma.hbm_to_vmem [thread:$0]  %s230, 8192, %s232, %s221, 256, 256, 16
        $region28: #{tpu_custom_call.1} parent=19 // pred_fallthru
          _
        // Predicated region
        $region29: #{tpu_custom_call.1} parent=19 // pred_check
          %p238 = pneg %p106
        $region30: #{tpu_custom_call.1} parent=19 // pred_check_branch
          %240 = sbr.rel (%p238) target = $region32
        $region31: #{tpu_custom_call.1} parent=19 // pred_region
          %s241 = sand.u32 %s20, 1
          %s242 = scalar_lea.sflag [#allocation7], %s241
          %s243 = sand.u32 %s96, 1
          %s244 = smul.addr %s243, 512
          %s245 = scalar_lea.vmem [#allocation8], %s244
          %s247 = ssub.s32 8192, 8192
          %248 = vsyncadd %s242, %s247
          %s249 = smul.addr %s27, 128
          %s250 = smul.addr %s249, 64
          %s251 = scalar_lea.hbm %s2, %s250
          %s252 = sshll.u32 %s245, 4
          %s253 = int_to_ptr.vmem [resolvable:$true] %s252
          %258 = dma.hbm_to_vmem [thread:$0]  %s251, 8192, %s253, %s242, 256, 256, 16
        $region32: #{tpu_custom_call.1} parent=19 // pred_fallthru
          _
      $region20: #{tpu_custom_call.1} parent=5 // pred_fallthru
        _
      %p259 = scmp.le.s32.totalorder 1, %s20
      %p260 = scmp.lt.s32.totalorder %s20, 5
      %p261 = pnand %p259, %p260
      %p262 = pneg %p261
      // Predicated region
      $region33: #{tpu_custom_call.1} parent=5 // pred_check
        _
      $region34: #{tpu_custom_call.1} parent=5 // pred_check_branch
        %264 = sbr.rel (%p261) target = $region36
      $region35: #{tpu_custom_call.1} parent=5 // pred_region
        %s265 = ssub.s32 %s20, 1
        %s266 = sand.u32 %s47, 1
        %s267 = scalar_lea.sflag [#allocation4], %s266
        %s268 = sand.u32 %s47, 1
        %s269 = smul.addr %s268, 256
        %s270 = scalar_lea.vmem [#allocation3], %s269
        // Predicated region
        $region37: #{tpu_custom_call.1} parent=35 // pred_check
          %p271 = pneg %p60
        $region38: #{tpu_custom_call.1} parent=35 // pred_check_branch
          %273 = sbr.rel (%p271) target = $region40
        $region39: #{tpu_custom_call.1} parent=35 // pred_region
          %274 = dma.done %s267, 4096
        $region40: #{tpu_custom_call.1} parent=35 // pred_fallthru
          _
        %s275 = sand.u32 %s25, 1
        %s276 = scalar_lea.sflag [#allocation7], %s275
        %s277 = sand.u32 %s73, 1
        %s278 = smul.addr %s277, 512
        %s279 = scalar_lea.vmem [#allocation6], %s278
        // Predicated region
        $region41: #{tpu_custom_call.1} parent=35 // pred_check
          %p280 = pneg %p86
        $region42: #{tpu_custom_call.1} parent=35 // pred_check_branch
          %282 = sbr.rel (%p280) target = $region44
        $region43: #{tpu_custom_call.1} parent=35 // pred_region
          %283 = dma.done %s276, 8192
        $region44: #{tpu_custom_call.1} parent=35 // pred_fallthru
          _
        %s284 = sand.u32 %s25, 1
        %s285 = scalar_lea.sflag [#allocation7], %s284
        %s286 = sand.u32 %s99, 1
        %s287 = smul.addr %s286, 512
        %s288 = scalar_lea.vmem [#allocation8], %s287
        // Predicated region
        $region45: #{tpu_custom_call.1} parent=35 // pred_check
          %p289 = pneg %p112
        $region46: #{tpu_custom_call.1} parent=35 // pred_check_branch
          %291 = sbr.rel (%p289) target = $region48
        $region47: #{tpu_custom_call.1} parent=35 // pred_region
          %292 = dma.done %s285, 8192
        $region48: #{tpu_custom_call.1} parent=35 // pred_fallthru
          _
        // Predicated region
        $region49: #{tpu_custom_call.1} parent=35 // pred_check
          %p293 = pneg %p133
        $region50: #{tpu_custom_call.1} parent=35 // pred_check_branch
          %295 = sbr.rel (%p293) target = $region52
        $region51: #{tpu_custom_call.1} parent=35 // pred_region
          %296 = dma.done [#allocation10], 16384
        $region52: #{tpu_custom_call.1} parent=35 // pred_fallthru
          _
        %s297 = sand.u32 %s47, 1
        %s298 = scalar_lea.sflag [#allocation4], %s297
        %s299 = sand.u32 %s47, 1
        %s300 = smul.addr %s299, 256
        %s301 = scalar_lea.vmem [#allocation3], %s300
        %p302 = pneg %p60
        %p303 = pneg %p57
        %s304 = sand.u32 %s25, 1
        %s305 = scalar_lea.sflag [#allocation7], %s304
        %s306 = sand.u32 %s73, 1
        %s307 = smul.addr %s306, 512
        %s308 = scalar_lea.vmem [#allocation6], %s307
        %p309 = pneg %p86
        %p310 = pneg %p83
        %s311 = sand.u32 %s25, 1
        %s312 = scalar_lea.sflag [#allocation7], %s311
        %s313 = sand.u32 %s99, 1
        %s314 = smul.addr %s313, 512
        %s315 = scalar_lea.vmem [#allocation8], %s314
        %p316 = pneg %p112
        %p317 = pneg %p109
        %p318 = pneg %p133
        %p319 = pneg %p130
        %p320 = pneg %p161
        %p321 = pneg %p158
        %s322 = sand.u32 %s148, 1
        %s323 = scalar_lea.sflag [#allocation5], %s322
        %s324 = sand.u32 %s148, 1
        %s325 = smul.addr %s324, 512
        %s326 = scalar_lea.vmem [#allocation11], %s325
        %s327 = smul.u32 16, %s30
        %s328 = smul.u32 16, %s30
        %v330 = vld [vmem:[%s270] sm:$0xff]
        %v331 = vld [vmem:[%s270 + $0x8] sm:$0xff]
        %v332 = vld [vmem:[%s270 + $0x10] sm:$0xff]
        %v333 = vld [vmem:[%s270 + $0x18] sm:$0xff]
        %v334 = vld [vmem:[%s270 + $0x20] sm:$0xff]
        %v335 = vld [vmem:[%s270 + $0x28] sm:$0xff]
        %v336 = vld [vmem:[%s270 + $0x30] sm:$0xff]
        %v337 = vld [vmem:[%s270 + $0x38] sm:$0xff]
        %v338 = vld [vmem:[%s270 + $0x40] sm:$0xff]
        %v339 = vld [vmem:[%s270 + $0x48] sm:$0xff]
        %v340 = vld [vmem:[%s270 + $0x50] sm:$0xff]
        %v341 = vld [vmem:[%s270 + $0x58] sm:$0xff]
        %v342 = vld [vmem:[%s270 + $0x60] sm:$0xff]
        %v343 = vld [vmem:[%s270 + $0x68] sm:$0xff]
        %v344 = vld [vmem:[%s270 + $0x70] sm:$0xff]
        %v345 = vld [vmem:[%s270 + $0x78] sm:$0xff]
        %v346 = vld [vmem:[%s270 + $0x80] sm:$0xff]
        %v347 = vld [vmem:[%s270 + $0x88] sm:$0xff]
        %v348 = vld [vmem:[%s270 + $0x90] sm:$0xff]
        %v349 = vld [vmem:[%s270 + $0x98] sm:$0xff]
        %v350 = vld [vmem:[%s270 + $0xa0] sm:$0xff]
        %v351 = vld [vmem:[%s270 + $0xa8] sm:$0xff]
        %v352 = vld [vmem:[%s270 + $0xb0] sm:$0xff]
        %v353 = vld [vmem:[%s270 + $0xb8] sm:$0xff]
        %v354 = vld [vmem:[%s270 + $0xc0] sm:$0xff]
        %v355 = vld [vmem:[%s270 + $0xc8] sm:$0xff]
        %v356 = vld [vmem:[%s270 + $0xd0] sm:$0xff]
        %v357 = vld [vmem:[%s270 + $0xd8] sm:$0xff]
        %v358 = vld [vmem:[%s270 + $0xe0] sm:$0xff]
        %v359 = vld [vmem:[%s270 + $0xe8] sm:$0xff]
        %v360 = vld [vmem:[%s270 + $0xf0] sm:$0xff]
        %v361 = vld [vmem:[%s270 + $0xf8] sm:$0xff]
        %v362 = vld [vmem:[%s279] sm:$0xff]
        %v363 = vld [vmem:[%s279 + $0x8] sm:$0xff]
        %v364 = vld [vmem:[%s279 + $0x10] sm:$0xff]
        %v365 = vld [vmem:[%s279 + $0x18] sm:$0xff]
        %v366 = vld [vmem:[%s279 + $0x20] sm:$0xff]
        %v367 = vld [vmem:[%s279 + $0x28] sm:$0xff]
        %v368 = vld [vmem:[%s279 + $0x30] sm:$0xff]
        %v369 = vld [vmem:[%s279 + $0x38] sm:$0xff]
        %v370 = vld [vmem:[%s279 + $0x40] sm:$0xff]
        %v371 = vld [vmem:[%s279 + $0x48] sm:$0xff]
        %v372 = vld [vmem:[%s279 + $0x50] sm:$0xff]
        %v373 = vld [vmem:[%s279 + $0x58] sm:$0xff]
        %v374 = vld [vmem:[%s279 + $0x60] sm:$0xff]
        %v375 = vld [vmem:[%s279 + $0x68] sm:$0xff]
        %v376 = vld [vmem:[%s279 + $0x70] sm:$0xff]
        %v377 = vld [vmem:[%s279 + $0x78] sm:$0xff]
        %v378 = vld [vmem:[%s279 + $0x80] sm:$0xff]
        %v379 = vld [vmem:[%s279 + $0x88] sm:$0xff]
        %v380 = vld [vmem:[%s279 + $0x90] sm:$0xff]
        %v381 = vld [vmem:[%s279 + $0x98] sm:$0xff]
        %v382 = vld [vmem:[%s279 + $0xa0] sm:$0xff]
        %v383 = vld [vmem:[%s279 + $0xa8] sm:$0xff]
        %v384 = vld [vmem:[%s279 + $0xb0] sm:$0xff]
        %v385 = vld [vmem:[%s279 + $0xb8] sm:$0xff]
        %v386 = vld [vmem:[%s279 + $0xc0] sm:$0xff]
        %v387 = vld [vmem:[%s279 + $0xc8] sm:$0xff]
        %v388 = vld [vmem:[%s279 + $0xd0] sm:$0xff]
        %v389 = vld [vmem:[%s279 + $0xd8] sm:$0xff]
        %v390 = vld [vmem:[%s279 + $0xe0] sm:$0xff]
        %v391 = vld [vmem:[%s279 + $0xe8] sm:$0xff]
        %v392 = vld [vmem:[%s279 + $0xf0] sm:$0xff]
        %v393 = vld [vmem:[%s279 + $0xf8] sm:$0xff]
        %v394 = vld [vmem:[%s279 + $0x100] sm:$0xff]
        %v395 = vld [vmem:[%s279 + $0x108] sm:$0xff]
        %v396 = vld [vmem:[%s279 + $0x110] sm:$0xff]
        %v397 = vld [vmem:[%s279 + $0x118] sm:$0xff]
        %v398 = vld [vmem:[%s279 + $0x120] sm:$0xff]
        %v399 = vld [vmem:[%s279 + $0x128] sm:$0xff]
        %v400 = vld [vmem:[%s279 + $0x130] sm:$0xff]
        %v401 = vld [vmem:[%s279 + $0x138] sm:$0xff]
        %v402 = vld [vmem:[%s279 + $0x140] sm:$0xff]
        %v403 = vld [vmem:[%s279 + $0x148] sm:$0xff]
        %v404 = vld [vmem:[%s279 + $0x150] sm:$0xff]
        %v405 = vld [vmem:[%s279 + $0x158] sm:$0xff]
        %v406 = vld [vmem:[%s279 + $0x160] sm:$0xff]
        %v407 = vld [vmem:[%s279 + $0x168] sm:$0xff]
        %v408 = vld [vmem:[%s279 + $0x170] sm:$0xff]
        %v409 = vld [vmem:[%s279 + $0x178] sm:$0xff]
        %v410 = vld [vmem:[%s279 + $0x180] sm:$0xff]
        %v411 = vld [vmem:[%s279 + $0x188] sm:$0xff]
        %v412 = vld [vmem:[%s279 + $0x190] sm:$0xff]
        %v413 = vld [vmem:[%s279 + $0x198] sm:$0xff]
        %v414 = vld [vmem:[%s279 + $0x1a0] sm:$0xff]
        %v415 = vld [vmem:[%s279 + $0x1a8] sm:$0xff]
        %v416 = vld [vmem:[%s279 + $0x1b0] sm:$0xff]
        %v417 = vld [vmem:[%s279 + $0x1b8] sm:$0xff]
        %v418 = vld [vmem:[%s279 + $0x1c0] sm:$0xff]
        %v419 = vld [vmem:[%s279 + $0x1c8] sm:$0xff]
        %v420 = vld [vmem:[%s279 + $0x1d0] sm:$0xff]
        %v421 = vld [vmem:[%s279 + $0x1d8] sm:$0xff]
        %v422 = vld [vmem:[%s279 + $0x1e0] sm:$0xff]
        %v423 = vld [vmem:[%s279 + $0x1e8] sm:$0xff]
        %v424 = vld [vmem:[%s279 + $0x1f0] sm:$0xff]
        %v425 = vld [vmem:[%s279 + $0x1f8] sm:$0xff]
        %v426 = vld [vmem:[%s288] sm:$0xff]
        %v427 = vld [vmem:[%s288 + $0x8] sm:$0xff]
        %v428 = vld [vmem:[%s288 + $0x10] sm:$0xff]
        %v429 = vld [vmem:[%s288 + $0x18] sm:$0xff]
        %v430 = vld [vmem:[%s288 + $0x20] sm:$0xff]
        %v431 = vld [vmem:[%s288 + $0x28] sm:$0xff]
        %v432 = vld [vmem:[%s288 + $0x30] sm:$0xff]
        %v433 = vld [vmem:[%s288 + $0x38] sm:$0xff]
        %v434 = vld [vmem:[%s288 + $0x40] sm:$0xff]
        %v435 = vld [vmem:[%s288 + $0x48] sm:$0xff]
        %v436 = vld [vmem:[%s288 + $0x50] sm:$0xff]
        %v437 = vld [vmem:[%s288 + $0x58] sm:$0xff]
        %v438 = vld [vmem:[%s288 + $0x60] sm:$0xff]
        %v439 = vld [vmem:[%s288 + $0x68] sm:$0xff]
        %v440 = vld [vmem:[%s288 + $0x70] sm:$0xff]
        %v441 = vld [vmem:[%s288 + $0x78] sm:$0xff]
        %v442 = vld [vmem:[%s288 + $0x80] sm:$0xff]
        %v443 = vld [vmem:[%s288 + $0x88] sm:$0xff]
        %v444 = vld [vmem:[%s288 + $0x90] sm:$0xff]
        %v445 = vld [vmem:[%s288 + $0x98] sm:$0xff]
        %v446 = vld [vmem:[%s288 + $0xa0] sm:$0xff]
        %v447 = vld [vmem:[%s288 + $0xa8] sm:$0xff]
        %v448 = vld [vmem:[%s288 + $0xb0] sm:$0xff]
        %v449 = vld [vmem:[%s288 + $0xb8] sm:$0xff]
        %v450 = vld [vmem:[%s288 + $0xc0] sm:$0xff]
        %v451 = vld [vmem:[%s288 + $0xc8] sm:$0xff]
        %v452 = vld [vmem:[%s288 + $0xd0] sm:$0xff]
        %v453 = vld [vmem:[%s288 + $0xd8] sm:$0xff]
        %v454 = vld [vmem:[%s288 + $0xe0] sm:$0xff]
        %v455 = vld [vmem:[%s288 + $0xe8] sm:$0xff]
        %v456 = vld [vmem:[%s288 + $0xf0] sm:$0xff]
        %v457 = vld [vmem:[%s288 + $0xf8] sm:$0xff]
        %v458 = vld [vmem:[%s288 + $0x100] sm:$0xff]
        %v459 = vld [vmem:[%s288 + $0x108] sm:$0xff]
        %v460 = vld [vmem:[%s288 + $0x110] sm:$0xff]
        %v461 = vld [vmem:[%s288 + $0x118] sm:$0xff]
        %v462 = vld [vmem:[%s288 + $0x120] sm:$0xff]
        %v463 = vld [vmem:[%s288 + $0x128] sm:$0xff]
        %v464 = vld [vmem:[%s288 + $0x130] sm:$0xff]
        %v465 = vld [vmem:[%s288 + $0x138] sm:$0xff]
        %v466 = vld [vmem:[%s288 + $0x140] sm:$0xff]
        %v467 = vld [vmem:[%s288 + $0x148] sm:$0xff]
        %v468 = vld [vmem:[%s288 + $0x150] sm:$0xff]
        %v469 = vld [vmem:[%s288 + $0x158] sm:$0xff]
        %v470 = vld [vmem:[%s288 + $0x160] sm:$0xff]
        %v471 = vld [vmem:[%s288 + $0x168] sm:$0xff]
        %v472 = vld [vmem:[%s288 + $0x170] sm:$0xff]
        %v473 = vld [vmem:[%s288 + $0x178] sm:$0xff]
        %v474 = vld [vmem:[%s288 + $0x180] sm:$0xff]
        %v475 = vld [vmem:[%s288 + $0x188] sm:$0xff]
        %v476 = vld [vmem:[%s288 + $0x190] sm:$0xff]
        %v477 = vld [vmem:[%s288 + $0x198] sm:$0xff]
        %v478 = vld [vmem:[%s288 + $0x1a0] sm:$0xff]
        %v479 = vld [vmem:[%s288 + $0x1a8] sm:$0xff]
        %v480 = vld [vmem:[%s288 + $0x1b0] sm:$0xff]
        %v481 = vld [vmem:[%s288 + $0x1b8] sm:$0xff]
        %v482 = vld [vmem:[%s288 + $0x1c0] sm:$0xff]
        %v483 = vld [vmem:[%s288 + $0x1c8] sm:$0xff]
        %v484 = vld [vmem:[%s288 + $0x1d0] sm:$0xff]
        %v485 = vld [vmem:[%s288 + $0x1d8] sm:$0xff]
        %v486 = vld [vmem:[%s288 + $0x1e0] sm:$0xff]
        %v487 = vld [vmem:[%s288 + $0x1e8] sm:$0xff]
        %v488 = vld [vmem:[%s288 + $0x1f0] sm:$0xff]
        %v489 = vld [vmem:[%s288 + $0x1f8] sm:$0xff]
        %v506 = vunpack.c.l.b16 %v330
        %v507 = vunpack.c.l.b16 %v332
        %v508 = vunpack.c.l.b16 %v334
        %v509 = vunpack.c.l.b16 %v336
        %v510 = vunpack.c.l.b16 %v338
        %v511 = vunpack.c.l.b16 %v340
        %v512 = vunpack.c.l.b16 %v342
        %v513 = vunpack.c.l.b16 %v344
        %v514 = vunpack.c.l.b16 %v346
        %v515 = vunpack.c.l.b16 %v348
        %v516 = vunpack.c.l.b16 %v350
        %v517 = vunpack.c.l.b16 %v352
        %v518 = vunpack.c.l.b16 %v354
        %v519 = vunpack.c.l.b16 %v356
        %v520 = vunpack.c.l.b16 %v358
        %v521 = vunpack.c.l.b16 %v360
        %v522 = vpack.c.b16 %v507, %v506
        %v523 = vpack.c.b16 %v509, %v508
        %v524 = vpack.c.b16 %v511, %v510
        %v525 = vpack.c.b16 %v513, %v512
        %v526 = vpack.c.b16 %v515, %v514
        %v527 = vpack.c.b16 %v517, %v516
        %v528 = vpack.c.b16 %v519, %v518
        %v529 = vpack.c.b16 %v521, %v520
        %v570 = vunpack.c.l.b16 %v362
        %v571 = vunpack.c.l.b16 %v364
        %v572 = vunpack.c.l.b16 %v366
        %v573 = vunpack.c.l.b16 %v368
        %v574 = vunpack.c.l.b16 %v370
        %v575 = vunpack.c.l.b16 %v372
        %v576 = vunpack.c.l.b16 %v374
        %v577 = vunpack.c.l.b16 %v376
        %v578 = vunpack.c.l.b16 %v378
        %v579 = vunpack.c.l.b16 %v380
        %v580 = vunpack.c.l.b16 %v382
        %v581 = vunpack.c.l.b16 %v384
        %v582 = vunpack.c.l.b16 %v386
        %v583 = vunpack.c.l.b16 %v388
        %v584 = vunpack.c.l.b16 %v390
        %v585 = vunpack.c.l.b16 %v392
        %v586 = vunpack.c.l.b16 %v394
        %v587 = vunpack.c.l.b16 %v396
        %v588 = vunpack.c.l.b16 %v398
        %v589 = vunpack.c.l.b16 %v400
        %v590 = vunpack.c.l.b16 %v402
        %v591 = vunpack.c.l.b16 %v404
        %v592 = vunpack.c.l.b16 %v406
        %v593 = vunpack.c.l.b16 %v408
        %v594 = vunpack.c.l.b16 %v410
        %v595 = vunpack.c.l.b16 %v412
        %v596 = vunpack.c.l.b16 %v414
        %v597 = vunpack.c.l.b16 %v416
        %v598 = vunpack.c.l.b16 %v418
        %v599 = vunpack.c.l.b16 %v420
        %v600 = vunpack.c.l.b16 %v422
        %v601 = vunpack.c.l.b16 %v424
        %v602 = vpack.c.b16 %v571, %v570
        %v603 = vpack.c.b16 %v573, %v572
        %v604 = vpack.c.b16 %v575, %v574
        %v605 = vpack.c.b16 %v577, %v576
        %v606 = vpack.c.b16 %v579, %v578
        %v607 = vpack.c.b16 %v581, %v580
        %v608 = vpack.c.b16 %v583, %v582
        %v609 = vpack.c.b16 %v585, %v584
        %v610 = vpack.c.b16 %v587, %v586
        %v611 = vpack.c.b16 %v589, %v588
        %v612 = vpack.c.b16 %v591, %v590
        %v613 = vpack.c.b16 %v593, %v592
        %v614 = vpack.c.b16 %v595, %v594
        %v615 = vpack.c.b16 %v597, %v596
        %v616 = vpack.c.b16 %v599, %v598
        %v617 = vpack.c.b16 %v601, %v600
        %634 = vmatprep.subr.bf16.mxu0 0
        %635 = vmatpush1.bf16.xpose.msra.mxu0 %v609
        %636 = vmatprep.subr.bf16.mxu0 0
        %637 = vmatpush1.bf16.xpose.msra.mxu0 %v608
        %638 = vmatprep.subr.bf16.mxu0 0
        %639 = vmatpush1.bf16.xpose.msra.mxu0 %v607
        %640 = vmatprep.subr.bf16.mxu0 0
        %641 = vmatpush1.bf16.xpose.msra.mxu0 %v606
        %642 = vmatprep.subr.bf16.mxu0 0
        %643 = vmatpush1.bf16.xpose.msra.mxu0 %v605
        %644 = vmatprep.subr.bf16.mxu0 0
        %645 = vmatpush1.bf16.xpose.msra.mxu0 %v604
        %646 = vmatprep.subr.bf16.mxu0 0
        %647 = vmatpush1.bf16.xpose.msra.mxu0 %v603
        %648 = vmatprep.subr.bf16.mxu0 0
        %649 = vmatpush1.bf16.xpose.msra.mxu0 %v602
        %650 = vmatprep.subr.bf16.mxu0 0
        %651 = vmatpush2.bf16.xpose.msra.mxu0 %v617
        %652 = vmatprep.subr.bf16.mxu0 0
        %653 = vmatpush2.bf16.xpose.msra.mxu0 %v616
        %654 = vmatprep.subr.bf16.mxu0 0
        %655 = vmatpush2.bf16.xpose.msra.mxu0 %v615
        %656 = vmatprep.subr.bf16.mxu0 0
        %657 = vmatpush2.bf16.xpose.msra.mxu0 %v614
        %658 = vmatprep.subr.bf16.mxu0 0
        %659 = vmatpush2.bf16.xpose.msra.mxu0 %v613
        %660 = vmatprep.subr.bf16.mxu0 0
        %661 = vmatpush2.bf16.xpose.msra.mxu0 %v612
        %662 = vmatprep.subr.bf16.mxu0 0
        %663 = vmatpush2.bf16.xpose.msra.mxu0 %v611
        %664 = vmatprep.subr.bf16.mxu0 0
        %665 = vmatpush2.bf16.xpose.msra.mxu0 %v610
        %666 = vmatprep.mubr.bf16.mxu0 0
        %667 = vmatmul.mubr.bf16.gmra.mxu0 %v522
        %v668 = vpop.f32.mrf.mxu0
        %v669 = vadd.f32 0.0, %v668
        %v670 = vpop.f32.mrf.mxu0
        %v671 = vadd.f32 0.0, %v670
        %v672 = vpop.f32.mrf.mxu0
        %v673 = vadd.f32 0.0, %v672
        %v674 = vpop.f32.mrf.mxu0
        %v675 = vadd.f32 0.0, %v674
        %676 = vmatprep.mubr.bf16.mxu0 0
        %677 = vmatmul.mubr.bf16.gmra.mxu0 %v523
        %v678 = vpop.f32.mrf.mxu0
        %v679 = vadd.f32 0.0, %v678
        %v680 = vpop.f32.mrf.mxu0
        %v681 = vadd.f32 0.0, %v680
        %v682 = vpop.f32.mrf.mxu0
        %v683 = vadd.f32 0.0, %v682
        %v684 = vpop.f32.mrf.mxu0
        %v685 = vadd.f32 0.0, %v684
        %686 = vmatprep.mubr.bf16.mxu0 0
        %687 = vmatmul.mubr.bf16.gmra.mxu0 %v524
        %v688 = vpop.f32.mrf.mxu0
        %v689 = vadd.f32 0.0, %v688
        %v690 = vpop.f32.mrf.mxu0
        %v691 = vadd.f32 0.0, %v690
        %v692 = vpop.f32.mrf.mxu0
        %v693 = vadd.f32 0.0, %v692
        %v694 = vpop.f32.mrf.mxu0
        %v695 = vadd.f32 0.0, %v694
        %696 = vmatprep.mubr.bf16.mxu0 0
        %697 = vmatmul.mubr.bf16.gmra.mxu0 %v525
        %v698 = vpop.f32.mrf.mxu0
        %v699 = vadd.f32 0.0, %v698
        %v700 = vpop.f32.mrf.mxu0
        %v701 = vadd.f32 0.0, %v700
        %v702 = vpop.f32.mrf.mxu0
        %v703 = vadd.f32 0.0, %v702
        %v704 = vpop.f32.mrf.mxu0
        %v705 = vadd.f32 0.0, %v704
        %706 = vmatprep.mubr.bf16.mxu0 0
        %707 = vmatmul.mubr.bf16.gmra.mxu0 %v526
        %v708 = vpop.f32.mrf.mxu0
        %v709 = vadd.f32 0.0, %v708
        %v710 = vpop.f32.mrf.mxu0
        %v711 = vadd.f32 0.0, %v710
        %v712 = vpop.f32.mrf.mxu0
        %v713 = vadd.f32 0.0, %v712
        %v714 = vpop.f32.mrf.mxu0
        %v715 = vadd.f32 0.0, %v714
        %716 = vmatprep.mubr.bf16.mxu0 0
        %717 = vmatmul.mubr.bf16.gmra.mxu0 %v527
        %v718 = vpop.f32.mrf.mxu0
        %v719 = vadd.f32 0.0, %v718
        %v720 = vpop.f32.mrf.mxu0
        %v721 = vadd.f32 0.0, %v720
        %v722 = vpop.f32.mrf.mxu0
        %v723 = vadd.f32 0.0, %v722
        %v724 = vpop.f32.mrf.mxu0
        %v725 = vadd.f32 0.0, %v724
        %726 = vmatprep.mubr.bf16.mxu0 0
        %727 = vmatmul.mubr.bf16.gmra.mxu0 %v528
        %v728 = vpop.f32.mrf.mxu0
        %v729 = vadd.f32 0.0, %v728
        %v730 = vpop.f32.mrf.mxu0
        %v731 = vadd.f32 0.0, %v730
        %v732 = vpop.f32.mrf.mxu0
        %v733 = vadd.f32 0.0, %v732
        %v734 = vpop.f32.mrf.mxu0
        %v735 = vadd.f32 0.0, %v734
        %736 = vmatprep.mubr.bf16.mxu0 0
        %737 = vmatmul.mubr.bf16.gmra.mxu0 %v529
        %v738 = vpop.f32.mrf.mxu0
        %v739 = vadd.f32 0.0, %v738
        %v740 = vpop.f32.mrf.mxu0
        %v741 = vadd.f32 0.0, %v740
        %v742 = vpop.f32.mrf.mxu0
        %v743 = vadd.f32 0.0, %v742
        %v744 = vpop.f32.mrf.mxu0
        %v745 = vadd.f32 0.0, %v744
        %746 = vdwg.mxu0
        %v747 = vmax.f32 %v669, %v671
        %748 = vmax.xlane.f32.xlu0 %v747
        %v749 = vpop.xlane.xlu0 %748
        %v750 = vmax.f32 %v673, %v675
        %751 = vmax.xlane.f32.xlu0 %v750
        %v752 = vpop.xlane.xlu0 %751
        %v753 = vmax.f32 %v679, %v681
        %754 = vmax.xlane.f32.xlu0 %v753
        %v755 = vpop.xlane.xlu0 %754
        %v756 = vmax.f32 %v683, %v685
        %757 = vmax.xlane.f32.xlu0 %v756
        %v758 = vpop.xlane.xlu0 %757
        %v759 = vmax.f32 %v689, %v691
        %760 = vmax.xlane.f32.xlu0 %v759
        %v761 = vpop.xlane.xlu0 %760
        %v762 = vmax.f32 %v693, %v695
        %763 = vmax.xlane.f32.xlu0 %v762
        %v764 = vpop.xlane.xlu0 %763
        %v765 = vmax.f32 %v699, %v701
        %766 = vmax.xlane.f32.xlu0 %v765
        %v767 = vpop.xlane.xlu0 %766
        %v768 = vmax.f32 %v703, %v705
        %769 = vmax.xlane.f32.xlu0 %v768
        %v770 = vpop.xlane.xlu0 %769
        %v771 = vmax.f32 %v709, %v711
        %772 = vmax.xlane.f32.xlu0 %v771
        %v773 = vpop.xlane.xlu0 %772
        %v774 = vmax.f32 %v713, %v715
        %775 = vmax.xlane.f32.xlu0 %v774
        %v776 = vpop.xlane.xlu0 %775
        %v777 = vmax.f32 %v719, %v721
        %778 = vmax.xlane.f32.xlu0 %v777
        %v779 = vpop.xlane.xlu0 %778
        %v780 = vmax.f32 %v723, %v725
        %781 = vmax.xlane.f32.xlu0 %v780
        %v782 = vpop.xlane.xlu0 %781
        %v783 = vmax.f32 %v729, %v731
        %784 = vmax.xlane.f32.xlu0 %v783
        %v785 = vpop.xlane.xlu0 %784
        %v786 = vmax.f32 %v733, %v735
        %787 = vmax.xlane.f32.xlu0 %v786
        %v788 = vpop.xlane.xlu0 %787
        %v789 = vmax.f32 %v739, %v741
        %790 = vmax.xlane.f32.xlu0 %v789
        %v791 = vpop.xlane.xlu0 %790
        %v792 = vmax.f32 %v743, %v745
        %793 = vmax.xlane.f32.xlu0 %v792
        %v794 = vpop.xlane.xlu0 %793
        %v795 = vsub.f32 %v669, %v749
        %v796 = vsub.f32 %v671, %v749
        %v797 = vsub.f32 %v673, %v752
        %v798 = vsub.f32 %v675, %v752
        %v799 = vsub.f32 %v679, %v755
        %v800 = vsub.f32 %v681, %v755
        %v801 = vsub.f32 %v683, %v758
        %v802 = vsub.f32 %v685, %v758
        %v803 = vsub.f32 %v689, %v761
        %v804 = vsub.f32 %v691, %v761
        %v805 = vsub.f32 %v693, %v764
        %v806 = vsub.f32 %v695, %v764
        %v807 = vsub.f32 %v699, %v767
        %v808 = vsub.f32 %v701, %v767
        %v809 = vsub.f32 %v703, %v770
        %v810 = vsub.f32 %v705, %v770
        %v811 = vsub.f32 %v709, %v773
        %v812 = vsub.f32 %v711, %v773
        %v813 = vsub.f32 %v713, %v776
        %v814 = vsub.f32 %v715, %v776
        %v815 = vsub.f32 %v719, %v779
        %v816 = vsub.f32 %v721, %v779
        %v817 = vsub.f32 %v723, %v782
        %v818 = vsub.f32 %v725, %v782
        %v819 = vsub.f32 %v729, %v785
        %v820 = vsub.f32 %v731, %v785
        %v821 = vsub.f32 %v733, %v788
        %v822 = vsub.f32 %v735, %v788
        %v823 = vsub.f32 %v739, %v791
        %v824 = vsub.f32 %v741, %v791
        %v825 = vsub.f32 %v743, %v794
        %v826 = vsub.f32 %v745, %v794
        %v827 = vmul.f32 %v795, 1.442695
        %v828 = vpow.pop %v827
        %v829 = vmul.f32 %v796, 1.442695
        %v830 = vpow.pop %v829
        %v831 = vmul.f32 %v797, 1.442695
        %v832 = vpow.pop %v831
        %v833 = vmul.f32 %v798, 1.442695
        %v834 = vpow.pop %v833
        %v835 = vmul.f32 %v799, 1.442695
        %v836 = vpow.pop %v835
        %v837 = vmul.f32 %v800, 1.442695
        %v838 = vpow.pop %v837
        %v839 = vmul.f32 %v801, 1.442695
        %v840 = vpow.pop %v839
        %v841 = vmul.f32 %v802, 1.442695
        %v842 = vpow.pop %v841
        %v843 = vmul.f32 %v803, 1.442695
        %v844 = vpow.pop %v843
        %v845 = vmul.f32 %v804, 1.442695
        %v846 = vpow.pop %v845
        %v847 = vmul.f32 %v805, 1.442695
        %v848 = vpow.pop %v847
        %v849 = vmul.f32 %v806, 1.442695
        %v850 = vpow.pop %v849
        %v851 = vmul.f32 %v807, 1.442695
        %v852 = vpow.pop %v851
        %v853 = vmul.f32 %v808, 1.442695
        %v854 = vpow.pop %v853
        %v855 = vmul.f32 %v809, 1.442695
        %v856 = vpow.pop %v855
        %v857 = vmul.f32 %v810, 1.442695
        %v858 = vpow.pop %v857
        %v859 = vmul.f32 %v811, 1.442695
        %v860 = vpow.pop %v859
        %v861 = vmul.f32 %v812, 1.442695
        %v862 = vpow.pop %v861
        %v863 = vmul.f32 %v813, 1.442695
        %v864 = vpow.pop %v863
        %v865 = vmul.f32 %v814, 1.442695
        %v866 = vpow.pop %v865
        %v867 = vmul.f32 %v815, 1.442695
        %v868 = vpow.pop %v867
        %v869 = vmul.f32 %v816, 1.442695
        %v870 = vpow.pop %v869
        %v871 = vmul.f32 %v817, 1.442695
        %v872 = vpow.pop %v871
        %v873 = vmul.f32 %v818, 1.442695
        %v874 = vpow.pop %v873
        %v875 = vmul.f32 %v819, 1.442695
        %v876 = vpow.pop %v875
        %v877 = vmul.f32 %v820, 1.442695
        %v878 = vpow.pop %v877
        %v879 = vmul.f32 %v821, 1.442695
        %v880 = vpow.pop %v879
        %v881 = vmul.f32 %v822, 1.442695
        %v882 = vpow.pop %v881
        %v883 = vmul.f32 %v823, 1.442695
        %v884 = vpow.pop %v883
        %v885 = vmul.f32 %v824, 1.442695
        %v886 = vpow.pop %v885
        %v887 = vmul.f32 %v825, 1.442695
        %v888 = vpow.pop %v887
        %v889 = vmul.f32 %v826, 1.442695
        %v890 = vpow.pop %v889
        %v891 = vadd.f32 %v828, %v830
        %892 = vadd.xlane.f32.xlu0 %v891
        %v893 = vpop.xlane.xlu0 %892
        %v894 = vadd.f32 %v832, %v834
        %895 = vadd.xlane.f32.xlu0 %v894
        %v896 = vpop.xlane.xlu0 %895
        %v897 = vadd.f32 %v836, %v838
        %898 = vadd.xlane.f32.xlu0 %v897
        %v899 = vpop.xlane.xlu0 %898
        %v900 = vadd.f32 %v840, %v842
        %901 = vadd.xlane.f32.xlu0 %v900
        %v902 = vpop.xlane.xlu0 %901
        %v903 = vadd.f32 %v844, %v846
        %904 = vadd.xlane.f32.xlu0 %v903
        %v905 = vpop.xlane.xlu0 %904
        %v906 = vadd.f32 %v848, %v850
        %907 = vadd.xlane.f32.xlu0 %v906
        %v908 = vpop.xlane.xlu0 %907
        %v909 = vadd.f32 %v852, %v854
        %910 = vadd.xlane.f32.xlu0 %v909
        %v911 = vpop.xlane.xlu0 %910
        %v912 = vadd.f32 %v856, %v858
        %913 = vadd.xlane.f32.xlu0 %v912
        %v914 = vpop.xlane.xlu0 %913
        %v915 = vadd.f32 %v860, %v862
        %916 = vadd.xlane.f32.xlu0 %v915
        %v917 = vpop.xlane.xlu0 %916
        %v918 = vadd.f32 %v864, %v866
        %919 = vadd.xlane.f32.xlu0 %v918
        %v920 = vpop.xlane.xlu0 %919
        %v921 = vadd.f32 %v868, %v870
        %922 = vadd.xlane.f32.xlu0 %v921
        %v923 = vpop.xlane.xlu0 %922
        %v924 = vadd.f32 %v872, %v874
        %925 = vadd.xlane.f32.xlu0 %v924
        %v926 = vpop.xlane.xlu0 %925
        %v927 = vadd.f32 %v876, %v878
        %928 = vadd.xlane.f32.xlu0 %v927
        %v929 = vpop.xlane.xlu0 %928
        %v930 = vadd.f32 %v880, %v882
        %931 = vadd.xlane.f32.xlu0 %v930
        %v932 = vpop.xlane.xlu0 %931
        %v933 = vadd.f32 %v884, %v886
        %934 = vadd.xlane.f32.xlu0 %v933
        %v935 = vpop.xlane.xlu0 %934
        %v936 = vadd.f32 %v888, %v890
        %937 = vadd.xlane.f32.xlu0 %v936
        %v938 = vpop.xlane.xlu0 %937
        %v939 = vpack.c.bf16 %v832, %v828
        %v940 = vpack.c.bf16 %v834, %v830
        %v941 = vpack.c.bf16 %v840, %v836
        %v942 = vpack.c.bf16 %v842, %v838
        %v943 = vpack.c.bf16 %v848, %v844
        %v944 = vpack.c.bf16 %v850, %v846
        %v945 = vpack.c.bf16 %v856, %v852
        %v946 = vpack.c.bf16 %v858, %v854
        %v947 = vpack.c.bf16 %v864, %v860
        %v948 = vpack.c.bf16 %v866, %v862
        %v949 = vpack.c.bf16 %v872, %v868
        %v950 = vpack.c.bf16 %v874, %v870
        %v951 = vpack.c.bf16 %v880, %v876
        %v952 = vpack.c.bf16 %v882, %v878
        %v953 = vpack.c.bf16 %v888, %v884
        %v954 = vpack.c.bf16 %v890, %v886
        %v987 = vunpack.c.l.b16 %v426
        %v988 = vunpack.c.l.b16 %v428
        %v989 = vunpack.c.l.b16 %v430
        %v990 = vunpack.c.l.b16 %v432
        %v991 = vunpack.c.l.b16 %v434
        %v992 = vunpack.c.l.b16 %v436
        %v993 = vunpack.c.l.b16 %v438
        %v994 = vunpack.c.l.b16 %v440
        %v995 = vunpack.c.l.b16 %v442
        %v996 = vunpack.c.l.b16 %v444
        %v997 = vunpack.c.l.b16 %v446
        %v998 = vunpack.c.l.b16 %v448
        %v999 = vunpack.c.l.b16 %v450
        %v1000 = vunpack.c.l.b16 %v452
        %v1001 = vunpack.c.l.b16 %v454
        %v1002 = vunpack.c.l.b16 %v456
        %v1003 = vunpack.c.l.b16 %v458
        %v1004 = vunpack.c.l.b16 %v460
        %v1005 = vunpack.c.l.b16 %v462
        %v1006 = vunpack.c.l.b16 %v464
        %v1007 = vunpack.c.l.b16 %v466
        %v1008 = vunpack.c.l.b16 %v468
        %v1009 = vunpack.c.l.b16 %v470
        %v1010 = vunpack.c.l.b16 %v472
        %v1011 = vunpack.c.l.b16 %v474
        %v1012 = vunpack.c.l.b16 %v476
        %v1013 = vunpack.c.l.b16 %v478
        %v1014 = vunpack.c.l.b16 %v480
        %v1015 = vunpack.c.l.b16 %v482
        %v1016 = vunpack.c.l.b16 %v484
        %v1017 = vunpack.c.l.b16 %v486
        %v1018 = vunpack.c.l.b16 %v488
        %v1019 = vpack.c.b16 %v988, %v987
        %v1020 = vpack.c.b16 %v990, %v989
        %v1021 = vpack.c.b16 %v992, %v991
        %v1022 = vpack.c.b16 %v994, %v993
        %v1023 = vpack.c.b16 %v996, %v995
        %v1024 = vpack.c.b16 %v998, %v997
        %v1025 = vpack.c.b16 %v1000, %v999
        %v1026 = vpack.c.b16 %v1002, %v1001
        %v1027 = vpack.c.b16 %v1004, %v1003
        %v1028 = vpack.c.b16 %v1006, %v1005
        %v1029 = vpack.c.b16 %v1008, %v1007
        %v1030 = vpack.c.b16 %v1010, %v1009
        %v1031 = vpack.c.b16 %v1012, %v1011
        %v1032 = vpack.c.b16 %v1014, %v1013
        %v1033 = vpack.c.b16 %v1016, %v1015
        %v1034 = vpack.c.b16 %v1018, %v1017
        %1051 = vmatprep.subr.bf16.mxu0 0
        %1052 = vmatpush1.bf16.msra.mxu0 %v1026
        %1053 = vmatprep.subr.bf16.mxu0 0
        %1054 = vmatpush1.bf16.msra.mxu0 %v1025
        %1055 = vmatprep.subr.bf16.mxu0 0
        %1056 = vmatpush1.bf16.msra.mxu0 %v1024
        %1057 = vmatprep.subr.bf16.mxu0 0
        %1058 = vmatpush1.bf16.msra.mxu0 %v1023
        %1059 = vmatprep.subr.bf16.mxu0 0
        %1060 = vmatpush1.bf16.msra.mxu0 %v1022
        %1061 = vmatprep.subr.bf16.mxu0 0
        %1062 = vmatpush1.bf16.msra.mxu0 %v1021
        %1063 = vmatprep.subr.bf16.mxu0 0
        %1064 = vmatpush1.bf16.msra.mxu0 %v1020
        %1065 = vmatprep.subr.bf16.mxu0 0
        %1066 = vmatpush1.bf16.msra.mxu0 %v1019
        %1067 = vmatprep.subr.bf16.mxu0 0
        %1068 = vmatpush2.bf16.msra.mxu0 %v1034
        %1069 = vmatprep.subr.bf16.mxu0 0
        %1070 = vmatpush2.bf16.msra.mxu0 %v1033
        %1071 = vmatprep.subr.bf16.mxu0 0
        %1072 = vmatpush2.bf16.msra.mxu0 %v1032
        %1073 = vmatprep.subr.bf16.mxu0 0
        %1074 = vmatpush2.bf16.msra.mxu0 %v1031
        %1075 = vmatprep.subr.bf16.mxu0 0
        %1076 = vmatpush2.bf16.msra.mxu0 %v1030
        %1077 = vmatprep.subr.bf16.mxu0 0
        %1078 = vmatpush2.bf16.msra.mxu0 %v1029
        %1079 = vmatprep.subr.bf16.mxu0 0
        %1080 = vmatpush2.bf16.msra.mxu0 %v1028
        %1081 = vmatprep.subr.bf16.mxu0 0
        %1082 = vmatpush2.bf16.msra.mxu0 %v1027
        %1083 = vmatprep.mubr.bf16.mxu0 %v940
        %1084 = vmatmul.mubr.bf16.gmra.mxu0 %v939
        %v1085 = vpop.f32.mrf.mxu0
        %v1086 = vadd.f32 0.0, %v1085
        %v1087 = vpop.f32.mrf.mxu0
        %v1088 = vpop.f32.mrf.mxu0
        %v1089 = vadd.f32 0.0, %v1088
        %v1090 = vpop.f32.mrf.mxu0
        %1091 = vmatprep.mubr.bf16.mxu0 %v942
        %1092 = vmatmul.mubr.bf16.gmra.mxu0 %v941
        %v1093 = vpop.f32.mrf.mxu0
        %v1094 = vadd.f32 0.0, %v1093
        %v1095 = vpop.f32.mrf.mxu0
        %v1096 = vpop.f32.mrf.mxu0
        %v1097 = vadd.f32 0.0, %v1096
        %v1098 = vpop.f32.mrf.mxu0
        %1099 = vmatprep.mubr.bf16.mxu0 %v944
        %1100 = vmatmul.mubr.bf16.gmra.mxu0 %v943
        %v1101 = vpop.f32.mrf.mxu0
        %v1102 = vadd.f32 0.0, %v1101
        %v1103 = vpop.f32.mrf.mxu0
        %v1104 = vpop.f32.mrf.mxu0
        %v1105 = vadd.f32 0.0, %v1104
        %v1106 = vpop.f32.mrf.mxu0
        %1107 = vmatprep.mubr.bf16.mxu0 %v946
        %1108 = vmatmul.mubr.bf16.gmra.mxu0 %v945
        %v1109 = vpop.f32.mrf.mxu0
        %v1110 = vadd.f32 0.0, %v1109
        %v1111 = vpop.f32.mrf.mxu0
        %v1112 = vpop.f32.mrf.mxu0
        %v1113 = vadd.f32 0.0, %v1112
        %v1114 = vpop.f32.mrf.mxu0
        %1115 = vmatprep.mubr.bf16.mxu0 %v948
        %1116 = vmatmul.mubr.bf16.gmra.mxu0 %v947
        %v1117 = vpop.f32.mrf.mxu0
        %v1118 = vadd.f32 0.0, %v1117
        %v1119 = vpop.f32.mrf.mxu0
        %v1120 = vpop.f32.mrf.mxu0
        %v1121 = vadd.f32 0.0, %v1120
        %v1122 = vpop.f32.mrf.mxu0
        %1123 = vmatprep.mubr.bf16.mxu0 %v950
        %1124 = vmatmul.mubr.bf16.gmra.mxu0 %v949
        %v1125 = vpop.f32.mrf.mxu0
        %v1126 = vadd.f32 0.0, %v1125
        %v1127 = vpop.f32.mrf.mxu0
        %v1128 = vpop.f32.mrf.mxu0
        %v1129 = vadd.f32 0.0, %v1128
        %v1130 = vpop.f32.mrf.mxu0
        %1131 = vmatprep.mubr.bf16.mxu0 %v952
        %1132 = vmatmul.mubr.bf16.gmra.mxu0 %v951
        %v1133 = vpop.f32.mrf.mxu0
        %v1134 = vadd.f32 0.0, %v1133
        %v1135 = vpop.f32.mrf.mxu0
        %v1136 = vpop.f32.mrf.mxu0
        %v1137 = vadd.f32 0.0, %v1136
        %v1138 = vpop.f32.mrf.mxu0
        %1139 = vmatprep.mubr.bf16.mxu0 %v954
        %1140 = vmatmul.mubr.bf16.gmra.mxu0 %v953
        %v1141 = vpop.f32.mrf.mxu0
        %v1142 = vadd.f32 0.0, %v1141
        %v1143 = vpop.f32.mrf.mxu0
        %v1144 = vpop.f32.mrf.mxu0
        %v1145 = vadd.f32 0.0, %v1144
        %v1146 = vpop.f32.mrf.mxu0
        %1147 = vdwg.mxu0
        %v1148 = vrcp.pop %v893
        %v1149 = vrcp.pop %v896
        %v1150 = vrcp.pop %v899
        %v1151 = vrcp.pop %v902
        %v1152 = vrcp.pop %v905
        %v1153 = vrcp.pop %v908
        %v1154 = vrcp.pop %v911
        %v1155 = vrcp.pop %v914
        %v1156 = vrcp.pop %v917
        %v1157 = vrcp.pop %v920
        %v1158 = vrcp.pop %v923
        %v1159 = vrcp.pop %v926
        %v1160 = vrcp.pop %v929
        %v1161 = vrcp.pop %v932
        %v1162 = vrcp.pop %v935
        %v1163 = vrcp.pop %v938
        %v1164 = vmul.f32 %v1086, %v1148
        %v1165 = vmul.f32 %v1089, %v1149
        %v1166 = vmul.f32 %v1094, %v1150
        %v1167 = vmul.f32 %v1097, %v1151
        %v1168 = vmul.f32 %v1102, %v1152
        %v1169 = vmul.f32 %v1105, %v1153
        %v1170 = vmul.f32 %v1110, %v1154
        %v1171 = vmul.f32 %v1113, %v1155
        %v1172 = vmul.f32 %v1118, %v1156
        %v1173 = vmul.f32 %v1121, %v1157
        %v1174 = vmul.f32 %v1126, %v1158
        %v1175 = vmul.f32 %v1129, %v1159
        %v1176 = vmul.f32 %v1134, %v1160
        %v1177 = vmul.f32 %v1137, %v1161
        %v1178 = vmul.f32 %v1142, %v1162
        %v1179 = vmul.f32 %v1145, %v1163
        %v1180 = vpack.c.bf16 %v1165, %v1164
        %v1181 = vpack.c.bf16 %v1167, %v1166
        %v1182 = vpack.c.bf16 %v1169, %v1168
        %v1183 = vpack.c.bf16 %v1171, %v1170
        %v1184 = vpack.c.bf16 %v1173, %v1172
        %v1185 = vpack.c.bf16 %v1175, %v1174
        %v1186 = vpack.c.bf16 %v1177, %v1176
        %v1187 = vpack.c.bf16 %v1179, %v1178
        %v1196 = vunpack.c.l.b16 %v1180
        %v1197 = vunpack.c.h.b16 %v1180
        %v1198 = vunpack.c.l.b16 %v1181
        %v1199 = vunpack.c.h.b16 %v1181
        %v1200 = vunpack.c.l.b16 %v1182
        %v1201 = vunpack.c.h.b16 %v1182
        %v1202 = vunpack.c.l.b16 %v1183
        %v1203 = vunpack.c.h.b16 %v1183
        %v1204 = vunpack.c.l.b16 %v1184
        %v1205 = vunpack.c.h.b16 %v1184
        %v1206 = vunpack.c.l.b16 %v1185
        %v1207 = vunpack.c.h.b16 %v1185
        %v1208 = vunpack.c.l.b16 %v1186
        %v1209 = vunpack.c.h.b16 %v1186
        %v1210 = vunpack.c.l.b16 %v1187
        %v1211 = vunpack.c.h.b16 %v1187
        %v1212 = vpack.c.b16 %v1196, %v1196
        %v1213 = vpack.c.b16 %v1197, %v1197
        %v1214 = vpack.c.b16 %v1198, %v1198
        %v1215 = vpack.c.b16 %v1199, %v1199
        %v1216 = vpack.c.b16 %v1200, %v1200
        %v1217 = vpack.c.b16 %v1201, %v1201
        %v1218 = vpack.c.b16 %v1202, %v1202
        %v1219 = vpack.c.b16 %v1203, %v1203
        %v1220 = vpack.c.b16 %v1204, %v1204
        %v1221 = vpack.c.b16 %v1205, %v1205
        %v1222 = vpack.c.b16 %v1206, %v1206
        %v1223 = vpack.c.b16 %v1207, %v1207
        %v1224 = vpack.c.b16 %v1208, %v1208
        %v1225 = vpack.c.b16 %v1209, %v1209
        %v1226 = vpack.c.b16 %v1210, %v1210
        %v1227 = vpack.c.b16 %v1211, %v1211
        %1244 = vst [vmem:[#allocation2] sm:$0xf] %v1212
        %1245 = vst [vmem:[#allocation2 + $0x10] sm:$0xf] %v1213
        %1246 = vst [vmem:[#allocation2 + $0x20] sm:$0xf] %v1214
        %1247 = vst [vmem:[#allocation2 + $0x30] sm:$0xf] %v1215
        %1248 = vst [vmem:[#allocation2 + $0x40] sm:$0xf] %v1216
        %1249 = vst [vmem:[#allocation2 + $0x50] sm:$0xf] %v1217
        %1250 = vst [vmem:[#allocation2 + $0x60] sm:$0xf] %v1218
        %1251 = vst [vmem:[#allocation2 + $0x70] sm:$0xf] %v1219
        %1252 = vst [vmem:[#allocation2 + $0x80] sm:$0xf] %v1220
        %1253 = vst [vmem:[#allocation2 + $0x90] sm:$0xf] %v1221
        %1254 = vst [vmem:[#allocation2 + $0xa0] sm:$0xf] %v1222
        %1255 = vst [vmem:[#allocation2 + $0xb0] sm:$0xf] %v1223
        %1256 = vst [vmem:[#allocation2 + $0xc0] sm:$0xf] %v1224
        %1257 = vst [vmem:[#allocation2 + $0xd0] sm:$0xf] %v1225
        %1258 = vst [vmem:[#allocation2 + $0xe0] sm:$0xf] %v1226
        %1259 = vst [vmem:[#allocation2 + $0xf0] sm:$0xf] %v1227
        %v1260 = vunpack.c.h.b16 %v330
        %v1261 = vunpack.c.h.b16 %v332
        %v1262 = vunpack.c.h.b16 %v334
        %v1263 = vunpack.c.h.b16 %v336
        %v1264 = vunpack.c.h.b16 %v338
        %v1265 = vunpack.c.h.b16 %v340
        %v1266 = vunpack.c.h.b16 %v342
        %v1267 = vunpack.c.h.b16 %v344
        %v1268 = vunpack.c.h.b16 %v346
        %v1269 = vunpack.c.h.b16 %v348
        %v1270 = vunpack.c.h.b16 %v350
        %v1271 = vunpack.c.h.b16 %v352
        %v1272 = vunpack.c.h.b16 %v354
        %v1273 = vunpack.c.h.b16 %v356
        %v1274 = vunpack.c.h.b16 %v358
        %v1275 = vunpack.c.h.b16 %v360
        %v1276 = vpack.c.b16 %v1261, %v1260
        %v1277 = vpack.c.b16 %v1263, %v1262
        %v1278 = vpack.c.b16 %v1265, %v1264
        %v1279 = vpack.c.b16 %v1267, %v1266
        %v1280 = vpack.c.b16 %v1269, %v1268
        %v1281 = vpack.c.b16 %v1271, %v1270
        %v1282 = vpack.c.b16 %v1273, %v1272
        %v1283 = vpack.c.b16 %v1275, %v1274
        %v1292 = vunpack.c.h.b16 %v362
        %v1293 = vunpack.c.h.b16 %v364
        %v1294 = vunpack.c.h.b16 %v366
        %v1295 = vunpack.c.h.b16 %v368
        %v1296 = vunpack.c.h.b16 %v370
        %v1297 = vunpack.c.h.b16 %v372
        %v1298 = vunpack.c.h.b16 %v374
        %v1299 = vunpack.c.h.b16 %v376
        %v1300 = vunpack.c.h.b16 %v378
        %v1301 = vunpack.c.h.b16 %v380
        %v1302 = vunpack.c.h.b16 %v382
        %v1303 = vunpack.c.h.b16 %v384
        %v1304 = vunpack.c.h.b16 %v386
        %v1305 = vunpack.c.h.b16 %v388
        %v1306 = vunpack.c.h.b16 %v390
        %v1307 = vunpack.c.h.b16 %v392
        %v1308 = vunpack.c.h.b16 %v394
        %v1309 = vunpack.c.h.b16 %v396
        %v1310 = vunpack.c.h.b16 %v398
        %v1311 = vunpack.c.h.b16 %v400
        %v1312 = vunpack.c.h.b16 %v402
        %v1313 = vunpack.c.h.b16 %v404
        %v1314 = vunpack.c.h.b16 %v406
        %v1315 = vunpack.c.h.b16 %v408
        %v1316 = vunpack.c.h.b16 %v410
        %v1317 = vunpack.c.h.b16 %v412
        %v1318 = vunpack.c.h.b16 %v414
        %v1319 = vunpack.c.h.b16 %v416
        %v1320 = vunpack.c.h.b16 %v418
        %v1321 = vunpack.c.h.b16 %v420
        %v1322 = vunpack.c.h.b16 %v422
        %v1323 = vunpack.c.h.b16 %v424
        %v1324 = vpack.c.b16 %v1293, %v1292
        %v1325 = vpack.c.b16 %v1295, %v1294
        %v1326 = vpack.c.b16 %v1297, %v1296
        %v1327 = vpack.c.b16 %v1299, %v1298
        %v1328 = vpack.c.b16 %v1301, %v1300
        %v1329 = vpack.c.b16 %v1303, %v1302
        %v1330 = vpack.c.b16 %v1305, %v1304
        %v1331 = vpack.c.b16 %v1307, %v1306
        %v1332 = vpack.c.b16 %v1309, %v1308
        %v1333 = vpack.c.b16 %v1311, %v1310
        %v1334 = vpack.c.b16 %v1313, %v1312
        %v1335 = vpack.c.b16 %v1315, %v1314
        %v1336 = vpack.c.b16 %v1317, %v1316
        %v1337 = vpack.c.b16 %v1319, %v1318
        %v1338 = vpack.c.b16 %v1321, %v1320
        %v1339 = vpack.c.b16 %v1323, %v1322
        %1356 = vmatprep.subr.bf16.mxu0 0
        %1357 = vmatpush1.bf16.xpose.msra.mxu0 %v1331
        %1358 = vmatprep.subr.bf16.mxu0 0
        %1359 = vmatpush1.bf16.xpose.msra.mxu0 %v1330
        %1360 = vmatprep.subr.bf16.mxu0 0
        %1361 = vmatpush1.bf16.xpose.msra.mxu0 %v1329
        %1362 = vmatprep.subr.bf16.mxu0 0
        %1363 = vmatpush1.bf16.xpose.msra.mxu0 %v1328
        %1364 = vmatprep.subr.bf16.mxu0 0
        %1365 = vmatpush1.bf16.xpose.msra.mxu0 %v1327
        %1366 = vmatprep.subr.bf16.mxu0 0
        %1367 = vmatpush1.bf16.xpose.msra.mxu0 %v1326
        %1368 = vmatprep.subr.bf16.mxu0 0
        %1369 = vmatpush1.bf16.xpose.msra.mxu0 %v1325
        %1370 = vmatprep.subr.bf16.mxu0 0
        %1371 = vmatpush1.bf16.xpose.msra.mxu0 %v1324
        %1372 = vmatprep.subr.bf16.mxu0 0
        %1373 = vmatpush2.bf16.xpose.msra.mxu0 %v1339
        %1374 = vmatprep.subr.bf16.mxu0 0
        %1375 = vmatpush2.bf16.xpose.msra.mxu0 %v1338
        %1376 = vmatprep.subr.bf16.mxu0 0
        %1377 = vmatpush2.bf16.xpose.msra.mxu0 %v1337
        %1378 = vmatprep.subr.bf16.mxu0 0
        %1379 = vmatpush2.bf16.xpose.msra.mxu0 %v1336
        %1380 = vmatprep.subr.bf16.mxu0 0
        %1381 = vmatpush2.bf16.xpose.msra.mxu0 %v1335
        %1382 = vmatprep.subr.bf16.mxu0 0
        %1383 = vmatpush2.bf16.xpose.msra.mxu0 %v1334
        %1384 = vmatprep.subr.bf16.mxu0 0
        %1385 = vmatpush2.bf16.xpose.msra.mxu0 %v1333
        %1386 = vmatprep.subr.bf16.mxu0 0
        %1387 = vmatpush2.bf16.xpose.msra.mxu0 %v1332
        %1388 = vmatprep.mubr.bf16.mxu0 0
        %1389 = vmatmul.mubr.bf16.gmra.mxu0 %v1276
        %v1390 = vpop.f32.mrf.mxu0
        %v1391 = vadd.f32 0.0, %v1390
        %v1392 = vpop.f32.mrf.mxu0
        %v1393 = vadd.f32 0.0, %v1392
        %v1394 = vpop.f32.mrf.mxu0
        %v1395 = vadd.f32 0.0, %v1394
        %v1396 = vpop.f32.mrf.mxu0
        %v1397 = vadd.f32 0.0, %v1396
        %1398 = vmatprep.mubr.bf16.mxu0 0
        %1399 = vmatmul.mubr.bf16.gmra.mxu0 %v1277
        %v1400 = vpop.f32.mrf.mxu0
        %v1401 = vadd.f32 0.0, %v1400
        %v1402 = vpop.f32.mrf.mxu0
        %v1403 = vadd.f32 0.0, %v1402
        %v1404 = vpop.f32.mrf.mxu0
        %v1405 = vadd.f32 0.0, %v1404
        %v1406 = vpop.f32.mrf.mxu0
        %v1407 = vadd.f32 0.0, %v1406
        %1408 = vmatprep.mubr.bf16.mxu0 0
        %1409 = vmatmul.mubr.bf16.gmra.mxu0 %v1278
        %v1410 = vpop.f32.mrf.mxu0
        %v1411 = vadd.f32 0.0, %v1410
        %v1412 = vpop.f32.mrf.mxu0
        %v1413 = vadd.f32 0.0, %v1412
        %v1414 = vpop.f32.mrf.mxu0
        %v1415 = vadd.f32 0.0, %v1414
        %v1416 = vpop.f32.mrf.mxu0
        %v1417 = vadd.f32 0.0, %v1416
        %1418 = vmatprep.mubr.bf16.mxu0 0
        %1419 = vmatmul.mubr.bf16.gmra.mxu0 %v1279
        %v1420 = vpop.f32.mrf.mxu0
        %v1421 = vadd.f32 0.0, %v1420
        %v1422 = vpop.f32.mrf.mxu0
        %v1423 = vadd.f32 0.0, %v1422
        %v1424 = vpop.f32.mrf.mxu0
        %v1425 = vadd.f32 0.0, %v1424
        %v1426 = vpop.f32.mrf.mxu0
        %v1427 = vadd.f32 0.0, %v1426
        %1428 = vmatprep.mubr.bf16.mxu0 0
        %1429 = vmatmul.mubr.bf16.gmra.mxu0 %v1280
        %v1430 = vpop.f32.mrf.mxu0
        %v1431 = vadd.f32 0.0, %v1430
        %v1432 = vpop.f32.mrf.mxu0
        %v1433 = vadd.f32 0.0, %v1432
        %v1434 = vpop.f32.mrf.mxu0
        %v1435 = vadd.f32 0.0, %v1434
        %v1436 = vpop.f32.mrf.mxu0
        %v1437 = vadd.f32 0.0, %v1436
        %1438 = vmatprep.mubr.bf16.mxu0 0
        %1439 = vmatmul.mubr.bf16.gmra.mxu0 %v1281
        %v1440 = vpop.f32.mrf.mxu0
        %v1441 = vadd.f32 0.0, %v1440
        %v1442 = vpop.f32.mrf.mxu0
        %v1443 = vadd.f32 0.0, %v1442
        %v1444 = vpop.f32.mrf.mxu0
        %v1445 = vadd.f32 0.0, %v1444
        %v1446 = vpop.f32.mrf.mxu0
        %v1447 = vadd.f32 0.0, %v1446
        %1448 = vmatprep.mubr.bf16.mxu0 0
        %1449 = vmatmul.mubr.bf16.gmra.mxu0 %v1282
        %v1450 = vpop.f32.mrf.mxu0
        %v1451 = vadd.f32 0.0, %v1450
        %v1452 = vpop.f32.mrf.mxu0
        %v1453 = vadd.f32 0.0, %v1452
        %v1454 = vpop.f32.mrf.mxu0
        %v1455 = vadd.f32 0.0, %v1454
        %v1456 = vpop.f32.mrf.mxu0
        %v1457 = vadd.f32 0.0, %v1456
        %1458 = vmatprep.mubr.bf16.mxu0 0
        %1459 = vmatmul.mubr.bf16.gmra.mxu0 %v1283
        %v1460 = vpop.f32.mrf.mxu0
        %v1461 = vadd.f32 0.0, %v1460
        %v1462 = vpop.f32.mrf.mxu0
        %v1463 = vadd.f32 0.0, %v1462
        %v1464 = vpop.f32.mrf.mxu0
        %v1465 = vadd.f32 0.0, %v1464
        %v1466 = vpop.f32.mrf.mxu0
        %v1467 = vadd.f32 0.0, %v1466
        %1468 = vdwg.mxu0
        %v1469 = vmax.f32 %v1391, %v1393
        %1470 = vmax.xlane.f32.xlu0 %v1469
        %v1471 = vpop.xlane.xlu0 %1470
        %v1472 = vmax.f32 %v1395, %v1397
        %1473 = vmax.xlane.f32.xlu0 %v1472
        %v1474 = vpop.xlane.xlu0 %1473
        %v1475 = vmax.f32 %v1401, %v1403
        %1476 = vmax.xlane.f32.xlu0 %v1475
        %v1477 = vpop.xlane.xlu0 %1476
        %v1478 = vmax.f32 %v1405, %v1407
        %1479 = vmax.xlane.f32.xlu0 %v1478
        %v1480 = vpop.xlane.xlu0 %1479
        %v1481 = vmax.f32 %v1411, %v1413
        %1482 = vmax.xlane.f32.xlu0 %v1481
        %v1483 = vpop.xlane.xlu0 %1482
        %v1484 = vmax.f32 %v1415, %v1417
        %1485 = vmax.xlane.f32.xlu0 %v1484
        %v1486 = vpop.xlane.xlu0 %1485
        %v1487 = vmax.f32 %v1421, %v1423
        %1488 = vmax.xlane.f32.xlu0 %v1487
        %v1489 = vpop.xlane.xlu0 %1488
        %v1490 = vmax.f32 %v1425, %v1427
        %1491 = vmax.xlane.f32.xlu0 %v1490
        %v1492 = vpop.xlane.xlu0 %1491
        %v1493 = vmax.f32 %v1431, %v1433
        %1494 = vmax.xlane.f32.xlu0 %v1493
        %v1495 = vpop.xlane.xlu0 %1494
        %v1496 = vmax.f32 %v1435, %v1437
        %1497 = vmax.xlane.f32.xlu0 %v1496
        %v1498 = vpop.xlane.xlu0 %1497
        %v1499 = vmax.f32 %v1441, %v1443
        %1500 = vmax.xlane.f32.xlu0 %v1499
        %v1501 = vpop.xlane.xlu0 %1500
        %v1502 = vmax.f32 %v1445, %v1447
        %1503 = vmax.xlane.f32.xlu0 %v1502
        %v1504 = vpop.xlane.xlu0 %1503
        %v1505 = vmax.f32 %v1451, %v1453
        %1506 = vmax.xlane.f32.xlu0 %v1505
        %v1507 = vpop.xlane.xlu0 %1506
        %v1508 = vmax.f32 %v1455, %v1457
        %1509 = vmax.xlane.f32.xlu0 %v1508
        %v1510 = vpop.xlane.xlu0 %1509
        %v1511 = vmax.f32 %v1461, %v1463
        %1512 = vmax.xlane.f32.xlu0 %v1511
        %v1513 = vpop.xlane.xlu0 %1512
        %v1514 = vmax.f32 %v1465, %v1467
        %1515 = vmax.xlane.f32.xlu0 %v1514
        %v1516 = vpop.xlane.xlu0 %1515
        %v1517 = vsub.f32 %v1391, %v1471
        %v1518 = vsub.f32 %v1393, %v1471
        %v1519 = vsub.f32 %v1395, %v1474
        %v1520 = vsub.f32 %v1397, %v1474
        %v1521 = vsub.f32 %v1401, %v1477
        %v1522 = vsub.f32 %v1403, %v1477
        %v1523 = vsub.f32 %v1405, %v1480
        %v1524 = vsub.f32 %v1407, %v1480
        %v1525 = vsub.f32 %v1411, %v1483
        %v1526 = vsub.f32 %v1413, %v1483
        %v1527 = vsub.f32 %v1415, %v1486
        %v1528 = vsub.f32 %v1417, %v1486
        %v1529 = vsub.f32 %v1421, %v1489
        %v1530 = vsub.f32 %v1423, %v1489
        %v1531 = vsub.f32 %v1425, %v1492
        %v1532 = vsub.f32 %v1427, %v1492
        %v1533 = vsub.f32 %v1431, %v1495
        %v1534 = vsub.f32 %v1433, %v1495
        %v1535 = vsub.f32 %v1435, %v1498
        %v1536 = vsub.f32 %v1437, %v1498
        %v1537 = vsub.f32 %v1441, %v1501
        %v1538 = vsub.f32 %v1443, %v1501
        %v1539 = vsub.f32 %v1445, %v1504
        %v1540 = vsub.f32 %v1447, %v1504
        %v1541 = vsub.f32 %v1451, %v1507
        %v1542 = vsub.f32 %v1453, %v1507
        %v1543 = vsub.f32 %v1455, %v1510
        %v1544 = vsub.f32 %v1457, %v1510
        %v1545 = vsub.f32 %v1461, %v1513
        %v1546 = vsub.f32 %v1463, %v1513
        %v1547 = vsub.f32 %v1465, %v1516
        %v1548 = vsub.f32 %v1467, %v1516
        %v1549 = vmul.f32 %v1517, 1.442695
        %v1550 = vpow.pop %v1549
        %v1551 = vmul.f32 %v1518, 1.442695
        %v1552 = vpow.pop %v1551
        %v1553 = vmul.f32 %v1519, 1.442695
        %v1554 = vpow.pop %v1553
        %v1555 = vmul.f32 %v1520, 1.442695
        %v1556 = vpow.pop %v1555
        %v1557 = vmul.f32 %v1521, 1.442695
        %v1558 = vpow.pop %v1557
        %v1559 = vmul.f32 %v1522, 1.442695
        %v1560 = vpow.pop %v1559
        %v1561 = vmul.f32 %v1523, 1.442695
        %v1562 = vpow.pop %v1561
        %v1563 = vmul.f32 %v1524, 1.442695
        %v1564 = vpow.pop %v1563
        %v1565 = vmul.f32 %v1525, 1.442695
        %v1566 = vpow.pop %v1565
        %v1567 = vmul.f32 %v1526, 1.442695
        %v1568 = vpow.pop %v1567
        %v1569 = vmul.f32 %v1527, 1.442695
        %v1570 = vpow.pop %v1569
        %v1571 = vmul.f32 %v1528, 1.442695
        %v1572 = vpow.pop %v1571
        %v1573 = vmul.f32 %v1529, 1.442695
        %v1574 = vpow.pop %v1573
        %v1575 = vmul.f32 %v1530, 1.442695
        %v1576 = vpow.pop %v1575
        %v1577 = vmul.f32 %v1531, 1.442695
        %v1578 = vpow.pop %v1577
        %v1579 = vmul.f32 %v1532, 1.442695
        %v1580 = vpow.pop %v1579
        %v1581 = vmul.f32 %v1533, 1.442695
        %v1582 = vpow.pop %v1581
        %v1583 = vmul.f32 %v1534, 1.442695
        %v1584 = vpow.pop %v1583
        %v1585 = vmul.f32 %v1535, 1.442695
        %v1586 = vpow.pop %v1585
        %v1587 = vmul.f32 %v1536, 1.442695
        %v1588 = vpow.pop %v1587
        %v1589 = vmul.f32 %v1537, 1.442695
        %v1590 = vpow.pop %v1589
        %v1591 = vmul.f32 %v1538, 1.442695
        %v1592 = vpow.pop %v1591
        %v1593 = vmul.f32 %v1539, 1.442695
        %v1594 = vpow.pop %v1593
        %v1595 = vmul.f32 %v1540, 1.442695
        %v1596 = vpow.pop %v1595
        %v1597 = vmul.f32 %v1541, 1.442695
        %v1598 = vpow.pop %v1597
        %v1599 = vmul.f32 %v1542, 1.442695
        %v1600 = vpow.pop %v1599
        %v1601 = vmul.f32 %v1543, 1.442695
        %v1602 = vpow.pop %v1601
        %v1603 = vmul.f32 %v1544, 1.442695
        %v1604 = vpow.pop %v1603
        %v1605 = vmul.f32 %v1545, 1.442695
        %v1606 = vpow.pop %v1605
        %v1607 = vmul.f32 %v1546, 1.442695
        %v1608 = vpow.pop %v1607
        %v1609 = vmul.f32 %v1547, 1.442695
        %v1610 = vpow.pop %v1609
        %v1611 = vmul.f32 %v1548, 1.442695
        %v1612 = vpow.pop %v1611
        %v1613 = vadd.f32 %v1550, %v1552
        %1614 = vadd.xlane.f32.xlu0 %v1613
        %v1615 = vpop.xlane.xlu0 %1614
        %v1616 = vadd.f32 %v1554, %v1556
        %1617 = vadd.xlane.f32.xlu0 %v1616
        %v1618 = vpop.xlane.xlu0 %1617
        %v1619 = vadd.f32 %v1558, %v1560
        %1620 = vadd.xlane.f32.xlu0 %v1619
        %v1621 = vpop.xlane.xlu0 %1620
        %v1622 = vadd.f32 %v1562, %v1564
        %1623 = vadd.xlane.f32.xlu0 %v1622
        %v1624 = vpop.xlane.xlu0 %1623
        %v1625 = vadd.f32 %v1566, %v1568
        %1626 = vadd.xlane.f32.xlu0 %v1625
        %v1627 = vpop.xlane.xlu0 %1626
        %v1628 = vadd.f32 %v1570, %v1572
        %1629 = vadd.xlane.f32.xlu0 %v1628
        %v1630 = vpop.xlane.xlu0 %1629
        %v1631 = vadd.f32 %v1574, %v1576
        %1632 = vadd.xlane.f32.xlu0 %v1631
        %v1633 = vpop.xlane.xlu0 %1632
        %v1634 = vadd.f32 %v1578, %v1580
        %1635 = vadd.xlane.f32.xlu0 %v1634
        %v1636 = vpop.xlane.xlu0 %1635
        %v1637 = vadd.f32 %v1582, %v1584
        %1638 = vadd.xlane.f32.xlu0 %v1637
        %v1639 = vpop.xlane.xlu0 %1638
        %v1640 = vadd.f32 %v1586, %v1588
        %1641 = vadd.xlane.f32.xlu0 %v1640
        %v1642 = vpop.xlane.xlu0 %1641
        %v1643 = vadd.f32 %v1590, %v1592
        %1644 = vadd.xlane.f32.xlu0 %v1643
        %v1645 = vpop.xlane.xlu0 %1644
        %v1646 = vadd.f32 %v1594, %v1596
        %1647 = vadd.xlane.f32.xlu0 %v1646
        %v1648 = vpop.xlane.xlu0 %1647
        %v1649 = vadd.f32 %v1598, %v1600
        %1650 = vadd.xlane.f32.xlu0 %v1649
        %v1651 = vpop.xlane.xlu0 %1650
        %v1652 = vadd.f32 %v1602, %v1604
        %1653 = vadd.xlane.f32.xlu0 %v1652
        %v1654 = vpop.xlane.xlu0 %1653
        %v1655 = vadd.f32 %v1606, %v1608
        %1656 = vadd.xlane.f32.xlu0 %v1655
        %v1657 = vpop.xlane.xlu0 %1656
        %v1658 = vadd.f32 %v1610, %v1612
        %1659 = vadd.xlane.f32.xlu0 %v1658
        %v1660 = vpop.xlane.xlu0 %1659
        %v1661 = vpack.c.bf16 %v1554, %v1550
        %v1662 = vpack.c.bf16 %v1556, %v1552
        %v1663 = vpack.c.bf16 %v1562, %v1558
        %v1664 = vpack.c.bf16 %v1564, %v1560
        %v1665 = vpack.c.bf16 %v1570, %v1566
        %v1666 = vpack.c.bf16 %v1572, %v1568
        %v1667 = vpack.c.bf16 %v1578, %v1574
        %v1668 = vpack.c.bf16 %v1580, %v1576
        %v1669 = vpack.c.bf16 %v1586, %v1582
        %v1670 = vpack.c.bf16 %v1588, %v1584
        %v1671 = vpack.c.bf16 %v1594, %v1590
        %v1672 = vpack.c.bf16 %v1596, %v1592
        %v1673 = vpack.c.bf16 %v1602, %v1598
        %v1674 = vpack.c.bf16 %v1604, %v1600
        %v1675 = vpack.c.bf16 %v1610, %v1606
        %v1676 = vpack.c.bf16 %v1612, %v1608
        %v1677 = vunpack.c.h.b16 %v426
        %v1678 = vunpack.c.h.b16 %v428
        %v1679 = vunpack.c.h.b16 %v430
        %v1680 = vunpack.c.h.b16 %v432
        %v1681 = vunpack.c.h.b16 %v434
        %v1682 = vunpack.c.h.b16 %v436
        %v1683 = vunpack.c.h.b16 %v438
        %v1684 = vunpack.c.h.b16 %v440
        %v1685 = vunpack.c.h.b16 %v442
        %v1686 = vunpack.c.h.b16 %v444
        %v1687 = vunpack.c.h.b16 %v446
        %v1688 = vunpack.c.h.b16 %v448
        %v1689 = vunpack.c.h.b16 %v450
        %v1690 = vunpack.c.h.b16 %v452
        %v1691 = vunpack.c.h.b16 %v454
        %v1692 = vunpack.c.h.b16 %v456
        %v1693 = vunpack.c.h.b16 %v458
        %v1694 = vunpack.c.h.b16 %v460
        %v1695 = vunpack.c.h.b16 %v462
        %v1696 = vunpack.c.h.b16 %v464
        %v1697 = vunpack.c.h.b16 %v466
        %v1698 = vunpack.c.h.b16 %v468
        %v1699 = vunpack.c.h.b16 %v470
        %v1700 = vunpack.c.h.b16 %v472
        %v1701 = vunpack.c.h.b16 %v474
        %v1702 = vunpack.c.h.b16 %v476
        %v1703 = vunpack.c.h.b16 %v478
        %v1704 = vunpack.c.h.b16 %v480
        %v1705 = vunpack.c.h.b16 %v482
        %v1706 = vunpack.c.h.b16 %v484
        %v1707 = vunpack.c.h.b16 %v486
        %v1708 = vunpack.c.h.b16 %v488
        %v1709 = vpack.c.b16 %v1678, %v1677
        %v1710 = vpack.c.b16 %v1680, %v1679
        %v1711 = vpack.c.b16 %v1682, %v1681
        %v1712 = vpack.c.b16 %v1684, %v1683
        %v1713 = vpack.c.b16 %v1686, %v1685
        %v1714 = vpack.c.b16 %v1688, %v1687
        %v1715 = vpack.c.b16 %v1690, %v1689
        %v1716 = vpack.c.b16 %v1692, %v1691
        %v1717 = vpack.c.b16 %v1694, %v1693
        %v1718 = vpack.c.b16 %v1696, %v1695
        %v1719 = vpack.c.b16 %v1698, %v1697
        %v1720 = vpack.c.b16 %v1700, %v1699
        %v1721 = vpack.c.b16 %v1702, %v1701
        %v1722 = vpack.c.b16 %v1704, %v1703
        %v1723 = vpack.c.b16 %v1706, %v1705
        %v1724 = vpack.c.b16 %v1708, %v1707
        %1741 = vmatprep.subr.bf16.mxu0 0
        %1742 = vmatpush1.bf16.msra.mxu0 %v1716
        %1743 = vmatprep.subr.bf16.mxu0 0
        %1744 = vmatpush1.bf16.msra.mxu0 %v1715
        %1745 = vmatprep.subr.bf16.mxu0 0
        %1746 = vmatpush1.bf16.msra.mxu0 %v1714
        %1747 = vmatprep.subr.bf16.mxu0 0
        %1748 = vmatpush1.bf16.msra.mxu0 %v1713
        %1749 = vmatprep.subr.bf16.mxu0 0
        %1750 = vmatpush1.bf16.msra.mxu0 %v1712
        %1751 = vmatprep.subr.bf16.mxu0 0
        %1752 = vmatpush1.bf16.msra.mxu0 %v1711
        %1753 = vmatprep.subr.bf16.mxu0 0
        %1754 = vmatpush1.bf16.msra.mxu0 %v1710
        %1755 = vmatprep.subr.bf16.mxu0 0
        %1756 = vmatpush1.bf16.msra.mxu0 %v1709
        %1757 = vmatprep.subr.bf16.mxu0 0
        %1758 = vmatpush2.bf16.msra.mxu0 %v1724
        %1759 = vmatprep.subr.bf16.mxu0 0
        %1760 = vmatpush2.bf16.msra.mxu0 %v1723
        %1761 = vmatprep.subr.bf16.mxu0 0
        %1762 = vmatpush2.bf16.msra.mxu0 %v1722
        %1763 = vmatprep.subr.bf16.mxu0 0
        %1764 = vmatpush2.bf16.msra.mxu0 %v1721
        %1765 = vmatprep.subr.bf16.mxu0 0
        %1766 = vmatpush2.bf16.msra.mxu0 %v1720
        %1767 = vmatprep.subr.bf16.mxu0 0
        %1768 = vmatpush2.bf16.msra.mxu0 %v1719
        %1769 = vmatprep.subr.bf16.mxu0 0
        %1770 = vmatpush2.bf16.msra.mxu0 %v1718
        %1771 = vmatprep.subr.bf16.mxu0 0
        %1772 = vmatpush2.bf16.msra.mxu0 %v1717
        %1773 = vmatprep.mubr.bf16.mxu0 %v1662
        %1774 = vmatmul.mubr.bf16.gmra.mxu0 %v1661
        %v1775 = vpop.f32.mrf.mxu0
        %v1776 = vadd.f32 0.0, %v1775
        %v1777 = vpop.f32.mrf.mxu0
        %v1778 = vpop.f32.mrf.mxu0
        %v1779 = vadd.f32 0.0, %v1778
        %v1780 = vpop.f32.mrf.mxu0
        %1781 = vmatprep.mubr.bf16.mxu0 %v1664
        %1782 = vmatmul.mubr.bf16.gmra.mxu0 %v1663
        %v1783 = vpop.f32.mrf.mxu0
        %v1784 = vadd.f32 0.0, %v1783
        %v1785 = vpop.f32.mrf.mxu0
        %v1786 = vpop.f32.mrf.mxu0
        %v1787 = vadd.f32 0.0, %v1786
        %v1788 = vpop.f32.mrf.mxu0
        %1789 = vmatprep.mubr.bf16.mxu0 %v1666
        %1790 = vmatmul.mubr.bf16.gmra.mxu0 %v1665
        %v1791 = vpop.f32.mrf.mxu0
        %v1792 = vadd.f32 0.0, %v1791
        %v1793 = vpop.f32.mrf.mxu0
        %v1794 = vpop.f32.mrf.mxu0
        %v1795 = vadd.f32 0.0, %v1794
        %v1796 = vpop.f32.mrf.mxu0
        %1797 = vmatprep.mubr.bf16.mxu0 %v1668
        %1798 = vmatmul.mubr.bf16.gmra.mxu0 %v1667
        %v1799 = vpop.f32.mrf.mxu0
        %v1800 = vadd.f32 0.0, %v1799
        %v1801 = vpop.f32.mrf.mxu0
        %v1802 = vpop.f32.mrf.mxu0
        %v1803 = vadd.f32 0.0, %v1802
        %v1804 = vpop.f32.mrf.mxu0
        %1805 = vmatprep.mubr.bf16.mxu0 %v1670
        %1806 = vmatmul.mubr.bf16.gmra.mxu0 %v1669
        %v1807 = vpop.f32.mrf.mxu0
        %v1808 = vadd.f32 0.0, %v1807
        %v1809 = vpop.f32.mrf.mxu0
        %v1810 = vpop.f32.mrf.mxu0
        %v1811 = vadd.f32 0.0, %v1810
        %v1812 = vpop.f32.mrf.mxu0
        %1813 = vmatprep.mubr.bf16.mxu0 %v1672
        %1814 = vmatmul.mubr.bf16.gmra.mxu0 %v1671
        %v1815 = vpop.f32.mrf.mxu0
        %v1816 = vadd.f32 0.0, %v1815
        %v1817 = vpop.f32.mrf.mxu0
        %v1818 = vpop.f32.mrf.mxu0
        %v1819 = vadd.f32 0.0, %v1818
        %v1820 = vpop.f32.mrf.mxu0
        %1821 = vmatprep.mubr.bf16.mxu0 %v1674
        %1822 = vmatmul.mubr.bf16.gmra.mxu0 %v1673
        %v1823 = vpop.f32.mrf.mxu0
        %v1824 = vadd.f32 0.0, %v1823
        %v1825 = vpop.f32.mrf.mxu0
        %v1826 = vpop.f32.mrf.mxu0
        %v1827 = vadd.f32 0.0, %v1826
        %v1828 = vpop.f32.mrf.mxu0
        %1829 = vmatprep.mubr.bf16.mxu0 %v1676
        %1830 = vmatmul.mubr.bf16.gmra.mxu0 %v1675
        %v1831 = vpop.f32.mrf.mxu0
        %v1832 = vadd.f32 0.0, %v1831
        %v1833 = vpop.f32.mrf.mxu0
        %v1834 = vpop.f32.mrf.mxu0
        %v1835 = vadd.f32 0.0, %v1834
        %v1836 = vpop.f32.mrf.mxu0
        %1837 = vdwg.mxu0
        %v1838 = vrcp.pop %v1615
        %v1839 = vrcp.pop %v1618
        %v1840 = vrcp.pop %v1621
        %v1841 = vrcp.pop %v1624
        %v1842 = vrcp.pop %v1627
        %v1843 = vrcp.pop %v1630
        %v1844 = vrcp.pop %v1633
        %v1845 = vrcp.pop %v1636
        %v1846 = vrcp.pop %v1639
        %v1847 = vrcp.pop %v1642
        %v1848 = vrcp.pop %v1645
        %v1849 = vrcp.pop %v1648
        %v1850 = vrcp.pop %v1651
        %v1851 = vrcp.pop %v1654
        %v1852 = vrcp.pop %v1657
        %v1853 = vrcp.pop %v1660
        %v1854 = vmul.f32 %v1776, %v1838
        %v1855 = vmul.f32 %v1779, %v1839
        %v1856 = vmul.f32 %v1784, %v1840
        %v1857 = vmul.f32 %v1787, %v1841
        %v1858 = vmul.f32 %v1792, %v1842
        %v1859 = vmul.f32 %v1795, %v1843
        %v1860 = vmul.f32 %v1800, %v1844
        %v1861 = vmul.f32 %v1803, %v1845
        %v1862 = vmul.f32 %v1808, %v1846
        %v1863 = vmul.f32 %v1811, %v1847
        %v1864 = vmul.f32 %v1816, %v1848
        %v1865 = vmul.f32 %v1819, %v1849
        %v1866 = vmul.f32 %v1824, %v1850
        %v1867 = vmul.f32 %v1827, %v1851
        %v1868 = vmul.f32 %v1832, %v1852
        %v1869 = vmul.f32 %v1835, %v1853
        %v1870 = vpack.c.bf16 %v1855, %v1854
        %v1871 = vpack.c.bf16 %v1857, %v1856
        %v1872 = vpack.c.bf16 %v1859, %v1858
        %v1873 = vpack.c.bf16 %v1861, %v1860
        %v1874 = vpack.c.bf16 %v1863, %v1862
        %v1875 = vpack.c.bf16 %v1865, %v1864
        %v1876 = vpack.c.bf16 %v1867, %v1866
        %v1877 = vpack.c.bf16 %v1869, %v1868
        %v1886 = vunpack.c.l.b16 %v1870
        %v1887 = vunpack.c.h.b16 %v1870
        %v1888 = vunpack.c.l.b16 %v1871
        %v1889 = vunpack.c.h.b16 %v1871
        %v1890 = vunpack.c.l.b16 %v1872
        %v1891 = vunpack.c.h.b16 %v1872
        %v1892 = vunpack.c.l.b16 %v1873
        %v1893 = vunpack.c.h.b16 %v1873
        %v1894 = vunpack.c.l.b16 %v1874
        %v1895 = vunpack.c.h.b16 %v1874
        %v1896 = vunpack.c.l.b16 %v1875
        %v1897 = vunpack.c.h.b16 %v1875
        %v1898 = vunpack.c.l.b16 %v1876
        %v1899 = vunpack.c.h.b16 %v1876
        %v1900 = vunpack.c.l.b16 %v1877
        %v1901 = vunpack.c.h.b16 %v1877
        %v1902 = vpack.c.b16 %v1886, %v1886
        %v1903 = vpack.c.b16 %v1887, %v1887
        %v1904 = vpack.c.b16 %v1888, %v1888
        %v1905 = vpack.c.b16 %v1889, %v1889
        %v1906 = vpack.c.b16 %v1890, %v1890
        %v1907 = vpack.c.b16 %v1891, %v1891
        %v1908 = vpack.c.b16 %v1892, %v1892
        %v1909 = vpack.c.b16 %v1893, %v1893
        %v1910 = vpack.c.b16 %v1894, %v1894
        %v1911 = vpack.c.b16 %v1895, %v1895
        %v1912 = vpack.c.b16 %v1896, %v1896
        %v1913 = vpack.c.b16 %v1897, %v1897
        %v1914 = vpack.c.b16 %v1898, %v1898
        %v1915 = vpack.c.b16 %v1899, %v1899
        %v1916 = vpack.c.b16 %v1900, %v1900
        %v1917 = vpack.c.b16 %v1901, %v1901
        %1934 = vst [vmem:[#allocation2 + $0x4] sm:$0xf] %v1902
        %1935 = vst [vmem:[#allocation2 + $0x14] sm:$0xf] %v1903
        %1936 = vst [vmem:[#allocation2 + $0x24] sm:$0xf] %v1904
        %1937 = vst [vmem:[#allocation2 + $0x34] sm:$0xf] %v1905
        %1938 = vst [vmem:[#allocation2 + $0x44] sm:$0xf] %v1906
        %1939 = vst [vmem:[#allocation2 + $0x54] sm:$0xf] %v1907
        %1940 = vst [vmem:[#allocation2 + $0x64] sm:$0xf] %v1908
        %1941 = vst [vmem:[#allocation2 + $0x74] sm:$0xf] %v1909
        %1942 = vst [vmem:[#allocation2 + $0x84] sm:$0xf] %v1910
        %1943 = vst [vmem:[#allocation2 + $0x94] sm:$0xf] %v1911
        %1944 = vst [vmem:[#allocation2 + $0xa4] sm:$0xf] %v1912
        %1945 = vst [vmem:[#allocation2 + $0xb4] sm:$0xf] %v1913
        %1946 = vst [vmem:[#allocation2 + $0xc4] sm:$0xf] %v1914
        %1947 = vst [vmem:[#allocation2 + $0xd4] sm:$0xf] %v1915
        %1948 = vst [vmem:[#allocation2 + $0xe4] sm:$0xf] %v1916
        %1949 = vst [vmem:[#allocation2 + $0xf4] sm:$0xf] %v1917
        %v1966 = vunpack.c.l.b16 %v331
        %v1967 = vunpack.c.l.b16 %v333
        %v1968 = vunpack.c.l.b16 %v335
        %v1969 = vunpack.c.l.b16 %v337
        %v1970 = vunpack.c.l.b16 %v339
        %v1971 = vunpack.c.l.b16 %v341
        %v1972 = vunpack.c.l.b16 %v343
        %v1973 = vunpack.c.l.b16 %v345
        %v1974 = vunpack.c.l.b16 %v347
        %v1975 = vunpack.c.l.b16 %v349
        %v1976 = vunpack.c.l.b16 %v351
        %v1977 = vunpack.c.l.b16 %v353
        %v1978 = vunpack.c.l.b16 %v355
        %v1979 = vunpack.c.l.b16 %v357
        %v1980 = vunpack.c.l.b16 %v359
        %v1981 = vunpack.c.l.b16 %v361
        %v1982 = vpack.c.b16 %v1967, %v1966
        %v1983 = vpack.c.b16 %v1969, %v1968
        %v1984 = vpack.c.b16 %v1971, %v1970
        %v1985 = vpack.c.b16 %v1973, %v1972
        %v1986 = vpack.c.b16 %v1975, %v1974
        %v1987 = vpack.c.b16 %v1977, %v1976
        %v1988 = vpack.c.b16 %v1979, %v1978
        %v1989 = vpack.c.b16 %v1981, %v1980
        %v2030 = vunpack.c.l.b16 %v363
        %v2031 = vunpack.c.l.b16 %v365
        %v2032 = vunpack.c.l.b16 %v367
        %v2033 = vunpack.c.l.b16 %v369
        %v2034 = vunpack.c.l.b16 %v371
        %v2035 = vunpack.c.l.b16 %v373
        %v2036 = vunpack.c.l.b16 %v375
        %v2037 = vunpack.c.l.b16 %v377
        %v2038 = vunpack.c.l.b16 %v379
        %v2039 = vunpack.c.l.b16 %v381
        %v2040 = vunpack.c.l.b16 %v383
        %v2041 = vunpack.c.l.b16 %v385
        %v2042 = vunpack.c.l.b16 %v387
        %v2043 = vunpack.c.l.b16 %v389
        %v2044 = vunpack.c.l.b16 %v391
        %v2045 = vunpack.c.l.b16 %v393
        %v2046 = vunpack.c.l.b16 %v395
        %v2047 = vunpack.c.l.b16 %v397
        %v2048 = vunpack.c.l.b16 %v399
        %v2049 = vunpack.c.l.b16 %v401
        %v2050 = vunpack.c.l.b16 %v403
        %v2051 = vunpack.c.l.b16 %v405
        %v2052 = vunpack.c.l.b16 %v407
        %v2053 = vunpack.c.l.b16 %v409
        %v2054 = vunpack.c.l.b16 %v411
        %v2055 = vunpack.c.l.b16 %v413
        %v2056 = vunpack.c.l.b16 %v415
        %v2057 = vunpack.c.l.b16 %v417
        %v2058 = vunpack.c.l.b16 %v419
        %v2059 = vunpack.c.l.b16 %v421
        %v2060 = vunpack.c.l.b16 %v423
        %v2061 = vunpack.c.l.b16 %v425
        %v2062 = vpack.c.b16 %v2031, %v2030
        %v2063 = vpack.c.b16 %v2033, %v2032
        %v2064 = vpack.c.b16 %v2035, %v2034
        %v2065 = vpack.c.b16 %v2037, %v2036
        %v2066 = vpack.c.b16 %v2039, %v2038
        %v2067 = vpack.c.b16 %v2041, %v2040
        %v2068 = vpack.c.b16 %v2043, %v2042
        %v2069 = vpack.c.b16 %v2045, %v2044
        %v2070 = vpack.c.b16 %v2047, %v2046
        %v2071 = vpack.c.b16 %v2049, %v2048
        %v2072 = vpack.c.b16 %v2051, %v2050
        %v2073 = vpack.c.b16 %v2053, %v2052
        %v2074 = vpack.c.b16 %v2055, %v2054
        %v2075 = vpack.c.b16 %v2057, %v2056
        %v2076 = vpack.c.b16 %v2059, %v2058
        %v2077 = vpack.c.b16 %v2061, %v2060
        %2094 = vmatprep.subr.bf16.mxu0 0
        %2095 = vmatpush1.bf16.xpose.msra.mxu0 %v2069
        %2096 = vmatprep.subr.bf16.mxu0 0
        %2097 = vmatpush1.bf16.xpose.msra.mxu0 %v2068
        %2098 = vmatprep.subr.bf16.mxu0 0
        %2099 = vmatpush1.bf16.xpose.msra.mxu0 %v2067
        %2100 = vmatprep.subr.bf16.mxu0 0
        %2101 = vmatpush1.bf16.xpose.msra.mxu0 %v2066
        %2102 = vmatprep.subr.bf16.mxu0 0
        %2103 = vmatpush1.bf16.xpose.msra.mxu0 %v2065
        %2104 = vmatprep.subr.bf16.mxu0 0
        %2105 = vmatpush1.bf16.xpose.msra.mxu0 %v2064
        %2106 = vmatprep.subr.bf16.mxu0 0
        %2107 = vmatpush1.bf16.xpose.msra.mxu0 %v2063
        %2108 = vmatprep.subr.bf16.mxu0 0
        %2109 = vmatpush1.bf16.xpose.msra.mxu0 %v2062
        %2110 = vmatprep.subr.bf16.mxu0 0
        %2111 = vmatpush2.bf16.xpose.msra.mxu0 %v2077
        %2112 = vmatprep.subr.bf16.mxu0 0
        %2113 = vmatpush2.bf16.xpose.msra.mxu0 %v2076
        %2114 = vmatprep.subr.bf16.mxu0 0
        %2115 = vmatpush2.bf16.xpose.msra.mxu0 %v2075
        %2116 = vmatprep.subr.bf16.mxu0 0
        %2117 = vmatpush2.bf16.xpose.msra.mxu0 %v2074
        %2118 = vmatprep.subr.bf16.mxu0 0
        %2119 = vmatpush2.bf16.xpose.msra.mxu0 %v2073
        %2120 = vmatprep.subr.bf16.mxu0 0
        %2121 = vmatpush2.bf16.xpose.msra.mxu0 %v2072
        %2122 = vmatprep.subr.bf16.mxu0 0
        %2123 = vmatpush2.bf16.xpose.msra.mxu0 %v2071
        %2124 = vmatprep.subr.bf16.mxu0 0
        %2125 = vmatpush2.bf16.xpose.msra.mxu0 %v2070
        %2126 = vmatprep.mubr.bf16.mxu0 0
        %2127 = vmatmul.mubr.bf16.gmra.mxu0 %v1982
        %v2128 = vpop.f32.mrf.mxu0
        %v2129 = vadd.f32 0.0, %v2128
        %v2130 = vpop.f32.mrf.mxu0
        %v2131 = vadd.f32 0.0, %v2130
        %v2132 = vpop.f32.mrf.mxu0
        %v2133 = vadd.f32 0.0, %v2132
        %v2134 = vpop.f32.mrf.mxu0
        %v2135 = vadd.f32 0.0, %v2134
        %2136 = vmatprep.mubr.bf16.mxu0 0
        %2137 = vmatmul.mubr.bf16.gmra.mxu0 %v1983
        %v2138 = vpop.f32.mrf.mxu0
        %v2139 = vadd.f32 0.0, %v2138
        %v2140 = vpop.f32.mrf.mxu0
        %v2141 = vadd.f32 0.0, %v2140
        %v2142 = vpop.f32.mrf.mxu0
        %v2143 = vadd.f32 0.0, %v2142
        %v2144 = vpop.f32.mrf.mxu0
        %v2145 = vadd.f32 0.0, %v2144
        %2146 = vmatprep.mubr.bf16.mxu0 0
        %2147 = vmatmul.mubr.bf16.gmra.mxu0 %v1984
        %v2148 = vpop.f32.mrf.mxu0
        %v2149 = vadd.f32 0.0, %v2148
        %v2150 = vpop.f32.mrf.mxu0
        %v2151 = vadd.f32 0.0, %v2150
        %v2152 = vpop.f32.mrf.mxu0
        %v2153 = vadd.f32 0.0, %v2152
        %v2154 = vpop.f32.mrf.mxu0
        %v2155 = vadd.f32 0.0, %v2154
        %2156 = vmatprep.mubr.bf16.mxu0 0
        %2157 = vmatmul.mubr.bf16.gmra.mxu0 %v1985
        %v2158 = vpop.f32.mrf.mxu0
        %v2159 = vadd.f32 0.0, %v2158
        %v2160 = vpop.f32.mrf.mxu0
        %v2161 = vadd.f32 0.0, %v2160
        %v2162 = vpop.f32.mrf.mxu0
        %v2163 = vadd.f32 0.0, %v2162
        %v2164 = vpop.f32.mrf.mxu0
        %v2165 = vadd.f32 0.0, %v2164
        %2166 = vmatprep.mubr.bf16.mxu0 0
        %2167 = vmatmul.mubr.bf16.gmra.mxu0 %v1986
        %v2168 = vpop.f32.mrf.mxu0
        %v2169 = vadd.f32 0.0, %v2168
        %v2170 = vpop.f32.mrf.mxu0
        %v2171 = vadd.f32 0.0, %v2170
        %v2172 = vpop.f32.mrf.mxu0
        %v2173 = vadd.f32 0.0, %v2172
        %v2174 = vpop.f32.mrf.mxu0
        %v2175 = vadd.f32 0.0, %v2174
        %2176 = vmatprep.mubr.bf16.mxu0 0
        %2177 = vmatmul.mubr.bf16.gmra.mxu0 %v1987
        %v2178 = vpop.f32.mrf.mxu0
        %v2179 = vadd.f32 0.0, %v2178
        %v2180 = vpop.f32.mrf.mxu0
        %v2181 = vadd.f32 0.0, %v2180
        %v2182 = vpop.f32.mrf.mxu0
        %v2183 = vadd.f32 0.0, %v2182
        %v2184 = vpop.f32.mrf.mxu0
        %v2185 = vadd.f32 0.0, %v2184
        %2186 = vmatprep.mubr.bf16.mxu0 0
        %2187 = vmatmul.mubr.bf16.gmra.mxu0 %v1988
        %v2188 = vpop.f32.mrf.mxu0
        %v2189 = vadd.f32 0.0, %v2188
        %v2190 = vpop.f32.mrf.mxu0
        %v2191 = vadd.f32 0.0, %v2190
        %v2192 = vpop.f32.mrf.mxu0
        %v2193 = vadd.f32 0.0, %v2192
        %v2194 = vpop.f32.mrf.mxu0
        %v2195 = vadd.f32 0.0, %v2194
        %2196 = vmatprep.mubr.bf16.mxu0 0
        %2197 = vmatmul.mubr.bf16.gmra.mxu0 %v1989
        %v2198 = vpop.f32.mrf.mxu0
        %v2199 = vadd.f32 0.0, %v2198
        %v2200 = vpop.f32.mrf.mxu0
        %v2201 = vadd.f32 0.0, %v2200
        %v2202 = vpop.f32.mrf.mxu0
        %v2203 = vadd.f32 0.0, %v2202
        %v2204 = vpop.f32.mrf.mxu0
        %v2205 = vadd.f32 0.0, %v2204
        %2206 = vdwg.mxu0
        %v2207 = vmax.f32 %v2129, %v2131
        %2208 = vmax.xlane.f32.xlu0 %v2207
        %v2209 = vpop.xlane.xlu0 %2208
        %v2210 = vmax.f32 %v2133, %v2135
        %2211 = vmax.xlane.f32.xlu0 %v2210
        %v2212 = vpop.xlane.xlu0 %2211
        %v2213 = vmax.f32 %v2139, %v2141
        %2214 = vmax.xlane.f32.xlu0 %v2213
        %v2215 = vpop.xlane.xlu0 %2214
        %v2216 = vmax.f32 %v2143, %v2145
        %2217 = vmax.xlane.f32.xlu0 %v2216
        %v2218 = vpop.xlane.xlu0 %2217
        %v2219 = vmax.f32 %v2149, %v2151
        %2220 = vmax.xlane.f32.xlu0 %v2219
        %v2221 = vpop.xlane.xlu0 %2220
        %v2222 = vmax.f32 %v2153, %v2155
        %2223 = vmax.xlane.f32.xlu0 %v2222
        %v2224 = vpop.xlane.xlu0 %2223
        %v2225 = vmax.f32 %v2159, %v2161
        %2226 = vmax.xlane.f32.xlu0 %v2225
        %v2227 = vpop.xlane.xlu0 %2226
        %v2228 = vmax.f32 %v2163, %v2165
        %2229 = vmax.xlane.f32.xlu0 %v2228
        %v2230 = vpop.xlane.xlu0 %2229
        %v2231 = vmax.f32 %v2169, %v2171
        %2232 = vmax.xlane.f32.xlu0 %v2231
        %v2233 = vpop.xlane.xlu0 %2232
        %v2234 = vmax.f32 %v2173, %v2175
        %2235 = vmax.xlane.f32.xlu0 %v2234
        %v2236 = vpop.xlane.xlu0 %2235
        %v2237 = vmax.f32 %v2179, %v2181
        %2238 = vmax.xlane.f32.xlu0 %v2237
        %v2239 = vpop.xlane.xlu0 %2238
        %v2240 = vmax.f32 %v2183, %v2185
        %2241 = vmax.xlane.f32.xlu0 %v2240
        %v2242 = vpop.xlane.xlu0 %2241
        %v2243 = vmax.f32 %v2189, %v2191
        %2244 = vmax.xlane.f32.xlu0 %v2243
        %v2245 = vpop.xlane.xlu0 %2244
        %v2246 = vmax.f32 %v2193, %v2195
        %2247 = vmax.xlane.f32.xlu0 %v2246
        %v2248 = vpop.xlane.xlu0 %2247
        %v2249 = vmax.f32 %v2199, %v2201
        %2250 = vmax.xlane.f32.xlu0 %v2249
        %v2251 = vpop.xlane.xlu0 %2250
        %v2252 = vmax.f32 %v2203, %v2205
        %2253 = vmax.xlane.f32.xlu0 %v2252
        %v2254 = vpop.xlane.xlu0 %2253
        %v2255 = vsub.f32 %v2129, %v2209
        %v2256 = vsub.f32 %v2131, %v2209
        %v2257 = vsub.f32 %v2133, %v2212
        %v2258 = vsub.f32 %v2135, %v2212
        %v2259 = vsub.f32 %v2139, %v2215
        %v2260 = vsub.f32 %v2141, %v2215
        %v2261 = vsub.f32 %v2143, %v2218
        %v2262 = vsub.f32 %v2145, %v2218
        %v2263 = vsub.f32 %v2149, %v2221
        %v2264 = vsub.f32 %v2151, %v2221
        %v2265 = vsub.f32 %v2153, %v2224
        %v2266 = vsub.f32 %v2155, %v2224
        %v2267 = vsub.f32 %v2159, %v2227
        %v2268 = vsub.f32 %v2161, %v2227
        %v2269 = vsub.f32 %v2163, %v2230
        %v2270 = vsub.f32 %v2165, %v2230
        %v2271 = vsub.f32 %v2169, %v2233
        %v2272 = vsub.f32 %v2171, %v2233
        %v2273 = vsub.f32 %v2173, %v2236
        %v2274 = vsub.f32 %v2175, %v2236
        %v2275 = vsub.f32 %v2179, %v2239
        %v2276 = vsub.f32 %v2181, %v2239
        %v2277 = vsub.f32 %v2183, %v2242
        %v2278 = vsub.f32 %v2185, %v2242
        %v2279 = vsub.f32 %v2189, %v2245
        %v2280 = vsub.f32 %v2191, %v2245
        %v2281 = vsub.f32 %v2193, %v2248
        %v2282 = vsub.f32 %v2195, %v2248
        %v2283 = vsub.f32 %v2199, %v2251
        %v2284 = vsub.f32 %v2201, %v2251
        %v2285 = vsub.f32 %v2203, %v2254
        %v2286 = vsub.f32 %v2205, %v2254
        %v2287 = vmul.f32 %v2255, 1.442695
        %v2288 = vpow.pop %v2287
        %v2289 = vmul.f32 %v2256, 1.442695
        %v2290 = vpow.pop %v2289
        %v2291 = vmul.f32 %v2257, 1.442695
        %v2292 = vpow.pop %v2291
        %v2293 = vmul.f32 %v2258, 1.442695
        %v2294 = vpow.pop %v2293
        %v2295 = vmul.f32 %v2259, 1.442695
        %v2296 = vpow.pop %v2295
        %v2297 = vmul.f32 %v2260, 1.442695
        %v2298 = vpow.pop %v2297
        %v2299 = vmul.f32 %v2261, 1.442695
        %v2300 = vpow.pop %v2299
        %v2301 = vmul.f32 %v2262, 1.442695
        %v2302 = vpow.pop %v2301
        %v2303 = vmul.f32 %v2263, 1.442695
        %v2304 = vpow.pop %v2303
        %v2305 = vmul.f32 %v2264, 1.442695
        %v2306 = vpow.pop %v2305
        %v2307 = vmul.f32 %v2265, 1.442695
        %v2308 = vpow.pop %v2307
        %v2309 = vmul.f32 %v2266, 1.442695
        %v2310 = vpow.pop %v2309
        %v2311 = vmul.f32 %v2267, 1.442695
        %v2312 = vpow.pop %v2311
        %v2313 = vmul.f32 %v2268, 1.442695
        %v2314 = vpow.pop %v2313
        %v2315 = vmul.f32 %v2269, 1.442695
        %v2316 = vpow.pop %v2315
        %v2317 = vmul.f32 %v2270, 1.442695
        %v2318 = vpow.pop %v2317
        %v2319 = vmul.f32 %v2271, 1.442695
        %v2320 = vpow.pop %v2319
        %v2321 = vmul.f32 %v2272, 1.442695
        %v2322 = vpow.pop %v2321
        %v2323 = vmul.f32 %v2273, 1.442695
        %v2324 = vpow.pop %v2323
        %v2325 = vmul.f32 %v2274, 1.442695
        %v2326 = vpow.pop %v2325
        %v2327 = vmul.f32 %v2275, 1.442695
        %v2328 = vpow.pop %v2327
        %v2329 = vmul.f32 %v2276, 1.442695
        %v2330 = vpow.pop %v2329
        %v2331 = vmul.f32 %v2277, 1.442695
        %v2332 = vpow.pop %v2331
        %v2333 = vmul.f32 %v2278, 1.442695
        %v2334 = vpow.pop %v2333
        %v2335 = vmul.f32 %v2279, 1.442695
        %v2336 = vpow.pop %v2335
        %v2337 = vmul.f32 %v2280, 1.442695
        %v2338 = vpow.pop %v2337
        %v2339 = vmul.f32 %v2281, 1.442695
        %v2340 = vpow.pop %v2339
        %v2341 = vmul.f32 %v2282, 1.442695
        %v2342 = vpow.pop %v2341
        %v2343 = vmul.f32 %v2283, 1.442695
        %v2344 = vpow.pop %v2343
        %v2345 = vmul.f32 %v2284, 1.442695
        %v2346 = vpow.pop %v2345
        %v2347 = vmul.f32 %v2285, 1.442695
        %v2348 = vpow.pop %v2347
        %v2349 = vmul.f32 %v2286, 1.442695
        %v2350 = vpow.pop %v2349
        %v2351 = vadd.f32 %v2288, %v2290
        %2352 = vadd.xlane.f32.xlu0 %v2351
        %v2353 = vpop.xlane.xlu0 %2352
        %v2354 = vadd.f32 %v2292, %v2294
        %2355 = vadd.xlane.f32.xlu0 %v2354
        %v2356 = vpop.xlane.xlu0 %2355
        %v2357 = vadd.f32 %v2296, %v2298
        %2358 = vadd.xlane.f32.xlu0 %v2357
        %v2359 = vpop.xlane.xlu0 %2358
        %v2360 = vadd.f32 %v2300, %v2302
        %2361 = vadd.xlane.f32.xlu0 %v2360
        %v2362 = vpop.xlane.xlu0 %2361
        %v2363 = vadd.f32 %v2304, %v2306
        %2364 = vadd.xlane.f32.xlu0 %v2363
        %v2365 = vpop.xlane.xlu0 %2364
        %v2366 = vadd.f32 %v2308, %v2310
        %2367 = vadd.xlane.f32.xlu0 %v2366
        %v2368 = vpop.xlane.xlu0 %2367
        %v2369 = vadd.f32 %v2312, %v2314
        %2370 = vadd.xlane.f32.xlu0 %v2369
        %v2371 = vpop.xlane.xlu0 %2370
        %v2372 = vadd.f32 %v2316, %v2318
        %2373 = vadd.xlane.f32.xlu0 %v2372
        %v2374 = vpop.xlane.xlu0 %2373
        %v2375 = vadd.f32 %v2320, %v2322
        %2376 = vadd.xlane.f32.xlu0 %v2375
        %v2377 = vpop.xlane.xlu0 %2376
        %v2378 = vadd.f32 %v2324, %v2326
        %2379 = vadd.xlane.f32.xlu0 %v2378
        %v2380 = vpop.xlane.xlu0 %2379
        %v2381 = vadd.f32 %v2328, %v2330
        %2382 = vadd.xlane.f32.xlu0 %v2381
        %v2383 = vpop.xlane.xlu0 %2382
        %v2384 = vadd.f32 %v2332, %v2334
        %2385 = vadd.xlane.f32.xlu0 %v2384
        %v2386 = vpop.xlane.xlu0 %2385
        %v2387 = vadd.f32 %v2336, %v2338
        %2388 = vadd.xlane.f32.xlu0 %v2387
        %v2389 = vpop.xlane.xlu0 %2388
        %v2390 = vadd.f32 %v2340, %v2342
        %2391 = vadd.xlane.f32.xlu0 %v2390
        %v2392 = vpop.xlane.xlu0 %2391
        %v2393 = vadd.f32 %v2344, %v2346
        %2394 = vadd.xlane.f32.xlu0 %v2393
        %v2395 = vpop.xlane.xlu0 %2394
        %v2396 = vadd.f32 %v2348, %v2350
        %2397 = vadd.xlane.f32.xlu0 %v2396
        %v2398 = vpop.xlane.xlu0 %2397
        %v2399 = vpack.c.bf16 %v2292, %v2288
        %v2400 = vpack.c.bf16 %v2294, %v2290
        %v2401 = vpack.c.bf16 %v2300, %v2296
        %v2402 = vpack.c.bf16 %v2302, %v2298
        %v2403 = vpack.c.bf16 %v2308, %v2304
        %v2404 = vpack.c.bf16 %v2310, %v2306
        %v2405 = vpack.c.bf16 %v2316, %v2312
        %v2406 = vpack.c.bf16 %v2318, %v2314
        %v2407 = vpack.c.bf16 %v2324, %v2320
        %v2408 = vpack.c.bf16 %v2326, %v2322
        %v2409 = vpack.c.bf16 %v2332, %v2328
        %v2410 = vpack.c.bf16 %v2334, %v2330
        %v2411 = vpack.c.bf16 %v2340, %v2336
        %v2412 = vpack.c.bf16 %v2342, %v2338
        %v2413 = vpack.c.bf16 %v2348, %v2344
        %v2414 = vpack.c.bf16 %v2350, %v2346
        %v2447 = vunpack.c.l.b16 %v427
        %v2448 = vunpack.c.l.b16 %v429
        %v2449 = vunpack.c.l.b16 %v431
        %v2450 = vunpack.c.l.b16 %v433
        %v2451 = vunpack.c.l.b16 %v435
        %v2452 = vunpack.c.l.b16 %v437
        %v2453 = vunpack.c.l.b16 %v439
        %v2454 = vunpack.c.l.b16 %v441
        %v2455 = vunpack.c.l.b16 %v443
        %v2456 = vunpack.c.l.b16 %v445
        %v2457 = vunpack.c.l.b16 %v447
        %v2458 = vunpack.c.l.b16 %v449
        %v2459 = vunpack.c.l.b16 %v451
        %v2460 = vunpack.c.l.b16 %v453
        %v2461 = vunpack.c.l.b16 %v455
        %v2462 = vunpack.c.l.b16 %v457
        %v2463 = vunpack.c.l.b16 %v459
        %v2464 = vunpack.c.l.b16 %v461
        %v2465 = vunpack.c.l.b16 %v463
        %v2466 = vunpack.c.l.b16 %v465
        %v2467 = vunpack.c.l.b16 %v467
        %v2468 = vunpack.c.l.b16 %v469
        %v2469 = vunpack.c.l.b16 %v471
        %v2470 = vunpack.c.l.b16 %v473
        %v2471 = vunpack.c.l.b16 %v475
        %v2472 = vunpack.c.l.b16 %v477
        %v2473 = vunpack.c.l.b16 %v479
        %v2474 = vunpack.c.l.b16 %v481
        %v2475 = vunpack.c.l.b16 %v483
        %v2476 = vunpack.c.l.b16 %v485
        %v2477 = vunpack.c.l.b16 %v487
        %v2478 = vunpack.c.l.b16 %v489
        %v2479 = vpack.c.b16 %v2448, %v2447
        %v2480 = vpack.c.b16 %v2450, %v2449
        %v2481 = vpack.c.b16 %v2452, %v2451
        %v2482 = vpack.c.b16 %v2454, %v2453
        %v2483 = vpack.c.b16 %v2456, %v2455
        %v2484 = vpack.c.b16 %v2458, %v2457
        %v2485 = vpack.c.b16 %v2460, %v2459
        %v2486 = vpack.c.b16 %v2462, %v2461
        %v2487 = vpack.c.b16 %v2464, %v2463
        %v2488 = vpack.c.b16 %v2466, %v2465
        %v2489 = vpack.c.b16 %v2468, %v2467
        %v2490 = vpack.c.b16 %v2470, %v2469
        %v2491 = vpack.c.b16 %v2472, %v2471
        %v2492 = vpack.c.b16 %v2474, %v2473
        %v2493 = vpack.c.b16 %v2476, %v2475
        %v2494 = vpack.c.b16 %v2478, %v2477
        %2511 = vmatprep.subr.bf16.mxu0 0
        %2512 = vmatpush1.bf16.msra.mxu0 %v2486
        %2513 = vmatprep.subr.bf16.mxu0 0
        %2514 = vmatpush1.bf16.msra.mxu0 %v2485
        %2515 = vmatprep.subr.bf16.mxu0 0
        %2516 = vmatpush1.bf16.msra.mxu0 %v2484
        %2517 = vmatprep.subr.bf16.mxu0 0
        %2518 = vmatpush1.bf16.msra.mxu0 %v2483
        %2519 = vmatprep.subr.bf16.mxu0 0
        %2520 = vmatpush1.bf16.msra.mxu0 %v2482
        %2521 = vmatprep.subr.bf16.mxu0 0
        %2522 = vmatpush1.bf16.msra.mxu0 %v2481
        %2523 = vmatprep.subr.bf16.mxu0 0
        %2524 = vmatpush1.bf16.msra.mxu0 %v2480
        %2525 = vmatprep.subr.bf16.mxu0 0
        %2526 = vmatpush1.bf16.msra.mxu0 %v2479
        %2527 = vmatprep.subr.bf16.mxu0 0
        %2528 = vmatpush2.bf16.msra.mxu0 %v2494
        %2529 = vmatprep.subr.bf16.mxu0 0
        %2530 = vmatpush2.bf16.msra.mxu0 %v2493
        %2531 = vmatprep.subr.bf16.mxu0 0
        %2532 = vmatpush2.bf16.msra.mxu0 %v2492
        %2533 = vmatprep.subr.bf16.mxu0 0
        %2534 = vmatpush2.bf16.msra.mxu0 %v2491
        %2535 = vmatprep.subr.bf16.mxu0 0
        %2536 = vmatpush2.bf16.msra.mxu0 %v2490
        %2537 = vmatprep.subr.bf16.mxu0 0
        %2538 = vmatpush2.bf16.msra.mxu0 %v2489
        %2539 = vmatprep.subr.bf16.mxu0 0
        %2540 = vmatpush2.bf16.msra.mxu0 %v2488
        %2541 = vmatprep.subr.bf16.mxu0 0
        %2542 = vmatpush2.bf16.msra.mxu0 %v2487
        %2543 = vmatprep.mubr.bf16.mxu0 %v2400
        %2544 = vmatmul.mubr.bf16.gmra.mxu0 %v2399
        %v2545 = vpop.f32.mrf.mxu0
        %v2546 = vadd.f32 0.0, %v2545
        %v2547 = vpop.f32.mrf.mxu0
        %v2548 = vpop.f32.mrf.mxu0
        %v2549 = vadd.f32 0.0, %v2548
        %v2550 = vpop.f32.mrf.mxu0
        %2551 = vmatprep.mubr.bf16.mxu0 %v2402
        %2552 = vmatmul.mubr.bf16.gmra.mxu0 %v2401
        %v2553 = vpop.f32.mrf.mxu0
        %v2554 = vadd.f32 0.0, %v2553
        %v2555 = vpop.f32.mrf.mxu0
        %v2556 = vpop.f32.mrf.mxu0
        %v2557 = vadd.f32 0.0, %v2556
        %v2558 = vpop.f32.mrf.mxu0
        %2559 = vmatprep.mubr.bf16.mxu0 %v2404
        %2560 = vmatmul.mubr.bf16.gmra.mxu0 %v2403
        %v2561 = vpop.f32.mrf.mxu0
        %v2562 = vadd.f32 0.0, %v2561
        %v2563 = vpop.f32.mrf.mxu0
        %v2564 = vpop.f32.mrf.mxu0
        %v2565 = vadd.f32 0.0, %v2564
        %v2566 = vpop.f32.mrf.mxu0
        %2567 = vmatprep.mubr.bf16.mxu0 %v2406
        %2568 = vmatmul.mubr.bf16.gmra.mxu0 %v2405
        %v2569 = vpop.f32.mrf.mxu0
        %v2570 = vadd.f32 0.0, %v2569
        %v2571 = vpop.f32.mrf.mxu0
        %v2572 = vpop.f32.mrf.mxu0
        %v2573 = vadd.f32 0.0, %v2572
        %v2574 = vpop.f32.mrf.mxu0
        %2575 = vmatprep.mubr.bf16.mxu0 %v2408
        %2576 = vmatmul.mubr.bf16.gmra.mxu0 %v2407
        %v2577 = vpop.f32.mrf.mxu0
        %v2578 = vadd.f32 0.0, %v2577
        %v2579 = vpop.f32.mrf.mxu0
        %v2580 = vpop.f32.mrf.mxu0
        %v2581 = vadd.f32 0.0, %v2580
        %v2582 = vpop.f32.mrf.mxu0
        %2583 = vmatprep.mubr.bf16.mxu0 %v2410
        %2584 = vmatmul.mubr.bf16.gmra.mxu0 %v2409
        %v2585 = vpop.f32.mrf.mxu0
        %v2586 = vadd.f32 0.0, %v2585
        %v2587 = vpop.f32.mrf.mxu0
        %v2588 = vpop.f32.mrf.mxu0
        %v2589 = vadd.f32 0.0, %v2588
        %v2590 = vpop.f32.mrf.mxu0
        %2591 = vmatprep.mubr.bf16.mxu0 %v2412
        %2592 = vmatmul.mubr.bf16.gmra.mxu0 %v2411
        %v2593 = vpop.f32.mrf.mxu0
        %v2594 = vadd.f32 0.0, %v2593
        %v2595 = vpop.f32.mrf.mxu0
        %v2596 = vpop.f32.mrf.mxu0
        %v2597 = vadd.f32 0.0, %v2596
        %v2598 = vpop.f32.mrf.mxu0
        %2599 = vmatprep.mubr.bf16.mxu0 %v2414
        %2600 = vmatmul.mubr.bf16.gmra.mxu0 %v2413
        %v2601 = vpop.f32.mrf.mxu0
        %v2602 = vadd.f32 0.0, %v2601
        %v2603 = vpop.f32.mrf.mxu0
        %v2604 = vpop.f32.mrf.mxu0
        %v2605 = vadd.f32 0.0, %v2604
        %v2606 = vpop.f32.mrf.mxu0
        %2607 = vdwg.mxu0
        %v2608 = vrcp.pop %v2353
        %v2609 = vrcp.pop %v2356
        %v2610 = vrcp.pop %v2359
        %v2611 = vrcp.pop %v2362
        %v2612 = vrcp.pop %v2365
        %v2613 = vrcp.pop %v2368
        %v2614 = vrcp.pop %v2371
        %v2615 = vrcp.pop %v2374
        %v2616 = vrcp.pop %v2377
        %v2617 = vrcp.pop %v2380
        %v2618 = vrcp.pop %v2383
        %v2619 = vrcp.pop %v2386
        %v2620 = vrcp.pop %v2389
        %v2621 = vrcp.pop %v2392
        %v2622 = vrcp.pop %v2395
        %v2623 = vrcp.pop %v2398
        %v2624 = vmul.f32 %v2546, %v2608
        %v2625 = vmul.f32 %v2549, %v2609
        %v2626 = vmul.f32 %v2554, %v2610
        %v2627 = vmul.f32 %v2557, %v2611
        %v2628 = vmul.f32 %v2562, %v2612
        %v2629 = vmul.f32 %v2565, %v2613
        %v2630 = vmul.f32 %v2570, %v2614
        %v2631 = vmul.f32 %v2573, %v2615
        %v2632 = vmul.f32 %v2578, %v2616
        %v2633 = vmul.f32 %v2581, %v2617
        %v2634 = vmul.f32 %v2586, %v2618
        %v2635 = vmul.f32 %v2589, %v2619
        %v2636 = vmul.f32 %v2594, %v2620
        %v2637 = vmul.f32 %v2597, %v2621
        %v2638 = vmul.f32 %v2602, %v2622
        %v2639 = vmul.f32 %v2605, %v2623
        %v2640 = vpack.c.bf16 %v2625, %v2624
        %v2641 = vpack.c.bf16 %v2627, %v2626
        %v2642 = vpack.c.bf16 %v2629, %v2628
        %v2643 = vpack.c.bf16 %v2631, %v2630
        %v2644 = vpack.c.bf16 %v2633, %v2632
        %v2645 = vpack.c.bf16 %v2635, %v2634
        %v2646 = vpack.c.bf16 %v2637, %v2636
        %v2647 = vpack.c.bf16 %v2639, %v2638
        %v2656 = vunpack.c.l.b16 %v2640
        %v2657 = vunpack.c.h.b16 %v2640
        %v2658 = vunpack.c.l.b16 %v2641
        %v2659 = vunpack.c.h.b16 %v2641
        %v2660 = vunpack.c.l.b16 %v2642
        %v2661 = vunpack.c.h.b16 %v2642
        %v2662 = vunpack.c.l.b16 %v2643
        %v2663 = vunpack.c.h.b16 %v2643
        %v2664 = vunpack.c.l.b16 %v2644
        %v2665 = vunpack.c.h.b16 %v2644
        %v2666 = vunpack.c.l.b16 %v2645
        %v2667 = vunpack.c.h.b16 %v2645
        %v2668 = vunpack.c.l.b16 %v2646
        %v2669 = vunpack.c.h.b16 %v2646
        %v2670 = vunpack.c.l.b16 %v2647
        %v2671 = vunpack.c.h.b16 %v2647
        %v2672 = vpack.c.b16 %v2656, %v2656
        %v2673 = vpack.c.b16 %v2657, %v2657
        %v2674 = vpack.c.b16 %v2658, %v2658
        %v2675 = vpack.c.b16 %v2659, %v2659
        %v2676 = vpack.c.b16 %v2660, %v2660
        %v2677 = vpack.c.b16 %v2661, %v2661
        %v2678 = vpack.c.b16 %v2662, %v2662
        %v2679 = vpack.c.b16 %v2663, %v2663
        %v2680 = vpack.c.b16 %v2664, %v2664
        %v2681 = vpack.c.b16 %v2665, %v2665
        %v2682 = vpack.c.b16 %v2666, %v2666
        %v2683 = vpack.c.b16 %v2667, %v2667
        %v2684 = vpack.c.b16 %v2668, %v2668
        %v2685 = vpack.c.b16 %v2669, %v2669
        %v2686 = vpack.c.b16 %v2670, %v2670
        %v2687 = vpack.c.b16 %v2671, %v2671
        %2704 = vst [vmem:[#allocation2 + $0x8] sm:$0xf] %v2672
        %2705 = vst [vmem:[#allocation2 + $0x18] sm:$0xf] %v2673
        %2706 = vst [vmem:[#allocation2 + $0x28] sm:$0xf] %v2674
        %2707 = vst [vmem:[#allocation2 + $0x38] sm:$0xf] %v2675
        %2708 = vst [vmem:[#allocation2 + $0x48] sm:$0xf] %v2676
        %2709 = vst [vmem:[#allocation2 + $0x58] sm:$0xf] %v2677
        %2710 = vst [vmem:[#allocation2 + $0x68] sm:$0xf] %v2678
        %2711 = vst [vmem:[#allocation2 + $0x78] sm:$0xf] %v2679
        %2712 = vst [vmem:[#allocation2 + $0x88] sm:$0xf] %v2680
        %2713 = vst [vmem:[#allocation2 + $0x98] sm:$0xf] %v2681
        %2714 = vst [vmem:[#allocation2 + $0xa8] sm:$0xf] %v2682
        %2715 = vst [vmem:[#allocation2 + $0xb8] sm:$0xf] %v2683
        %2716 = vst [vmem:[#allocation2 + $0xc8] sm:$0xf] %v2684
        %2717 = vst [vmem:[#allocation2 + $0xd8] sm:$0xf] %v2685
        %2718 = vst [vmem:[#allocation2 + $0xe8] sm:$0xf] %v2686
        %2719 = vst [vmem:[#allocation2 + $0xf8] sm:$0xf] %v2687
        %v2720 = vunpack.c.h.b16 %v331
        %v2721 = vunpack.c.h.b16 %v333
        %v2722 = vunpack.c.h.b16 %v335
        %v2723 = vunpack.c.h.b16 %v337
        %v2724 = vunpack.c.h.b16 %v339
        %v2725 = vunpack.c.h.b16 %v341
        %v2726 = vunpack.c.h.b16 %v343
        %v2727 = vunpack.c.h.b16 %v345
        %v2728 = vunpack.c.h.b16 %v347
        %v2729 = vunpack.c.h.b16 %v349
        %v2730 = vunpack.c.h.b16 %v351
        %v2731 = vunpack.c.h.b16 %v353
        %v2732 = vunpack.c.h.b16 %v355
        %v2733 = vunpack.c.h.b16 %v357
        %v2734 = vunpack.c.h.b16 %v359
        %v2735 = vunpack.c.h.b16 %v361
        %v2736 = vpack.c.b16 %v2721, %v2720
        %v2737 = vpack.c.b16 %v2723, %v2722
        %v2738 = vpack.c.b16 %v2725, %v2724
        %v2739 = vpack.c.b16 %v2727, %v2726
        %v2740 = vpack.c.b16 %v2729, %v2728
        %v2741 = vpack.c.b16 %v2731, %v2730
        %v2742 = vpack.c.b16 %v2733, %v2732
        %v2743 = vpack.c.b16 %v2735, %v2734
        %v2752 = vunpack.c.h.b16 %v363
        %v2753 = vunpack.c.h.b16 %v365
        %v2754 = vunpack.c.h.b16 %v367
        %v2755 = vunpack.c.h.b16 %v369
        %v2756 = vunpack.c.h.b16 %v371
        %v2757 = vunpack.c.h.b16 %v373
        %v2758 = vunpack.c.h.b16 %v375
        %v2759 = vunpack.c.h.b16 %v377
        %v2760 = vunpack.c.h.b16 %v379
        %v2761 = vunpack.c.h.b16 %v381
        %v2762 = vunpack.c.h.b16 %v383
        %v2763 = vunpack.c.h.b16 %v385
        %v2764 = vunpack.c.h.b16 %v387
        %v2765 = vunpack.c.h.b16 %v389
        %v2766 = vunpack.c.h.b16 %v391
        %v2767 = vunpack.c.h.b16 %v393
        %v2768 = vunpack.c.h.b16 %v395
        %v2769 = vunpack.c.h.b16 %v397
        %v2770 = vunpack.c.h.b16 %v399
        %v2771 = vunpack.c.h.b16 %v401
        %v2772 = vunpack.c.h.b16 %v403
        %v2773 = vunpack.c.h.b16 %v405
        %v2774 = vunpack.c.h.b16 %v407
        %v2775 = vunpack.c.h.b16 %v409
        %v2776 = vunpack.c.h.b16 %v411
        %v2777 = vunpack.c.h.b16 %v413
        %v2778 = vunpack.c.h.b16 %v415
        %v2779 = vunpack.c.h.b16 %v417
        %v2780 = vunpack.c.h.b16 %v419
        %v2781 = vunpack.c.h.b16 %v421
        %v2782 = vunpack.c.h.b16 %v423
        %v2783 = vunpack.c.h.b16 %v425
        %v2784 = vpack.c.b16 %v2753, %v2752
        %v2785 = vpack.c.b16 %v2755, %v2754
        %v2786 = vpack.c.b16 %v2757, %v2756
        %v2787 = vpack.c.b16 %v2759, %v2758
        %v2788 = vpack.c.b16 %v2761, %v2760
        %v2789 = vpack.c.b16 %v2763, %v2762
        %v2790 = vpack.c.b16 %v2765, %v2764
        %v2791 = vpack.c.b16 %v2767, %v2766
        %v2792 = vpack.c.b16 %v2769, %v2768
        %v2793 = vpack.c.b16 %v2771, %v2770
        %v2794 = vpack.c.b16 %v2773, %v2772
        %v2795 = vpack.c.b16 %v2775, %v2774
        %v2796 = vpack.c.b16 %v2777, %v2776
        %v2797 = vpack.c.b16 %v2779, %v2778
        %v2798 = vpack.c.b16 %v2781, %v2780
        %v2799 = vpack.c.b16 %v2783, %v2782
        %2816 = vmatprep.subr.bf16.mxu0 0
        %2817 = vmatpush1.bf16.xpose.msra.mxu0 %v2791
        %2818 = vmatprep.subr.bf16.mxu0 0
        %2819 = vmatpush1.bf16.xpose.msra.mxu0 %v2790
        %2820 = vmatprep.subr.bf16.mxu0 0
        %2821 = vmatpush1.bf16.xpose.msra.mxu0 %v2789
        %2822 = vmatprep.subr.bf16.mxu0 0
        %2823 = vmatpush1.bf16.xpose.msra.mxu0 %v2788
        %2824 = vmatprep.subr.bf16.mxu0 0
        %2825 = vmatpush1.bf16.xpose.msra.mxu0 %v2787
        %2826 = vmatprep.subr.bf16.mxu0 0
        %2827 = vmatpush1.bf16.xpose.msra.mxu0 %v2786
        %2828 = vmatprep.subr.bf16.mxu0 0
        %2829 = vmatpush1.bf16.xpose.msra.mxu0 %v2785
        %2830 = vmatprep.subr.bf16.mxu0 0
        %2831 = vmatpush1.bf16.xpose.msra.mxu0 %v2784
        %2832 = vmatprep.subr.bf16.mxu0 0
        %2833 = vmatpush2.bf16.xpose.msra.mxu0 %v2799
        %2834 = vmatprep.subr.bf16.mxu0 0
        %2835 = vmatpush2.bf16.xpose.msra.mxu0 %v2798
        %2836 = vmatprep.subr.bf16.mxu0 0
        %2837 = vmatpush2.bf16.xpose.msra.mxu0 %v2797
        %2838 = vmatprep.subr.bf16.mxu0 0
        %2839 = vmatpush2.bf16.xpose.msra.mxu0 %v2796
        %2840 = vmatprep.subr.bf16.mxu0 0
        %2841 = vmatpush2.bf16.xpose.msra.mxu0 %v2795
        %2842 = vmatprep.subr.bf16.mxu0 0
        %2843 = vmatpush2.bf16.xpose.msra.mxu0 %v2794
        %2844 = vmatprep.subr.bf16.mxu0 0
        %2845 = vmatpush2.bf16.xpose.msra.mxu0 %v2793
        %2846 = vmatprep.subr.bf16.mxu0 0
        %2847 = vmatpush2.bf16.xpose.msra.mxu0 %v2792
        %2848 = vmatprep.mubr.bf16.mxu0 0
        %2849 = vmatmul.mubr.bf16.gmra.mxu0 %v2736
        %v2850 = vpop.f32.mrf.mxu0
        %v2851 = vadd.f32 0.0, %v2850
        %v2852 = vpop.f32.mrf.mxu0
        %v2853 = vadd.f32 0.0, %v2852
        %v2854 = vpop.f32.mrf.mxu0
        %v2855 = vadd.f32 0.0, %v2854
        %v2856 = vpop.f32.mrf.mxu0
        %v2857 = vadd.f32 0.0, %v2856
        %2858 = vmatprep.mubr.bf16.mxu0 0
        %2859 = vmatmul.mubr.bf16.gmra.mxu0 %v2737
        %v2860 = vpop.f32.mrf.mxu0
        %v2861 = vadd.f32 0.0, %v2860
        %v2862 = vpop.f32.mrf.mxu0
        %v2863 = vadd.f32 0.0, %v2862
        %v2864 = vpop.f32.mrf.mxu0
        %v2865 = vadd.f32 0.0, %v2864
        %v2866 = vpop.f32.mrf.mxu0
        %v2867 = vadd.f32 0.0, %v2866
        %2868 = vmatprep.mubr.bf16.mxu0 0
        %2869 = vmatmul.mubr.bf16.gmra.mxu0 %v2738
        %v2870 = vpop.f32.mrf.mxu0
        %v2871 = vadd.f32 0.0, %v2870
        %v2872 = vpop.f32.mrf.mxu0
        %v2873 = vadd.f32 0.0, %v2872
        %v2874 = vpop.f32.mrf.mxu0
        %v2875 = vadd.f32 0.0, %v2874
        %v2876 = vpop.f32.mrf.mxu0
        %v2877 = vadd.f32 0.0, %v2876
        %2878 = vmatprep.mubr.bf16.mxu0 0
        %2879 = vmatmul.mubr.bf16.gmra.mxu0 %v2739
        %v2880 = vpop.f32.mrf.mxu0
        %v2881 = vadd.f32 0.0, %v2880
        %v2882 = vpop.f32.mrf.mxu0
        %v2883 = vadd.f32 0.0, %v2882
        %v2884 = vpop.f32.mrf.mxu0
        %v2885 = vadd.f32 0.0, %v2884
        %v2886 = vpop.f32.mrf.mxu0
        %v2887 = vadd.f32 0.0, %v2886
        %2888 = vmatprep.mubr.bf16.mxu0 0
        %2889 = vmatmul.mubr.bf16.gmra.mxu0 %v2740
        %v2890 = vpop.f32.mrf.mxu0
        %v2891 = vadd.f32 0.0, %v2890
        %v2892 = vpop.f32.mrf.mxu0
        %v2893 = vadd.f32 0.0, %v2892
        %v2894 = vpop.f32.mrf.mxu0
        %v2895 = vadd.f32 0.0, %v2894
        %v2896 = vpop.f32.mrf.mxu0
        %v2897 = vadd.f32 0.0, %v2896
        %2898 = vmatprep.mubr.bf16.mxu0 0
        %2899 = vmatmul.mubr.bf16.gmra.mxu0 %v2741
        %v2900 = vpop.f32.mrf.mxu0
        %v2901 = vadd.f32 0.0, %v2900
        %v2902 = vpop.f32.mrf.mxu0
        %v2903 = vadd.f32 0.0, %v2902
        %v2904 = vpop.f32.mrf.mxu0
        %v2905 = vadd.f32 0.0, %v2904
        %v2906 = vpop.f32.mrf.mxu0
        %v2907 = vadd.f32 0.0, %v2906
        %2908 = vmatprep.mubr.bf16.mxu0 0
        %2909 = vmatmul.mubr.bf16.gmra.mxu0 %v2742
        %v2910 = vpop.f32.mrf.mxu0
        %v2911 = vadd.f32 0.0, %v2910
        %v2912 = vpop.f32.mrf.mxu0
        %v2913 = vadd.f32 0.0, %v2912
        %v2914 = vpop.f32.mrf.mxu0
        %v2915 = vadd.f32 0.0, %v2914
        %v2916 = vpop.f32.mrf.mxu0
        %v2917 = vadd.f32 0.0, %v2916
        %2918 = vmatprep.mubr.bf16.mxu0 0
        %2919 = vmatmul.mubr.bf16.gmra.mxu0 %v2743
        %v2920 = vpop.f32.mrf.mxu0
        %v2921 = vadd.f32 0.0, %v2920
        %v2922 = vpop.f32.mrf.mxu0
        %v2923 = vadd.f32 0.0, %v2922
        %v2924 = vpop.f32.mrf.mxu0
        %v2925 = vadd.f32 0.0, %v2924
        %v2926 = vpop.f32.mrf.mxu0
        %v2927 = vadd.f32 0.0, %v2926
        %2928 = vdwg.mxu0
        %v2929 = vmax.f32 %v2851, %v2853
        %2930 = vmax.xlane.f32.xlu0 %v2929
        %v2931 = vpop.xlane.xlu0 %2930
        %v2932 = vmax.f32 %v2855, %v2857
        %2933 = vmax.xlane.f32.xlu0 %v2932
        %v2934 = vpop.xlane.xlu0 %2933
        %v2935 = vmax.f32 %v2861, %v2863
        %2936 = vmax.xlane.f32.xlu0 %v2935
        %v2937 = vpop.xlane.xlu0 %2936
        %v2938 = vmax.f32 %v2865, %v2867
        %2939 = vmax.xlane.f32.xlu0 %v2938
        %v2940 = vpop.xlane.xlu0 %2939
        %v2941 = vmax.f32 %v2871, %v2873
        %2942 = vmax.xlane.f32.xlu0 %v2941
        %v2943 = vpop.xlane.xlu0 %2942
        %v2944 = vmax.f32 %v2875, %v2877
        %2945 = vmax.xlane.f32.xlu0 %v2944
        %v2946 = vpop.xlane.xlu0 %2945
        %v2947 = vmax.f32 %v2881, %v2883
        %2948 = vmax.xlane.f32.xlu0 %v2947
        %v2949 = vpop.xlane.xlu0 %2948
        %v2950 = vmax.f32 %v2885, %v2887
        %2951 = vmax.xlane.f32.xlu0 %v2950
        %v2952 = vpop.xlane.xlu0 %2951
        %v2953 = vmax.f32 %v2891, %v2893
        %2954 = vmax.xlane.f32.xlu0 %v2953
        %v2955 = vpop.xlane.xlu0 %2954
        %v2956 = vmax.f32 %v2895, %v2897
        %2957 = vmax.xlane.f32.xlu0 %v2956
        %v2958 = vpop.xlane.xlu0 %2957
        %v2959 = vmax.f32 %v2901, %v2903
        %2960 = vmax.xlane.f32.xlu0 %v2959
        %v2961 = vpop.xlane.xlu0 %2960
        %v2962 = vmax.f32 %v2905, %v2907
        %2963 = vmax.xlane.f32.xlu0 %v2962
        %v2964 = vpop.xlane.xlu0 %2963
        %v2965 = vmax.f32 %v2911, %v2913
        %2966 = vmax.xlane.f32.xlu0 %v2965
        %v2967 = vpop.xlane.xlu0 %2966
        %v2968 = vmax.f32 %v2915, %v2917
        %2969 = vmax.xlane.f32.xlu0 %v2968
        %v2970 = vpop.xlane.xlu0 %2969
        %v2971 = vmax.f32 %v2921, %v2923
        %2972 = vmax.xlane.f32.xlu0 %v2971
        %v2973 = vpop.xlane.xlu0 %2972
        %v2974 = vmax.f32 %v2925, %v2927
        %2975 = vmax.xlane.f32.xlu0 %v2974
        %v2976 = vpop.xlane.xlu0 %2975
        %v2977 = vsub.f32 %v2851, %v2931
        %v2978 = vsub.f32 %v2853, %v2931
        %v2979 = vsub.f32 %v2855, %v2934
        %v2980 = vsub.f32 %v2857, %v2934
        %v2981 = vsub.f32 %v2861, %v2937
        %v2982 = vsub.f32 %v2863, %v2937
        %v2983 = vsub.f32 %v2865, %v2940
        %v2984 = vsub.f32 %v2867, %v2940
        %v2985 = vsub.f32 %v2871, %v2943
        %v2986 = vsub.f32 %v2873, %v2943
        %v2987 = vsub.f32 %v2875, %v2946
        %v2988 = vsub.f32 %v2877, %v2946
        %v2989 = vsub.f32 %v2881, %v2949
        %v2990 = vsub.f32 %v2883, %v2949
        %v2991 = vsub.f32 %v2885, %v2952
        %v2992 = vsub.f32 %v2887, %v2952
        %v2993 = vsub.f32 %v2891, %v2955
        %v2994 = vsub.f32 %v2893, %v2955
        %v2995 = vsub.f32 %v2895, %v2958
        %v2996 = vsub.f32 %v2897, %v2958
        %v2997 = vsub.f32 %v2901, %v2961
        %v2998 = vsub.f32 %v2903, %v2961
        %v2999 = vsub.f32 %v2905, %v2964
        %v3000 = vsub.f32 %v2907, %v2964
        %v3001 = vsub.f32 %v2911, %v2967
        %v3002 = vsub.f32 %v2913, %v2967
        %v3003 = vsub.f32 %v2915, %v2970
        %v3004 = vsub.f32 %v2917, %v2970
        %v3005 = vsub.f32 %v2921, %v2973
        %v3006 = vsub.f32 %v2923, %v2973
        %v3007 = vsub.f32 %v2925, %v2976
        %v3008 = vsub.f32 %v2927, %v2976
        %v3009 = vmul.f32 %v2977, 1.442695
        %v3010 = vpow.pop %v3009
        %v3011 = vmul.f32 %v2978, 1.442695
        %v3012 = vpow.pop %v3011
        %v3013 = vmul.f32 %v2979, 1.442695
        %v3014 = vpow.pop %v3013
        %v3015 = vmul.f32 %v2980, 1.442695
        %v3016 = vpow.pop %v3015
        %v3017 = vmul.f32 %v2981, 1.442695
        %v3018 = vpow.pop %v3017
        %v3019 = vmul.f32 %v2982, 1.442695
        %v3020 = vpow.pop %v3019
        %v3021 = vmul.f32 %v2983, 1.442695
        %v3022 = vpow.pop %v3021
        %v3023 = vmul.f32 %v2984, 1.442695
        %v3024 = vpow.pop %v3023
        %v3025 = vmul.f32 %v2985, 1.442695
        %v3026 = vpow.pop %v3025
        %v3027 = vmul.f32 %v2986, 1.442695
        %v3028 = vpow.pop %v3027
        %v3029 = vmul.f32 %v2987, 1.442695
        %v3030 = vpow.pop %v3029
        %v3031 = vmul.f32 %v2988, 1.442695
        %v3032 = vpow.pop %v3031
        %v3033 = vmul.f32 %v2989, 1.442695
        %v3034 = vpow.pop %v3033
        %v3035 = vmul.f32 %v2990, 1.442695
        %v3036 = vpow.pop %v3035
        %v3037 = vmul.f32 %v2991, 1.442695
        %v3038 = vpow.pop %v3037
        %v3039 = vmul.f32 %v2992, 1.442695
        %v3040 = vpow.pop %v3039
        %v3041 = vmul.f32 %v2993, 1.442695
        %v3042 = vpow.pop %v3041
        %v3043 = vmul.f32 %v2994, 1.442695
        %v3044 = vpow.pop %v3043
        %v3045 = vmul.f32 %v2995, 1.442695
        %v3046 = vpow.pop %v3045
        %v3047 = vmul.f32 %v2996, 1.442695
        %v3048 = vpow.pop %v3047
        %v3049 = vmul.f32 %v2997, 1.442695
        %v3050 = vpow.pop %v3049
        %v3051 = vmul.f32 %v2998, 1.442695
        %v3052 = vpow.pop %v3051
        %v3053 = vmul.f32 %v2999, 1.442695
        %v3054 = vpow.pop %v3053
        %v3055 = vmul.f32 %v3000, 1.442695
        %v3056 = vpow.pop %v3055
        %v3057 = vmul.f32 %v3001, 1.442695
        %v3058 = vpow.pop %v3057
        %v3059 = vmul.f32 %v3002, 1.442695
        %v3060 = vpow.pop %v3059
        %v3061 = vmul.f32 %v3003, 1.442695
        %v3062 = vpow.pop %v3061
        %v3063 = vmul.f32 %v3004, 1.442695
        %v3064 = vpow.pop %v3063
        %v3065 = vmul.f32 %v3005, 1.442695
        %v3066 = vpow.pop %v3065
        %v3067 = vmul.f32 %v3006, 1.442695
        %v3068 = vpow.pop %v3067
        %v3069 = vmul.f32 %v3007, 1.442695
        %v3070 = vpow.pop %v3069
        %v3071 = vmul.f32 %v3008, 1.442695
        %v3072 = vpow.pop %v3071
        %v3073 = vadd.f32 %v3010, %v3012
        %3074 = vadd.xlane.f32.xlu0 %v3073
        %v3075 = vpop.xlane.xlu0 %3074
        %v3076 = vadd.f32 %v3014, %v3016
        %3077 = vadd.xlane.f32.xlu0 %v3076
        %v3078 = vpop.xlane.xlu0 %3077
        %v3079 = vadd.f32 %v3018, %v3020
        %3080 = vadd.xlane.f32.xlu0 %v3079
        %v3081 = vpop.xlane.xlu0 %3080
        %v3082 = vadd.f32 %v3022, %v3024
        %3083 = vadd.xlane.f32.xlu0 %v3082
        %v3084 = vpop.xlane.xlu0 %3083
        %v3085 = vadd.f32 %v3026, %v3028
        %3086 = vadd.xlane.f32.xlu0 %v3085
        %v3087 = vpop.xlane.xlu0 %3086
        %v3088 = vadd.f32 %v3030, %v3032
        %3089 = vadd.xlane.f32.xlu0 %v3088
        %v3090 = vpop.xlane.xlu0 %3089
        %v3091 = vadd.f32 %v3034, %v3036
        %3092 = vadd.xlane.f32.xlu0 %v3091
        %v3093 = vpop.xlane.xlu0 %3092
        %v3094 = vadd.f32 %v3038, %v3040
        %3095 = vadd.xlane.f32.xlu0 %v3094
        %v3096 = vpop.xlane.xlu0 %3095
        %v3097 = vadd.f32 %v3042, %v3044
        %3098 = vadd.xlane.f32.xlu0 %v3097
        %v3099 = vpop.xlane.xlu0 %3098
        %v3100 = vadd.f32 %v3046, %v3048
        %3101 = vadd.xlane.f32.xlu0 %v3100
        %v3102 = vpop.xlane.xlu0 %3101
        %v3103 = vadd.f32 %v3050, %v3052
        %3104 = vadd.xlane.f32.xlu0 %v3103
        %v3105 = vpop.xlane.xlu0 %3104
        %v3106 = vadd.f32 %v3054, %v3056
        %3107 = vadd.xlane.f32.xlu0 %v3106
        %v3108 = vpop.xlane.xlu0 %3107
        %v3109 = vadd.f32 %v3058, %v3060
        %3110 = vadd.xlane.f32.xlu0 %v3109
        %v3111 = vpop.xlane.xlu0 %3110
        %v3112 = vadd.f32 %v3062, %v3064
        %3113 = vadd.xlane.f32.xlu0 %v3112
        %v3114 = vpop.xlane.xlu0 %3113
        %v3115 = vadd.f32 %v3066, %v3068
        %3116 = vadd.xlane.f32.xlu0 %v3115
        %v3117 = vpop.xlane.xlu0 %3116
        %v3118 = vadd.f32 %v3070, %v3072
        %3119 = vadd.xlane.f32.xlu0 %v3118
        %v3120 = vpop.xlane.xlu0 %3119
        %v3121 = vpack.c.bf16 %v3014, %v3010
        %v3122 = vpack.c.bf16 %v3016, %v3012
        %v3123 = vpack.c.bf16 %v3022, %v3018
        %v3124 = vpack.c.bf16 %v3024, %v3020
        %v3125 = vpack.c.bf16 %v3030, %v3026
        %v3126 = vpack.c.bf16 %v3032, %v3028
        %v3127 = vpack.c.bf16 %v3038, %v3034
        %v3128 = vpack.c.bf16 %v3040, %v3036
        %v3129 = vpack.c.bf16 %v3046, %v3042
        %v3130 = vpack.c.bf16 %v3048, %v3044
        %v3131 = vpack.c.bf16 %v3054, %v3050
        %v3132 = vpack.c.bf16 %v3056, %v3052
        %v3133 = vpack.c.bf16 %v3062, %v3058
        %v3134 = vpack.c.bf16 %v3064, %v3060
        %v3135 = vpack.c.bf16 %v3070, %v3066
        %v3136 = vpack.c.bf16 %v3072, %v3068
        %v3137 = vunpack.c.h.b16 %v427
        %v3138 = vunpack.c.h.b16 %v429
        %v3139 = vunpack.c.h.b16 %v431
        %v3140 = vunpack.c.h.b16 %v433
        %v3141 = vunpack.c.h.b16 %v435
        %v3142 = vunpack.c.h.b16 %v437
        %v3143 = vunpack.c.h.b16 %v439
        %v3144 = vunpack.c.h.b16 %v441
        %v3145 = vunpack.c.h.b16 %v443
        %v3146 = vunpack.c.h.b16 %v445
        %v3147 = vunpack.c.h.b16 %v447
        %v3148 = vunpack.c.h.b16 %v449
        %v3149 = vunpack.c.h.b16 %v451
        %v3150 = vunpack.c.h.b16 %v453
        %v3151 = vunpack.c.h.b16 %v455
        %v3152 = vunpack.c.h.b16 %v457
        %v3153 = vunpack.c.h.b16 %v459
        %v3154 = vunpack.c.h.b16 %v461
        %v3155 = vunpack.c.h.b16 %v463
        %v3156 = vunpack.c.h.b16 %v465
        %v3157 = vunpack.c.h.b16 %v467
        %v3158 = vunpack.c.h.b16 %v469
        %v3159 = vunpack.c.h.b16 %v471
        %v3160 = vunpack.c.h.b16 %v473
        %v3161 = vunpack.c.h.b16 %v475
        %v3162 = vunpack.c.h.b16 %v477
        %v3163 = vunpack.c.h.b16 %v479
        %v3164 = vunpack.c.h.b16 %v481
        %v3165 = vunpack.c.h.b16 %v483
        %v3166 = vunpack.c.h.b16 %v485
        %v3167 = vunpack.c.h.b16 %v487
        %v3168 = vunpack.c.h.b16 %v489
        %v3169 = vpack.c.b16 %v3138, %v3137
        %v3170 = vpack.c.b16 %v3140, %v3139
        %v3171 = vpack.c.b16 %v3142, %v3141
        %v3172 = vpack.c.b16 %v3144, %v3143
        %v3173 = vpack.c.b16 %v3146, %v3145
        %v3174 = vpack.c.b16 %v3148, %v3147
        %v3175 = vpack.c.b16 %v3150, %v3149
        %v3176 = vpack.c.b16 %v3152, %v3151
        %v3177 = vpack.c.b16 %v3154, %v3153
        %v3178 = vpack.c.b16 %v3156, %v3155
        %v3179 = vpack.c.b16 %v3158, %v3157
        %v3180 = vpack.c.b16 %v3160, %v3159
        %v3181 = vpack.c.b16 %v3162, %v3161
        %v3182 = vpack.c.b16 %v3164, %v3163
        %v3183 = vpack.c.b16 %v3166, %v3165
        %v3184 = vpack.c.b16 %v3168, %v3167
        %3201 = vmatprep.subr.bf16.mxu0 0
        %3202 = vmatpush1.bf16.msra.mxu0 %v3176
        %3203 = vmatprep.subr.bf16.mxu0 0
        %3204 = vmatpush1.bf16.msra.mxu0 %v3175
        %3205 = vmatprep.subr.bf16.mxu0 0
        %3206 = vmatpush1.bf16.msra.mxu0 %v3174
        %3207 = vmatprep.subr.bf16.mxu0 0
        %3208 = vmatpush1.bf16.msra.mxu0 %v3173
        %3209 = vmatprep.subr.bf16.mxu0 0
        %3210 = vmatpush1.bf16.msra.mxu0 %v3172
        %3211 = vmatprep.subr.bf16.mxu0 0
        %3212 = vmatpush1.bf16.msra.mxu0 %v3171
        %3213 = vmatprep.subr.bf16.mxu0 0
        %3214 = vmatpush1.bf16.msra.mxu0 %v3170
        %3215 = vmatprep.subr.bf16.mxu0 0
        %3216 = vmatpush1.bf16.msra.mxu0 %v3169
        %3217 = vmatprep.subr.bf16.mxu0 0
        %3218 = vmatpush2.bf16.msra.mxu0 %v3184
        %3219 = vmatprep.subr.bf16.mxu0 0
        %3220 = vmatpush2.bf16.msra.mxu0 %v3183
        %3221 = vmatprep.subr.bf16.mxu0 0
        %3222 = vmatpush2.bf16.msra.mxu0 %v3182
        %3223 = vmatprep.subr.bf16.mxu0 0
        %3224 = vmatpush2.bf16.msra.mxu0 %v3181
        %3225 = vmatprep.subr.bf16.mxu0 0
        %3226 = vmatpush2.bf16.msra.mxu0 %v3180
        %3227 = vmatprep.subr.bf16.mxu0 0
        %3228 = vmatpush2.bf16.msra.mxu0 %v3179
        %3229 = vmatprep.subr.bf16.mxu0 0
        %3230 = vmatpush2.bf16.msra.mxu0 %v3178
        %3231 = vmatprep.subr.bf16.mxu0 0
        %3232 = vmatpush2.bf16.msra.mxu0 %v3177
        %3233 = vmatprep.mubr.bf16.mxu0 %v3122
        %3234 = vmatmul.mubr.bf16.gmra.mxu0 %v3121
        %v3235 = vpop.f32.mrf.mxu0
        %v3236 = vadd.f32 0.0, %v3235
        %v3237 = vpop.f32.mrf.mxu0
        %v3238 = vpop.f32.mrf.mxu0
        %v3239 = vadd.f32 0.0, %v3238
        %v3240 = vpop.f32.mrf.mxu0
        %3241 = vmatprep.mubr.bf16.mxu0 %v3124
        %3242 = vmatmul.mubr.bf16.gmra.mxu0 %v3123
        %v3243 = vpop.f32.mrf.mxu0
        %v3244 = vadd.f32 0.0, %v3243
        %v3245 = vpop.f32.mrf.mxu0
        %v3246 = vpop.f32.mrf.mxu0
        %v3247 = vadd.f32 0.0, %v3246
        %v3248 = vpop.f32.mrf.mxu0
        %3249 = vmatprep.mubr.bf16.mxu0 %v3126
        %3250 = vmatmul.mubr.bf16.gmra.mxu0 %v3125
        %v3251 = vpop.f32.mrf.mxu0
        %v3252 = vadd.f32 0.0, %v3251
        %v3253 = vpop.f32.mrf.mxu0
        %v3254 = vpop.f32.mrf.mxu0
        %v3255 = vadd.f32 0.0, %v3254
        %v3256 = vpop.f32.mrf.mxu0
        %3257 = vmatprep.mubr.bf16.mxu0 %v3128
        %3258 = vmatmul.mubr.bf16.gmra.mxu0 %v3127
        %v3259 = vpop.f32.mrf.mxu0
        %v3260 = vadd.f32 0.0, %v3259
        %v3261 = vpop.f32.mrf.mxu0
        %v3262 = vpop.f32.mrf.mxu0
        %v3263 = vadd.f32 0.0, %v3262
        %v3264 = vpop.f32.mrf.mxu0
        %3265 = vmatprep.mubr.bf16.mxu0 %v3130
        %3266 = vmatmul.mubr.bf16.gmra.mxu0 %v3129
        %v3267 = vpop.f32.mrf.mxu0
        %v3268 = vadd.f32 0.0, %v3267
        %v3269 = vpop.f32.mrf.mxu0
        %v3270 = vpop.f32.mrf.mxu0
        %v3271 = vadd.f32 0.0, %v3270
        %v3272 = vpop.f32.mrf.mxu0
        %3273 = vmatprep.mubr.bf16.mxu0 %v3132
        %3274 = vmatmul.mubr.bf16.gmra.mxu0 %v3131
        %v3275 = vpop.f32.mrf.mxu0
        %v3276 = vadd.f32 0.0, %v3275
        %v3277 = vpop.f32.mrf.mxu0
        %v3278 = vpop.f32.mrf.mxu0
        %v3279 = vadd.f32 0.0, %v3278
        %v3280 = vpop.f32.mrf.mxu0
        %3281 = vmatprep.mubr.bf16.mxu0 %v3134
        %3282 = vmatmul.mubr.bf16.gmra.mxu0 %v3133
        %v3283 = vpop.f32.mrf.mxu0
        %v3284 = vadd.f32 0.0, %v3283
        %v3285 = vpop.f32.mrf.mxu0
        %v3286 = vpop.f32.mrf.mxu0
        %v3287 = vadd.f32 0.0, %v3286
        %v3288 = vpop.f32.mrf.mxu0
        %3289 = vmatprep.mubr.bf16.mxu0 %v3136
        %3290 = vmatmul.mubr.bf16.gmra.mxu0 %v3135
        %v3291 = vpop.f32.mrf.mxu0
        %v3292 = vadd.f32 0.0, %v3291
        %v3293 = vpop.f32.mrf.mxu0
        %v3294 = vpop.f32.mrf.mxu0
        %v3295 = vadd.f32 0.0, %v3294
        %v3296 = vpop.f32.mrf.mxu0
        %3297 = vdwg.mxu0
        %v3298 = vrcp.pop %v3075
        %v3299 = vrcp.pop %v3078
        %v3300 = vrcp.pop %v3081
        %v3301 = vrcp.pop %v3084
        %v3302 = vrcp.pop %v3087
        %v3303 = vrcp.pop %v3090
        %v3304 = vrcp.pop %v3093
        %v3305 = vrcp.pop %v3096
        %v3306 = vrcp.pop %v3099
        %v3307 = vrcp.pop %v3102
        %v3308 = vrcp.pop %v3105
        %v3309 = vrcp.pop %v3108
        %v3310 = vrcp.pop %v3111
        %v3311 = vrcp.pop %v3114
        %v3312 = vrcp.pop %v3117
        %v3313 = vrcp.pop %v3120
        %v3314 = vmul.f32 %v3236, %v3298
        %v3315 = vmul.f32 %v3239, %v3299
        %v3316 = vmul.f32 %v3244, %v3300
        %v3317 = vmul.f32 %v3247, %v3301
        %v3318 = vmul.f32 %v3252, %v3302
        %v3319 = vmul.f32 %v3255, %v3303
        %v3320 = vmul.f32 %v3260, %v3304
        %v3321 = vmul.f32 %v3263, %v3305
        %v3322 = vmul.f32 %v3268, %v3306
        %v3323 = vmul.f32 %v3271, %v3307
        %v3324 = vmul.f32 %v3276, %v3308
        %v3325 = vmul.f32 %v3279, %v3309
        %v3326 = vmul.f32 %v3284, %v3310
        %v3327 = vmul.f32 %v3287, %v3311
        %v3328 = vmul.f32 %v3292, %v3312
        %v3329 = vmul.f32 %v3295, %v3313
        %v3330 = vpack.c.bf16 %v3315, %v3314
        %v3331 = vpack.c.bf16 %v3317, %v3316
        %v3332 = vpack.c.bf16 %v3319, %v3318
        %v3333 = vpack.c.bf16 %v3321, %v3320
        %v3334 = vpack.c.bf16 %v3323, %v3322
        %v3335 = vpack.c.bf16 %v3325, %v3324
        %v3336 = vpack.c.bf16 %v3327, %v3326
        %v3337 = vpack.c.bf16 %v3329, %v3328
        %v3346 = vunpack.c.l.b16 %v3330
        %v3347 = vunpack.c.h.b16 %v3330
        %v3348 = vunpack.c.l.b16 %v3331
        %v3349 = vunpack.c.h.b16 %v3331
        %v3350 = vunpack.c.l.b16 %v3332
        %v3351 = vunpack.c.h.b16 %v3332
        %v3352 = vunpack.c.l.b16 %v3333
        %v3353 = vunpack.c.h.b16 %v3333
        %v3354 = vunpack.c.l.b16 %v3334
        %v3355 = vunpack.c.h.b16 %v3334
        %v3356 = vunpack.c.l.b16 %v3335
        %v3357 = vunpack.c.h.b16 %v3335
        %v3358 = vunpack.c.l.b16 %v3336
        %v3359 = vunpack.c.h.b16 %v3336
        %v3360 = vunpack.c.l.b16 %v3337
        %v3361 = vunpack.c.h.b16 %v3337
        %v3362 = vpack.c.b16 %v3346, %v3346
        %v3363 = vpack.c.b16 %v3347, %v3347
        %v3364 = vpack.c.b16 %v3348, %v3348
        %v3365 = vpack.c.b16 %v3349, %v3349
        %v3366 = vpack.c.b16 %v3350, %v3350
        %v3367 = vpack.c.b16 %v3351, %v3351
        %v3368 = vpack.c.b16 %v3352, %v3352
        %v3369 = vpack.c.b16 %v3353, %v3353
        %v3370 = vpack.c.b16 %v3354, %v3354
        %v3371 = vpack.c.b16 %v3355, %v3355
        %v3372 = vpack.c.b16 %v3356, %v3356
        %v3373 = vpack.c.b16 %v3357, %v3357
        %v3374 = vpack.c.b16 %v3358, %v3358
        %v3375 = vpack.c.b16 %v3359, %v3359
        %v3376 = vpack.c.b16 %v3360, %v3360
        %v3377 = vpack.c.b16 %v3361, %v3361
        %3394 = vst [vmem:[#allocation2 + $0xc] sm:$0xf] %v3362
        %3395 = vst [vmem:[#allocation2 + $0x1c] sm:$0xf] %v3363
        %3396 = vst [vmem:[#allocation2 + $0x2c] sm:$0xf] %v3364
        %3397 = vst [vmem:[#allocation2 + $0x3c] sm:$0xf] %v3365
        %3398 = vst [vmem:[#allocation2 + $0x4c] sm:$0xf] %v3366
        %3399 = vst [vmem:[#allocation2 + $0x5c] sm:$0xf] %v3367
        %3400 = vst [vmem:[#allocation2 + $0x6c] sm:$0xf] %v3368
        %3401 = vst [vmem:[#allocation2 + $0x7c] sm:$0xf] %v3369
        %3402 = vst [vmem:[#allocation2 + $0x8c] sm:$0xf] %v3370
        %3403 = vst [vmem:[#allocation2 + $0x9c] sm:$0xf] %v3371
        %3404 = vst [vmem:[#allocation2 + $0xac] sm:$0xf] %v3372
        %3405 = vst [vmem:[#allocation2 + $0xbc] sm:$0xf] %v3373
        %3406 = vst [vmem:[#allocation2 + $0xcc] sm:$0xf] %v3374
        %3407 = vst [vmem:[#allocation2 + $0xdc] sm:$0xf] %v3375
        %3408 = vst [vmem:[#allocation2 + $0xec] sm:$0xf] %v3376
        %3409 = vst [vmem:[#allocation2 + $0xfc] sm:$0xf] %v3377
        %v3410 = vld [vmem:[#allocation2] sm:$0xff]
        %v3411 = vld [vmem:[#allocation2 + $0x8] sm:$0xff]
        %v3412 = vld [vmem:[#allocation2 + $0x10] sm:$0xff]
        %v3413 = vld [vmem:[#allocation2 + $0x18] sm:$0xff]
        %v3414 = vld [vmem:[#allocation2 + $0x20] sm:$0xff]
        %v3415 = vld [vmem:[#allocation2 + $0x28] sm:$0xff]
        %v3416 = vld [vmem:[#allocation2 + $0x30] sm:$0xff]
        %v3417 = vld [vmem:[#allocation2 + $0x38] sm:$0xff]
        %v3418 = vld [vmem:[#allocation2 + $0x40] sm:$0xff]
        %v3419 = vld [vmem:[#allocation2 + $0x48] sm:$0xff]
        %v3420 = vld [vmem:[#allocation2 + $0x50] sm:$0xff]
        %v3421 = vld [vmem:[#allocation2 + $0x58] sm:$0xff]
        %v3422 = vld [vmem:[#allocation2 + $0x60] sm:$0xff]
        %v3423 = vld [vmem:[#allocation2 + $0x68] sm:$0xff]
        %v3424 = vld [vmem:[#allocation2 + $0x70] sm:$0xff]
        %v3425 = vld [vmem:[#allocation2 + $0x78] sm:$0xff]
        %v3426 = vld [vmem:[#allocation2 + $0x80] sm:$0xff]
        %v3427 = vld [vmem:[#allocation2 + $0x88] sm:$0xff]
        %v3428 = vld [vmem:[#allocation2 + $0x90] sm:$0xff]
        %v3429 = vld [vmem:[#allocation2 + $0x98] sm:$0xff]
        %v3430 = vld [vmem:[#allocation2 + $0xa0] sm:$0xff]
        %v3431 = vld [vmem:[#allocation2 + $0xa8] sm:$0xff]
        %v3432 = vld [vmem:[#allocation2 + $0xb0] sm:$0xff]
        %v3433 = vld [vmem:[#allocation2 + $0xb8] sm:$0xff]
        %v3434 = vld [vmem:[#allocation2 + $0xc0] sm:$0xff]
        %v3435 = vld [vmem:[#allocation2 + $0xc8] sm:$0xff]
        %v3436 = vld [vmem:[#allocation2 + $0xd0] sm:$0xff]
        %v3437 = vld [vmem:[#allocation2 + $0xd8] sm:$0xff]
        %v3438 = vld [vmem:[#allocation2 + $0xe0] sm:$0xff]
        %v3439 = vld [vmem:[#allocation2 + $0xe8] sm:$0xff]
        %v3440 = vld [vmem:[#allocation2 + $0xf0] sm:$0xff]
        %v3441 = vld [vmem:[#allocation2 + $0xf8] sm:$0xff]
        %v3442 = vld [vmem:[#allocation9] sm:$0xff]
        %v3443 = vld [vmem:[#allocation9 + $0x8] sm:$0xff]
        %v3444 = vld [vmem:[#allocation9 + $0x10] sm:$0xff]
        %v3445 = vld [vmem:[#allocation9 + $0x18] sm:$0xff]
        %v3446 = vld [vmem:[#allocation9 + $0x20] sm:$0xff]
        %v3447 = vld [vmem:[#allocation9 + $0x28] sm:$0xff]
        %v3448 = vld [vmem:[#allocation9 + $0x30] sm:$0xff]
        %v3449 = vld [vmem:[#allocation9 + $0x38] sm:$0xff]
        %v3450 = vld [vmem:[#allocation9 + $0x40] sm:$0xff]
        %v3451 = vld [vmem:[#allocation9 + $0x48] sm:$0xff]
        %v3452 = vld [vmem:[#allocation9 + $0x50] sm:$0xff]
        %v3453 = vld [vmem:[#allocation9 + $0x58] sm:$0xff]
        %v3454 = vld [vmem:[#allocation9 + $0x60] sm:$0xff]
        %v3455 = vld [vmem:[#allocation9 + $0x68] sm:$0xff]
        %v3456 = vld [vmem:[#allocation9 + $0x70] sm:$0xff]
        %v3457 = vld [vmem:[#allocation9 + $0x78] sm:$0xff]
        %v3458 = vld [vmem:[#allocation9 + $0x80] sm:$0xff]
        %v3459 = vld [vmem:[#allocation9 + $0x88] sm:$0xff]
        %v3460 = vld [vmem:[#allocation9 + $0x90] sm:$0xff]
        %v3461 = vld [vmem:[#allocation9 + $0x98] sm:$0xff]
        %v3462 = vld [vmem:[#allocation9 + $0xa0] sm:$0xff]
        %v3463 = vld [vmem:[#allocation9 + $0xa8] sm:$0xff]
        %v3464 = vld [vmem:[#allocation9 + $0xb0] sm:$0xff]
        %v3465 = vld [vmem:[#allocation9 + $0xb8] sm:$0xff]
        %v3466 = vld [vmem:[#allocation9 + $0xc0] sm:$0xff]
        %v3467 = vld [vmem:[#allocation9 + $0xc8] sm:$0xff]
        %v3468 = vld [vmem:[#allocation9 + $0xd0] sm:$0xff]
        %v3469 = vld [vmem:[#allocation9 + $0xd8] sm:$0xff]
        %v3470 = vld [vmem:[#allocation9 + $0xe0] sm:$0xff]
        %v3471 = vld [vmem:[#allocation9 + $0xe8] sm:$0xff]
        %v3472 = vld [vmem:[#allocation9 + $0xf0] sm:$0xff]
        %v3473 = vld [vmem:[#allocation9 + $0xf8] sm:$0xff]
        %v3474 = vld [vmem:[#allocation9 + $0x100] sm:$0xff]
        %v3475 = vld [vmem:[#allocation9 + $0x108] sm:$0xff]
        %v3476 = vld [vmem:[#allocation9 + $0x110] sm:$0xff]
        %v3477 = vld [vmem:[#allocation9 + $0x118] sm:$0xff]
        %v3478 = vld [vmem:[#allocation9 + $0x120] sm:$0xff]
        %v3479 = vld [vmem:[#allocation9 + $0x128] sm:$0xff]
        %v3480 = vld [vmem:[#allocation9 + $0x130] sm:$0xff]
        %v3481 = vld [vmem:[#allocation9 + $0x138] sm:$0xff]
        %v3482 = vld [vmem:[#allocation9 + $0x140] sm:$0xff]
        %v3483 = vld [vmem:[#allocation9 + $0x148] sm:$0xff]
        %v3484 = vld [vmem:[#allocation9 + $0x150] sm:$0xff]
        %v3485 = vld [vmem:[#allocation9 + $0x158] sm:$0xff]
        %v3486 = vld [vmem:[#allocation9 + $0x160] sm:$0xff]
        %v3487 = vld [vmem:[#allocation9 + $0x168] sm:$0xff]
        %v3488 = vld [vmem:[#allocation9 + $0x170] sm:$0xff]
        %v3489 = vld [vmem:[#allocation9 + $0x178] sm:$0xff]
        %v3490 = vld [vmem:[#allocation9 + $0x180] sm:$0xff]
        %v3491 = vld [vmem:[#allocation9 + $0x188] sm:$0xff]
        %v3492 = vld [vmem:[#allocation9 + $0x190] sm:$0xff]
        %v3493 = vld [vmem:[#allocation9 + $0x198] sm:$0xff]
        %v3494 = vld [vmem:[#allocation9 + $0x1a0] sm:$0xff]
        %v3495 = vld [vmem:[#allocation9 + $0x1a8] sm:$0xff]
        %v3496 = vld [vmem:[#allocation9 + $0x1b0] sm:$0xff]
        %v3497 = vld [vmem:[#allocation9 + $0x1b8] sm:$0xff]
        %v3498 = vld [vmem:[#allocation9 + $0x1c0] sm:$0xff]
        %v3499 = vld [vmem:[#allocation9 + $0x1c8] sm:$0xff]
        %v3500 = vld [vmem:[#allocation9 + $0x1d0] sm:$0xff]
        %v3501 = vld [vmem:[#allocation9 + $0x1d8] sm:$0xff]
        %v3502 = vld [vmem:[#allocation9 + $0x1e0] sm:$0xff]
        %v3503 = vld [vmem:[#allocation9 + $0x1e8] sm:$0xff]
        %v3504 = vld [vmem:[#allocation9 + $0x1f0] sm:$0xff]
        %v3505 = vld [vmem:[#allocation9 + $0x1f8] sm:$0xff]
        %v3506 = vld [vmem:[#allocation9 + $0x200] sm:$0xff]
        %v3507 = vld [vmem:[#allocation9 + $0x208] sm:$0xff]
        %v3508 = vld [vmem:[#allocation9 + $0x210] sm:$0xff]
        %v3509 = vld [vmem:[#allocation9 + $0x218] sm:$0xff]
        %v3510 = vld [vmem:[#allocation9 + $0x220] sm:$0xff]
        %v3511 = vld [vmem:[#allocation9 + $0x228] sm:$0xff]
        %v3512 = vld [vmem:[#allocation9 + $0x230] sm:$0xff]
        %v3513 = vld [vmem:[#allocation9 + $0x238] sm:$0xff]
        %v3514 = vld [vmem:[#allocation9 + $0x240] sm:$0xff]
        %v3515 = vld [vmem:[#allocation9 + $0x248] sm:$0xff]
        %v3516 = vld [vmem:[#allocation9 + $0x250] sm:$0xff]
        %v3517 = vld [vmem:[#allocation9 + $0x258] sm:$0xff]
        %v3518 = vld [vmem:[#allocation9 + $0x260] sm:$0xff]
        %v3519 = vld [vmem:[#allocation9 + $0x268] sm:$0xff]
        %v3520 = vld [vmem:[#allocation9 + $0x270] sm:$0xff]
        %v3521 = vld [vmem:[#allocation9 + $0x278] sm:$0xff]
        %v3522 = vld [vmem:[#allocation9 + $0x280] sm:$0xff]
        %v3523 = vld [vmem:[#allocation9 + $0x288] sm:$0xff]
        %v3524 = vld [vmem:[#allocation9 + $0x290] sm:$0xff]
        %v3525 = vld [vmem:[#allocation9 + $0x298] sm:$0xff]
        %v3526 = vld [vmem:[#allocation9 + $0x2a0] sm:$0xff]
        %v3527 = vld [vmem:[#allocation9 + $0x2a8] sm:$0xff]
        %v3528 = vld [vmem:[#allocation9 + $0x2b0] sm:$0xff]
        %v3529 = vld [vmem:[#allocation9 + $0x2b8] sm:$0xff]
        %v3530 = vld [vmem:[#allocation9 + $0x2c0] sm:$0xff]
        %v3531 = vld [vmem:[#allocation9 + $0x2c8] sm:$0xff]
        %v3532 = vld [vmem:[#allocation9 + $0x2d0] sm:$0xff]
        %v3533 = vld [vmem:[#allocation9 + $0x2d8] sm:$0xff]
        %v3534 = vld [vmem:[#allocation9 + $0x2e0] sm:$0xff]
        %v3535 = vld [vmem:[#allocation9 + $0x2e8] sm:$0xff]
        %v3536 = vld [vmem:[#allocation9 + $0x2f0] sm:$0xff]
        %v3537 = vld [vmem:[#allocation9 + $0x2f8] sm:$0xff]
        %v3538 = vld [vmem:[#allocation9 + $0x300] sm:$0xff]
        %v3539 = vld [vmem:[#allocation9 + $0x308] sm:$0xff]
        %v3540 = vld [vmem:[#allocation9 + $0x310] sm:$0xff]
        %v3541 = vld [vmem:[#allocation9 + $0x318] sm:$0xff]
        %v3542 = vld [vmem:[#allocation9 + $0x320] sm:$0xff]
        %v3543 = vld [vmem:[#allocation9 + $0x328] sm:$0xff]
        %v3544 = vld [vmem:[#allocation9 + $0x330] sm:$0xff]
        %v3545 = vld [vmem:[#allocation9 + $0x338] sm:$0xff]
        %v3546 = vld [vmem:[#allocation9 + $0x340] sm:$0xff]
        %v3547 = vld [vmem:[#allocation9 + $0x348] sm:$0xff]
        %v3548 = vld [vmem:[#allocation9 + $0x350] sm:$0xff]
        %v3549 = vld [vmem:[#allocation9 + $0x358] sm:$0xff]
        %v3550 = vld [vmem:[#allocation9 + $0x360] sm:$0xff]
        %v3551 = vld [vmem:[#allocation9 + $0x368] sm:$0xff]
        %v3552 = vld [vmem:[#allocation9 + $0x370] sm:$0xff]
        %v3553 = vld [vmem:[#allocation9 + $0x378] sm:$0xff]
        %v3554 = vld [vmem:[#allocation9 + $0x380] sm:$0xff]
        %v3555 = vld [vmem:[#allocation9 + $0x388] sm:$0xff]
        %v3556 = vld [vmem:[#allocation9 + $0x390] sm:$0xff]
        %v3557 = vld [vmem:[#allocation9 + $0x398] sm:$0xff]
        %v3558 = vld [vmem:[#allocation9 + $0x3a0] sm:$0xff]
        %v3559 = vld [vmem:[#allocation9 + $0x3a8] sm:$0xff]
        %v3560 = vld [vmem:[#allocation9 + $0x3b0] sm:$0xff]
        %v3561 = vld [vmem:[#allocation9 + $0x3b8] sm:$0xff]
        %v3562 = vld [vmem:[#allocation9 + $0x3c0] sm:$0xff]
        %v3563 = vld [vmem:[#allocation9 + $0x3c8] sm:$0xff]
        %v3564 = vld [vmem:[#allocation9 + $0x3d0] sm:$0xff]
        %v3565 = vld [vmem:[#allocation9 + $0x3d8] sm:$0xff]
        %v3566 = vld [vmem:[#allocation9 + $0x3e0] sm:$0xff]
        %v3567 = vld [vmem:[#allocation9 + $0x3e8] sm:$0xff]
        %v3568 = vld [vmem:[#allocation9 + $0x3f0] sm:$0xff]
        %v3569 = vld [vmem:[#allocation9 + $0x3f8] sm:$0xff]
        %v3602 = vunpack.c.l.b16 %v3410
        %v3603 = vunpack.c.h.b16 %v3410
        %v3604 = vunpack.c.l.b16 %v3411
        %v3605 = vunpack.c.h.b16 %v3411
        %v3606 = vunpack.c.l.b16 %v3412
        %v3607 = vunpack.c.h.b16 %v3412
        %v3608 = vunpack.c.l.b16 %v3413
        %v3609 = vunpack.c.h.b16 %v3413
        %v3610 = vunpack.c.l.b16 %v3414
        %v3611 = vunpack.c.h.b16 %v3414
        %v3612 = vunpack.c.l.b16 %v3415
        %v3613 = vunpack.c.h.b16 %v3415
        %v3614 = vunpack.c.l.b16 %v3416
        %v3615 = vunpack.c.h.b16 %v3416
        %v3616 = vunpack.c.l.b16 %v3417
        %v3617 = vunpack.c.h.b16 %v3417
        %v3618 = vunpack.c.l.b16 %v3418
        %v3619 = vunpack.c.h.b16 %v3418
        %v3620 = vunpack.c.l.b16 %v3419
        %v3621 = vunpack.c.h.b16 %v3419
        %v3622 = vunpack.c.l.b16 %v3420
        %v3623 = vunpack.c.h.b16 %v3420
        %v3624 = vunpack.c.l.b16 %v3421
        %v3625 = vunpack.c.h.b16 %v3421
        %v3626 = vunpack.c.l.b16 %v3422
        %v3627 = vunpack.c.h.b16 %v3422
        %v3628 = vunpack.c.l.b16 %v3423
        %v3629 = vunpack.c.h.b16 %v3423
        %v3630 = vunpack.c.l.b16 %v3424
        %v3631 = vunpack.c.h.b16 %v3424
        %v3632 = vunpack.c.l.b16 %v3425
        %v3633 = vunpack.c.h.b16 %v3425
        %v3634 = vunpack.c.l.b16 %v3426
        %v3635 = vunpack.c.h.b16 %v3426
        %v3636 = vunpack.c.l.b16 %v3427
        %v3637 = vunpack.c.h.b16 %v3427
        %v3638 = vunpack.c.l.b16 %v3428
        %v3639 = vunpack.c.h.b16 %v3428
        %v3640 = vunpack.c.l.b16 %v3429
        %v3641 = vunpack.c.h.b16 %v3429
        %v3642 = vunpack.c.l.b16 %v3430
        %v3643 = vunpack.c.h.b16 %v3430
        %v3644 = vunpack.c.l.b16 %v3431
        %v3645 = vunpack.c.h.b16 %v3431
        %v3646 = vunpack.c.l.b16 %v3432
        %v3647 = vunpack.c.h.b16 %v3432
        %v3648 = vunpack.c.l.b16 %v3433
        %v3649 = vunpack.c.h.b16 %v3433
        %v3650 = vunpack.c.l.b16 %v3434
        %v3651 = vunpack.c.h.b16 %v3434
        %v3652 = vunpack.c.l.b16 %v3435
        %v3653 = vunpack.c.h.b16 %v3435
        %v3654 = vunpack.c.l.b16 %v3436
        %v3655 = vunpack.c.h.b16 %v3436
        %v3656 = vunpack.c.l.b16 %v3437
        %v3657 = vunpack.c.h.b16 %v3437
        %v3658 = vunpack.c.l.b16 %v3438
        %v3659 = vunpack.c.h.b16 %v3438
        %v3660 = vunpack.c.l.b16 %v3439
        %v3661 = vunpack.c.h.b16 %v3439
        %v3662 = vunpack.c.l.b16 %v3440
        %v3663 = vunpack.c.h.b16 %v3440
        %v3664 = vunpack.c.l.b16 %v3441
        %v3665 = vunpack.c.h.b16 %v3441
        %v3666 = vpack.c.b16 %v3606, %v3602
        %v3667 = vpack.c.b16 %v3607, %v3603
        %v3668 = vpack.c.b16 %v3608, %v3604
        %v3669 = vpack.c.b16 %v3609, %v3605
        %v3670 = vpack.c.b16 %v3614, %v3610
        %v3671 = vpack.c.b16 %v3615, %v3611
        %v3672 = vpack.c.b16 %v3616, %v3612
        %v3673 = vpack.c.b16 %v3617, %v3613
        %v3674 = vpack.c.b16 %v3622, %v3618
        %v3675 = vpack.c.b16 %v3623, %v3619
        %v3676 = vpack.c.b16 %v3624, %v3620
        %v3677 = vpack.c.b16 %v3625, %v3621
        %v3678 = vpack.c.b16 %v3630, %v3626
        %v3679 = vpack.c.b16 %v3631, %v3627
        %v3680 = vpack.c.b16 %v3632, %v3628
        %v3681 = vpack.c.b16 %v3633, %v3629
        %v3682 = vpack.c.b16 %v3638, %v3634
        %v3683 = vpack.c.b16 %v3639, %v3635
        %v3684 = vpack.c.b16 %v3640, %v3636
        %v3685 = vpack.c.b16 %v3641, %v3637
        %v3686 = vpack.c.b16 %v3646, %v3642
        %v3687 = vpack.c.b16 %v3647, %v3643
        %v3688 = vpack.c.b16 %v3648, %v3644
        %v3689 = vpack.c.b16 %v3649, %v3645
        %v3690 = vpack.c.b16 %v3654, %v3650
        %v3691 = vpack.c.b16 %v3655, %v3651
        %v3692 = vpack.c.b16 %v3656, %v3652
        %v3693 = vpack.c.b16 %v3657, %v3653
        %v3694 = vpack.c.b16 %v3662, %v3658
        %v3695 = vpack.c.b16 %v3663, %v3659
        %v3696 = vpack.c.b16 %v3664, %v3660
        %v3697 = vpack.c.b16 %v3665, %v3661
        %v3858 = vunpack.c.l.b16 %v3442
        %v3859 = vunpack.c.h.b16 %v3442
        %v3860 = vunpack.c.l.b16 %v3443
        %v3861 = vunpack.c.h.b16 %v3443
        %v3862 = vunpack.c.l.b16 %v3444
        %v3863 = vunpack.c.h.b16 %v3444
        %v3864 = vunpack.c.l.b16 %v3445
        %v3865 = vunpack.c.h.b16 %v3445
        %v3866 = vunpack.c.l.b16 %v3446
        %v3867 = vunpack.c.h.b16 %v3446
        %v3868 = vunpack.c.l.b16 %v3447
        %v3869 = vunpack.c.h.b16 %v3447
        %v3870 = vunpack.c.l.b16 %v3448
        %v3871 = vunpack.c.h.b16 %v3448
        %v3872 = vunpack.c.l.b16 %v3449
        %v3873 = vunpack.c.h.b16 %v3449
        %v3874 = vunpack.c.l.b16 %v3450
        %v3875 = vunpack.c.h.b16 %v3450
        %v3876 = vunpack.c.l.b16 %v3451
        %v3877 = vunpack.c.h.b16 %v3451
        %v3878 = vunpack.c.l.b16 %v3452
        %v3879 = vunpack.c.h.b16 %v3452
        %v3880 = vunpack.c.l.b16 %v3453
        %v3881 = vunpack.c.h.b16 %v3453
        %v3882 = vunpack.c.l.b16 %v3454
        %v3883 = vunpack.c.h.b16 %v3454
        %v3884 = vunpack.c.l.b16 %v3455
        %v3885 = vunpack.c.h.b16 %v3455
        %v3886 = vunpack.c.l.b16 %v3456
        %v3887 = vunpack.c.h.b16 %v3456
        %v3888 = vunpack.c.l.b16 %v3457
        %v3889 = vunpack.c.h.b16 %v3457
        %v3890 = vunpack.c.l.b16 %v3458
        %v3891 = vunpack.c.h.b16 %v3458
        %v3892 = vunpack.c.l.b16 %v3459
        %v3893 = vunpack.c.h.b16 %v3459
        %v3894 = vunpack.c.l.b16 %v3460
        %v3895 = vunpack.c.h.b16 %v3460
        %v3896 = vunpack.c.l.b16 %v3461
        %v3897 = vunpack.c.h.b16 %v3461
        %v3898 = vunpack.c.l.b16 %v3462
        %v3899 = vunpack.c.h.b16 %v3462
        %v3900 = vunpack.c.l.b16 %v3463
        %v3901 = vunpack.c.h.b16 %v3463
        %v3902 = vunpack.c.l.b16 %v3464
        %v3903 = vunpack.c.h.b16 %v3464
        %v3904 = vunpack.c.l.b16 %v3465
        %v3905 = vunpack.c.h.b16 %v3465
        %v3906 = vunpack.c.l.b16 %v3466
        %v3907 = vunpack.c.h.b16 %v3466
        %v3908 = vunpack.c.l.b16 %v3467
        %v3909 = vunpack.c.h.b16 %v3467
        %v3910 = vunpack.c.l.b16 %v3468
        %v3911 = vunpack.c.h.b16 %v3468
        %v3912 = vunpack.c.l.b16 %v3469
        %v3913 = vunpack.c.h.b16 %v3469
        %v3914 = vunpack.c.l.b16 %v3470
        %v3915 = vunpack.c.h.b16 %v3470
        %v3916 = vunpack.c.l.b16 %v3471
        %v3917 = vunpack.c.h.b16 %v3471
        %v3918 = vunpack.c.l.b16 %v3472
        %v3919 = vunpack.c.h.b16 %v3472
        %v3920 = vunpack.c.l.b16 %v3473
        %v3921 = vunpack.c.h.b16 %v3473
        %v3922 = vunpack.c.l.b16 %v3474
        %v3923 = vunpack.c.h.b16 %v3474
        %v3924 = vunpack.c.l.b16 %v3475
        %v3925 = vunpack.c.h.b16 %v3475
        %v3926 = vunpack.c.l.b16 %v3476
        %v3927 = vunpack.c.h.b16 %v3476
        %v3928 = vunpack.c.l.b16 %v3477
        %v3929 = vunpack.c.h.b16 %v3477
        %v3930 = vunpack.c.l.b16 %v3478
        %v3931 = vunpack.c.h.b16 %v3478
        %v3932 = vunpack.c.l.b16 %v3479
        %v3933 = vunpack.c.h.b16 %v3479
        %v3934 = vunpack.c.l.b16 %v3480
        %v3935 = vunpack.c.h.b16 %v3480
        %v3936 = vunpack.c.l.b16 %v3481
        %v3937 = vunpack.c.h.b16 %v3481
        %v3938 = vunpack.c.l.b16 %v3482
        %v3939 = vunpack.c.h.b16 %v3482
        %v3940 = vunpack.c.l.b16 %v3483
        %v3941 = vunpack.c.h.b16 %v3483
        %v3942 = vunpack.c.l.b16 %v3484
        %v3943 = vunpack.c.h.b16 %v3484
        %v3944 = vunpack.c.l.b16 %v3485
        %v3945 = vunpack.c.h.b16 %v3485
        %v3946 = vunpack.c.l.b16 %v3486
        %v3947 = vunpack.c.h.b16 %v3486
        %v3948 = vunpack.c.l.b16 %v3487
        %v3949 = vunpack.c.h.b16 %v3487
        %v3950 = vunpack.c.l.b16 %v3488
        %v3951 = vunpack.c.h.b16 %v3488
        %v3952 = vunpack.c.l.b16 %v3489
        %v3953 = vunpack.c.h.b16 %v3489
        %v3954 = vunpack.c.l.b16 %v3490
        %v3955 = vunpack.c.h.b16 %v3490
        %v3956 = vunpack.c.l.b16 %v3491
        %v3957 = vunpack.c.h.b16 %v3491
        %v3958 = vunpack.c.l.b16 %v3492
        %v3959 = vunpack.c.h.b16 %v3492
        %v3960 = vunpack.c.l.b16 %v3493
        %v3961 = vunpack.c.h.b16 %v3493
        %v3962 = vunpack.c.l.b16 %v3494
        %v3963 = vunpack.c.h.b16 %v3494
        %v3964 = vunpack.c.l.b16 %v3495
        %v3965 = vunpack.c.h.b16 %v3495
        %v3966 = vunpack.c.l.b16 %v3496
        %v3967 = vunpack.c.h.b16 %v3496
        %v3968 = vunpack.c.l.b16 %v3497
        %v3969 = vunpack.c.h.b16 %v3497
        %v3970 = vunpack.c.l.b16 %v3498
        %v3971 = vunpack.c.h.b16 %v3498
        %v3972 = vunpack.c.l.b16 %v3499
        %v3973 = vunpack.c.h.b16 %v3499
        %v3974 = vunpack.c.l.b16 %v3500
        %v3975 = vunpack.c.h.b16 %v3500
        %v3976 = vunpack.c.l.b16 %v3501
        %v3977 = vunpack.c.h.b16 %v3501
        %v3978 = vunpack.c.l.b16 %v3502
        %v3979 = vunpack.c.h.b16 %v3502
        %v3980 = vunpack.c.l.b16 %v3503
        %v3981 = vunpack.c.h.b16 %v3503
        %v3982 = vunpack.c.l.b16 %v3504
        %v3983 = vunpack.c.h.b16 %v3504
        %v3984 = vunpack.c.l.b16 %v3505
        %v3985 = vunpack.c.h.b16 %v3505
        %v3986 = vunpack.c.l.b16 %v3506
        %v3987 = vunpack.c.h.b16 %v3506
        %v3988 = vunpack.c.l.b16 %v3507
        %v3989 = vunpack.c.h.b16 %v3507
        %v3990 = vunpack.c.l.b16 %v3508
        %v3991 = vunpack.c.h.b16 %v3508
        %v3992 = vunpack.c.l.b16 %v3509
        %v3993 = vunpack.c.h.b16 %v3509
        %v3994 = vunpack.c.l.b16 %v3510
        %v3995 = vunpack.c.h.b16 %v3510
        %v3996 = vunpack.c.l.b16 %v3511
        %v3997 = vunpack.c.h.b16 %v3511
        %v3998 = vunpack.c.l.b16 %v3512
        %v3999 = vunpack.c.h.b16 %v3512
        %v4000 = vunpack.c.l.b16 %v3513
        %v4001 = vunpack.c.h.b16 %v3513
        %v4002 = vunpack.c.l.b16 %v3514
        %v4003 = vunpack.c.h.b16 %v3514
        %v4004 = vunpack.c.l.b16 %v3515
        %v4005 = vunpack.c.h.b16 %v3515
        %v4006 = vunpack.c.l.b16 %v3516
        %v4007 = vunpack.c.h.b16 %v3516
        %v4008 = vunpack.c.l.b16 %v3517
        %v4009 = vunpack.c.h.b16 %v3517
        %v4010 = vunpack.c.l.b16 %v3518
        %v4011 = vunpack.c.h.b16 %v3518
        %v4012 = vunpack.c.l.b16 %v3519
        %v4013 = vunpack.c.h.b16 %v3519
        %v4014 = vunpack.c.l.b16 %v3520
        %v4015 = vunpack.c.h.b16 %v3520
        %v4016 = vunpack.c.l.b16 %v3521
        %v4017 = vunpack.c.h.b16 %v3521
        %v4018 = vunpack.c.l.b16 %v3522
        %v4019 = vunpack.c.h.b16 %v3522
        %v4020 = vunpack.c.l.b16 %v3523
        %v4021 = vunpack.c.h.b16 %v3523
        %v4022 = vunpack.c.l.b16 %v3524
        %v4023 = vunpack.c.h.b16 %v3524
        %v4024 = vunpack.c.l.b16 %v3525
        %v4025 = vunpack.c.h.b16 %v3525
        %v4026 = vunpack.c.l.b16 %v3526
        %v4027 = vunpack.c.h.b16 %v3526
        %v4028 = vunpack.c.l.b16 %v3527
        %v4029 = vunpack.c.h.b16 %v3527
        %v4030 = vunpack.c.l.b16 %v3528
        %v4031 = vunpack.c.h.b16 %v3528
        %v4032 = vunpack.c.l.b16 %v3529
        %v4033 = vunpack.c.h.b16 %v3529
        %v4034 = vunpack.c.l.b16 %v3530
        %v4035 = vunpack.c.h.b16 %v3530
        %v4036 = vunpack.c.l.b16 %v3531
        %v4037 = vunpack.c.h.b16 %v3531
        %v4038 = vunpack.c.l.b16 %v3532
        %v4039 = vunpack.c.h.b16 %v3532
        %v4040 = vunpack.c.l.b16 %v3533
        %v4041 = vunpack.c.h.b16 %v3533
        %v4042 = vunpack.c.l.b16 %v3534
        %v4043 = vunpack.c.h.b16 %v3534
        %v4044 = vunpack.c.l.b16 %v3535
        %v4045 = vunpack.c.h.b16 %v3535
        %v4046 = vunpack.c.l.b16 %v3536
        %v4047 = vunpack.c.h.b16 %v3536
        %v4048 = vunpack.c.l.b16 %v3537
        %v4049 = vunpack.c.h.b16 %v3537
        %v4050 = vunpack.c.l.b16 %v3538
        %v4051 = vunpack.c.h.b16 %v3538
        %v4052 = vunpack.c.l.b16 %v3539
        %v4053 = vunpack.c.h.b16 %v3539
        %v4054 = vunpack.c.l.b16 %v3540
        %v4055 = vunpack.c.h.b16 %v3540
        %v4056 = vunpack.c.l.b16 %v3541
        %v4057 = vunpack.c.h.b16 %v3541
        %v4058 = vunpack.c.l.b16 %v3542
        %v4059 = vunpack.c.h.b16 %v3542
        %v4060 = vunpack.c.l.b16 %v3543
        %v4061 = vunpack.c.h.b16 %v3543
        %v4062 = vunpack.c.l.b16 %v3544
        %v4063 = vunpack.c.h.b16 %v3544
        %v4064 = vunpack.c.l.b16 %v3545
        %v4065 = vunpack.c.h.b16 %v3545
        %v4066 = vunpack.c.l.b16 %v3546
        %v4067 = vunpack.c.h.b16 %v3546
        %v4068 = vunpack.c.l.b16 %v3547
        %v4069 = vunpack.c.h.b16 %v3547
        %v4070 = vunpack.c.l.b16 %v3548
        %v4071 = vunpack.c.h.b16 %v3548
        %v4072 = vunpack.c.l.b16 %v3549
        %v4073 = vunpack.c.h.b16 %v3549
        %v4074 = vunpack.c.l.b16 %v3550
        %v4075 = vunpack.c.h.b16 %v3550
        %v4076 = vunpack.c.l.b16 %v3551
        %v4077 = vunpack.c.h.b16 %v3551
        %v4078 = vunpack.c.l.b16 %v3552
        %v4079 = vunpack.c.h.b16 %v3552
        %v4080 = vunpack.c.l.b16 %v3553
        %v4081 = vunpack.c.h.b16 %v3553
        %v4082 = vunpack.c.l.b16 %v3554
        %v4083 = vunpack.c.h.b16 %v3554
        %v4084 = vunpack.c.l.b16 %v3555
        %v4085 = vunpack.c.h.b16 %v3555
        %v4086 = vunpack.c.l.b16 %v3556
        %v4087 = vunpack.c.h.b16 %v3556
        %v4088 = vunpack.c.l.b16 %v3557
        %v4089 = vunpack.c.h.b16 %v3557
        %v4090 = vunpack.c.l.b16 %v3558
        %v4091 = vunpack.c.h.b16 %v3558
        %v4092 = vunpack.c.l.b16 %v3559
        %v4093 = vunpack.c.h.b16 %v3559
        %v4094 = vunpack.c.l.b16 %v3560
        %v4095 = vunpack.c.h.b16 %v3560
        %v4096 = vunpack.c.l.b16 %v3561
        %v4097 = vunpack.c.h.b16 %v3561
        %v4098 = vunpack.c.l.b16 %v3562
        %v4099 = vunpack.c.h.b16 %v3562
        %v4100 = vunpack.c.l.b16 %v3563
        %v4101 = vunpack.c.h.b16 %v3563
        %v4102 = vunpack.c.l.b16 %v3564
        %v4103 = vunpack.c.h.b16 %v3564
        %v4104 = vunpack.c.l.b16 %v3565
        %v4105 = vunpack.c.h.b16 %v3565
        %v4106 = vunpack.c.l.b16 %v3566
        %v4107 = vunpack.c.h.b16 %v3566
        %v4108 = vunpack.c.l.b16 %v3567
        %v4109 = vunpack.c.h.b16 %v3567
        %v4110 = vunpack.c.l.b16 %v3568
        %v4111 = vunpack.c.h.b16 %v3568
        %v4112 = vunpack.c.l.b16 %v3569
        %v4113 = vunpack.c.h.b16 %v3569
        %v4114 = vpack.c.b16 %v3862, %v3858
        %v4115 = vpack.c.b16 %v3863, %v3859
        %v4116 = vpack.c.b16 %v3864, %v3860
        %v4117 = vpack.c.b16 %v3865, %v3861
        %v4118 = vpack.c.b16 %v3870, %v3866
        %v4119 = vpack.c.b16 %v3871, %v3867
        %v4120 = vpack.c.b16 %v3872, %v3868
        %v4121 = vpack.c.b16 %v3873, %v3869
        %v4122 = vpack.c.b16 %v3878, %v3874
        %v4123 = vpack.c.b16 %v3879, %v3875
        %v4124 = vpack.c.b16 %v3880, %v3876
        %v4125 = vpack.c.b16 %v3881, %v3877
        %v4126 = vpack.c.b16 %v3886, %v3882
        %v4127 = vpack.c.b16 %v3887, %v3883
        %v4128 = vpack.c.b16 %v3888, %v3884
        %v4129 = vpack.c.b16 %v3889, %v3885
        %v4130 = vpack.c.b16 %v3894, %v3890
        %v4131 = vpack.c.b16 %v3895, %v3891
        %v4132 = vpack.c.b16 %v3896, %v3892
        %v4133 = vpack.c.b16 %v3897, %v3893
        %v4134 = vpack.c.b16 %v3902, %v3898
        %v4135 = vpack.c.b16 %v3903, %v3899
        %v4136 = vpack.c.b16 %v3904, %v3900
        %v4137 = vpack.c.b16 %v3905, %v3901
        %v4138 = vpack.c.b16 %v3910, %v3906
        %v4139 = vpack.c.b16 %v3911, %v3907
        %v4140 = vpack.c.b16 %v3912, %v3908
        %v4141 = vpack.c.b16 %v3913, %v3909
        %v4142 = vpack.c.b16 %v3918, %v3914
        %v4143 = vpack.c.b16 %v3919, %v3915
        %v4144 = vpack.c.b16 %v3920, %v3916
        %v4145 = vpack.c.b16 %v3921, %v3917
        %v4146 = vpack.c.b16 %v3926, %v3922
        %v4147 = vpack.c.b16 %v3927, %v3923
        %v4148 = vpack.c.b16 %v3928, %v3924
        %v4149 = vpack.c.b16 %v3929, %v3925
        %v4150 = vpack.c.b16 %v3934, %v3930
        %v4151 = vpack.c.b16 %v3935, %v3931
        %v4152 = vpack.c.b16 %v3936, %v3932
        %v4153 = vpack.c.b16 %v3937, %v3933
        %v4154 = vpack.c.b16 %v3942, %v3938
        %v4155 = vpack.c.b16 %v3943, %v3939
        %v4156 = vpack.c.b16 %v3944, %v3940
        %v4157 = vpack.c.b16 %v3945, %v3941
        %v4158 = vpack.c.b16 %v3950, %v3946
        %v4159 = vpack.c.b16 %v3951, %v3947
        %v4160 = vpack.c.b16 %v3952, %v3948
        %v4161 = vpack.c.b16 %v3953, %v3949
        %v4162 = vpack.c.b16 %v3958, %v3954
        %v4163 = vpack.c.b16 %v3959, %v3955
        %v4164 = vpack.c.b16 %v3960, %v3956
        %v4165 = vpack.c.b16 %v3961, %v3957
        %v4166 = vpack.c.b16 %v3966, %v3962
        %v4167 = vpack.c.b16 %v3967, %v3963
        %v4168 = vpack.c.b16 %v3968, %v3964
        %v4169 = vpack.c.b16 %v3969, %v3965
        %v4170 = vpack.c.b16 %v3974, %v3970
        %v4171 = vpack.c.b16 %v3975, %v3971
        %v4172 = vpack.c.b16 %v3976, %v3972
        %v4173 = vpack.c.b16 %v3977, %v3973
        %v4174 = vpack.c.b16 %v3982, %v3978
        %v4175 = vpack.c.b16 %v3983, %v3979
        %v4176 = vpack.c.b16 %v3984, %v3980
        %v4177 = vpack.c.b16 %v3985, %v3981
        %v4178 = vpack.c.b16 %v3990, %v3986
        %v4179 = vpack.c.b16 %v3991, %v3987
        %v4180 = vpack.c.b16 %v3992, %v3988
        %v4181 = vpack.c.b16 %v3993, %v3989
        %v4182 = vpack.c.b16 %v3998, %v3994
        %v4183 = vpack.c.b16 %v3999, %v3995
        %v4184 = vpack.c.b16 %v4000, %v3996
        %v4185 = vpack.c.b16 %v4001, %v3997
        %v4186 = vpack.c.b16 %v4006, %v4002
        %v4187 = vpack.c.b16 %v4007, %v4003
        %v4188 = vpack.c.b16 %v4008, %v4004
        %v4189 = vpack.c.b16 %v4009, %v4005
        %v4190 = vpack.c.b16 %v4014, %v4010
        %v4191 = vpack.c.b16 %v4015, %v4011
        %v4192 = vpack.c.b16 %v4016, %v4012
        %v4193 = vpack.c.b16 %v4017, %v4013
        %v4194 = vpack.c.b16 %v4022, %v4018
        %v4195 = vpack.c.b16 %v4023, %v4019
        %v4196 = vpack.c.b16 %v4024, %v4020
        %v4197 = vpack.c.b16 %v4025, %v4021
        %v4198 = vpack.c.b16 %v4030, %v4026
        %v4199 = vpack.c.b16 %v4031, %v4027
        %v4200 = vpack.c.b16 %v4032, %v4028
        %v4201 = vpack.c.b16 %v4033, %v4029
        %v4202 = vpack.c.b16 %v4038, %v4034
        %v4203 = vpack.c.b16 %v4039, %v4035
        %v4204 = vpack.c.b16 %v4040, %v4036
        %v4205 = vpack.c.b16 %v4041, %v4037
        %v4206 = vpack.c.b16 %v4046, %v4042
        %v4207 = vpack.c.b16 %v4047, %v4043
        %v4208 = vpack.c.b16 %v4048, %v4044
        %v4209 = vpack.c.b16 %v4049, %v4045
        %v4210 = vpack.c.b16 %v4054, %v4050
        %v4211 = vpack.c.b16 %v4055, %v4051
        %v4212 = vpack.c.b16 %v4056, %v4052
        %v4213 = vpack.c.b16 %v4057, %v4053
        %v4214 = vpack.c.b16 %v4062, %v4058
        %v4215 = vpack.c.b16 %v4063, %v4059
        %v4216 = vpack.c.b16 %v4064, %v4060
        %v4217 = vpack.c.b16 %v4065, %v4061
        %v4218 = vpack.c.b16 %v4070, %v4066
        %v4219 = vpack.c.b16 %v4071, %v4067
        %v4220 = vpack.c.b16 %v4072, %v4068
        %v4221 = vpack.c.b16 %v4073, %v4069
        %v4222 = vpack.c.b16 %v4078, %v4074
        %v4223 = vpack.c.b16 %v4079, %v4075
        %v4224 = vpack.c.b16 %v4080, %v4076
        %v4225 = vpack.c.b16 %v4081, %v4077
        %v4226 = vpack.c.b16 %v4086, %v4082
        %v4227 = vpack.c.b16 %v4087, %v4083
        %v4228 = vpack.c.b16 %v4088, %v4084
        %v4229 = vpack.c.b16 %v4089, %v4085
        %v4230 = vpack.c.b16 %v4094, %v4090
        %v4231 = vpack.c.b16 %v4095, %v4091
        %v4232 = vpack.c.b16 %v4096, %v4092
        %v4233 = vpack.c.b16 %v4097, %v4093
        %v4234 = vpack.c.b16 %v4102, %v4098
        %v4235 = vpack.c.b16 %v4103, %v4099
        %v4236 = vpack.c.b16 %v4104, %v4100
        %v4237 = vpack.c.b16 %v4105, %v4101
        %v4238 = vpack.c.b16 %v4110, %v4106
        %v4239 = vpack.c.b16 %v4111, %v4107
        %v4240 = vpack.c.b16 %v4112, %v4108
        %v4241 = vpack.c.b16 %v4113, %v4109
        %4370 = vmatprep.subr.bf16.mxu0 %v4143
        %4371 = vmatpush1.bf16.msra.mxu0 %v4142
        %4372 = vmatprep.subr.bf16.mxu0 %v4139
        %4373 = vmatpush1.bf16.msra.mxu0 %v4138
        %4374 = vmatprep.subr.bf16.mxu0 %v4135
        %4375 = vmatpush1.bf16.msra.mxu0 %v4134
        %4376 = vmatprep.subr.bf16.mxu0 %v4131
        %4377 = vmatpush1.bf16.msra.mxu0 %v4130
        %4378 = vmatprep.subr.bf16.mxu0 %v4127
        %4379 = vmatpush1.bf16.msra.mxu0 %v4126
        %4380 = vmatprep.subr.bf16.mxu0 %v4123
        %4381 = vmatpush1.bf16.msra.mxu0 %v4122
        %4382 = vmatprep.subr.bf16.mxu0 %v4119
        %4383 = vmatpush1.bf16.msra.mxu0 %v4118
        %4384 = vmatprep.subr.bf16.mxu0 %v4115
        %4385 = vmatpush1.bf16.msra.mxu0 %v4114
        %4386 = vmatprep.subr.bf16.mxu0 %v4175
        %4387 = vmatpush2.bf16.msra.mxu0 %v4174
        %4388 = vmatprep.subr.bf16.mxu0 %v4171
        %4389 = vmatpush2.bf16.msra.mxu0 %v4170
        %4390 = vmatprep.subr.bf16.mxu0 %v4167
        %4391 = vmatpush2.bf16.msra.mxu0 %v4166
        %4392 = vmatprep.subr.bf16.mxu0 %v4163
        %4393 = vmatpush2.bf16.msra.mxu0 %v4162
        %4394 = vmatprep.subr.bf16.mxu0 %v4159
        %4395 = vmatpush2.bf16.msra.mxu0 %v4158
        %4396 = vmatprep.subr.bf16.mxu0 %v4155
        %4397 = vmatpush2.bf16.msra.mxu0 %v4154
        %4398 = vmatprep.subr.bf16.mxu0 %v4151
        %4399 = vmatpush2.bf16.msra.mxu0 %v4150
        %4400 = vmatprep.subr.bf16.mxu0 %v4147
        %4401 = vmatpush2.bf16.msra.mxu0 %v4146
        %4402 = vmatprep.mubr.bf16.mxu0 %v3667
        %4403 = vmatmul.mubr.bf16.gmra.mxu0 %v3666
        %v4404 = vpop.f32.mrf.mxu0
        %v4405 = vadd.f32 0.0, %v4404
        %v4406 = vpop.f32.mrf.mxu0
        %v4407 = vadd.f32 0.0, %v4406
        %v4408 = vpop.f32.mrf.mxu0
        %v4409 = vadd.f32 0.0, %v4408
        %v4410 = vpop.f32.mrf.mxu0
        %v4411 = vadd.f32 0.0, %v4410
        %4412 = vmatprep.mubr.bf16.mxu0 %v3671
        %4413 = vmatmul.mubr.bf16.gmra.mxu0 %v3670
        %v4414 = vpop.f32.mrf.mxu0
        %v4415 = vadd.f32 0.0, %v4414
        %v4416 = vpop.f32.mrf.mxu0
        %v4417 = vadd.f32 0.0, %v4416
        %v4418 = vpop.f32.mrf.mxu0
        %v4419 = vadd.f32 0.0, %v4418
        %v4420 = vpop.f32.mrf.mxu0
        %v4421 = vadd.f32 0.0, %v4420
        %4422 = vmatprep.mubr.bf16.mxu0 %v3675
        %4423 = vmatmul.mubr.bf16.gmra.mxu0 %v3674
        %v4424 = vpop.f32.mrf.mxu0
        %v4425 = vadd.f32 0.0, %v4424
        %v4426 = vpop.f32.mrf.mxu0
        %v4427 = vadd.f32 0.0, %v4426
        %v4428 = vpop.f32.mrf.mxu0
        %v4429 = vadd.f32 0.0, %v4428
        %v4430 = vpop.f32.mrf.mxu0
        %v4431 = vadd.f32 0.0, %v4430
        %4432 = vmatprep.mubr.bf16.mxu0 %v3679
        %4433 = vmatmul.mubr.bf16.gmra.mxu0 %v3678
        %v4434 = vpop.f32.mrf.mxu0
        %v4435 = vadd.f32 0.0, %v4434
        %v4436 = vpop.f32.mrf.mxu0
        %v4437 = vadd.f32 0.0, %v4436
        %v4438 = vpop.f32.mrf.mxu0
        %v4439 = vadd.f32 0.0, %v4438
        %v4440 = vpop.f32.mrf.mxu0
        %v4441 = vadd.f32 0.0, %v4440
        %4442 = vmatprep.mubr.bf16.mxu0 %v3683
        %4443 = vmatmul.mubr.bf16.gmra.mxu0 %v3682
        %v4444 = vpop.f32.mrf.mxu0
        %v4445 = vadd.f32 0.0, %v4444
        %v4446 = vpop.f32.mrf.mxu0
        %v4447 = vadd.f32 0.0, %v4446
        %v4448 = vpop.f32.mrf.mxu0
        %v4449 = vadd.f32 0.0, %v4448
        %v4450 = vpop.f32.mrf.mxu0
        %v4451 = vadd.f32 0.0, %v4450
        %4452 = vmatprep.mubr.bf16.mxu0 %v3687
        %4453 = vmatmul.mubr.bf16.gmra.mxu0 %v3686
        %v4454 = vpop.f32.mrf.mxu0
        %v4455 = vadd.f32 0.0, %v4454
        %v4456 = vpop.f32.mrf.mxu0
        %v4457 = vadd.f32 0.0, %v4456
        %v4458 = vpop.f32.mrf.mxu0
        %v4459 = vadd.f32 0.0, %v4458
        %v4460 = vpop.f32.mrf.mxu0
        %v4461 = vadd.f32 0.0, %v4460
        %4462 = vmatprep.mubr.bf16.mxu0 %v3691
        %4463 = vmatmul.mubr.bf16.gmra.mxu0 %v3690
        %v4464 = vpop.f32.mrf.mxu0
        %v4465 = vadd.f32 0.0, %v4464
        %v4466 = vpop.f32.mrf.mxu0
        %v4467 = vadd.f32 0.0, %v4466
        %v4468 = vpop.f32.mrf.mxu0
        %v4469 = vadd.f32 0.0, %v4468
        %v4470 = vpop.f32.mrf.mxu0
        %v4471 = vadd.f32 0.0, %v4470
        %4472 = vmatprep.mubr.bf16.mxu0 %v3695
        %4473 = vmatmul.mubr.bf16.gmra.mxu0 %v3694
        %v4474 = vpop.f32.mrf.mxu0
        %v4475 = vadd.f32 0.0, %v4474
        %v4476 = vpop.f32.mrf.mxu0
        %v4477 = vadd.f32 0.0, %v4476
        %v4478 = vpop.f32.mrf.mxu0
        %v4479 = vadd.f32 0.0, %v4478
        %v4480 = vpop.f32.mrf.mxu0
        %v4481 = vadd.f32 0.0, %v4480
        %4482 = vdwg.mxu0
        %4483 = vmatprep.subr.bf16.mxu0 %v4207
        %4484 = vmatpush1.bf16.msra.mxu0 %v4206
        %4485 = vmatprep.subr.bf16.mxu0 %v4203
        %4486 = vmatpush1.bf16.msra.mxu0 %v4202
        %4487 = vmatprep.subr.bf16.mxu0 %v4199
        %4488 = vmatpush1.bf16.msra.mxu0 %v4198
        %4489 = vmatprep.subr.bf16.mxu0 %v4195
        %4490 = vmatpush1.bf16.msra.mxu0 %v4194
        %4491 = vmatprep.subr.bf16.mxu0 %v4191
        %4492 = vmatpush1.bf16.msra.mxu0 %v4190
        %4493 = vmatprep.subr.bf16.mxu0 %v4187
        %4494 = vmatpush1.bf16.msra.mxu0 %v4186
        %4495 = vmatprep.subr.bf16.mxu0 %v4183
        %4496 = vmatpush1.bf16.msra.mxu0 %v4182
        %4497 = vmatprep.subr.bf16.mxu0 %v4179
        %4498 = vmatpush1.bf16.msra.mxu0 %v4178
        %4499 = vmatprep.subr.bf16.mxu0 %v4239
        %4500 = vmatpush2.bf16.msra.mxu0 %v4238
        %4501 = vmatprep.subr.bf16.mxu0 %v4235
        %4502 = vmatpush2.bf16.msra.mxu0 %v4234
        %4503 = vmatprep.subr.bf16.mxu0 %v4231
        %4504 = vmatpush2.bf16.msra.mxu0 %v4230
        %4505 = vmatprep.subr.bf16.mxu0 %v4227
        %4506 = vmatpush2.bf16.msra.mxu0 %v4226
        %4507 = vmatprep.subr.bf16.mxu0 %v4223
        %4508 = vmatpush2.bf16.msra.mxu0 %v4222
        %4509 = vmatprep.subr.bf16.mxu0 %v4219
        %4510 = vmatpush2.bf16.msra.mxu0 %v4218
        %4511 = vmatprep.subr.bf16.mxu0 %v4215
        %4512 = vmatpush2.bf16.msra.mxu0 %v4214
        %4513 = vmatprep.subr.bf16.mxu0 %v4211
        %4514 = vmatpush2.bf16.msra.mxu0 %v4210
        %4515 = vmatprep.mubr.bf16.mxu0 %v3669
        %4516 = vmatmul.mubr.bf16.gmra.mxu0 %v3668
        %v4517 = vpop.f32.mrf.mxu0
        %v4518 = vadd.f32 %v4405, %v4517
        %v4519 = vpop.f32.mrf.mxu0
        %v4520 = vadd.f32 %v4407, %v4519
        %v4521 = vpop.f32.mrf.mxu0
        %v4522 = vadd.f32 %v4409, %v4521
        %v4523 = vpop.f32.mrf.mxu0
        %v4524 = vadd.f32 %v4411, %v4523
        %4525 = vmatprep.mubr.bf16.mxu0 %v3673
        %4526 = vmatmul.mubr.bf16.gmra.mxu0 %v3672
        %v4527 = vpop.f32.mrf.mxu0
        %v4528 = vadd.f32 %v4415, %v4527
        %v4529 = vpop.f32.mrf.mxu0
        %v4530 = vadd.f32 %v4417, %v4529
        %v4531 = vpop.f32.mrf.mxu0
        %v4532 = vadd.f32 %v4419, %v4531
        %v4533 = vpop.f32.mrf.mxu0
        %v4534 = vadd.f32 %v4421, %v4533
        %4535 = vmatprep.mubr.bf16.mxu0 %v3677
        %4536 = vmatmul.mubr.bf16.gmra.mxu0 %v3676
        %v4537 = vpop.f32.mrf.mxu0
        %v4538 = vadd.f32 %v4425, %v4537
        %v4539 = vpop.f32.mrf.mxu0
        %v4540 = vadd.f32 %v4427, %v4539
        %v4541 = vpop.f32.mrf.mxu0
        %v4542 = vadd.f32 %v4429, %v4541
        %v4543 = vpop.f32.mrf.mxu0
        %v4544 = vadd.f32 %v4431, %v4543
        %4545 = vmatprep.mubr.bf16.mxu0 %v3681
        %4546 = vmatmul.mubr.bf16.gmra.mxu0 %v3680
        %v4547 = vpop.f32.mrf.mxu0
        %v4548 = vadd.f32 %v4435, %v4547
        %v4549 = vpop.f32.mrf.mxu0
        %v4550 = vadd.f32 %v4437, %v4549
        %v4551 = vpop.f32.mrf.mxu0
        %v4552 = vadd.f32 %v4439, %v4551
        %v4553 = vpop.f32.mrf.mxu0
        %v4554 = vadd.f32 %v4441, %v4553
        %4555 = vmatprep.mubr.bf16.mxu0 %v3685
        %4556 = vmatmul.mubr.bf16.gmra.mxu0 %v3684
        %v4557 = vpop.f32.mrf.mxu0
        %v4558 = vadd.f32 %v4445, %v4557
        %v4559 = vpop.f32.mrf.mxu0
        %v4560 = vadd.f32 %v4447, %v4559
        %v4561 = vpop.f32.mrf.mxu0
        %v4562 = vadd.f32 %v4449, %v4561
        %v4563 = vpop.f32.mrf.mxu0
        %v4564 = vadd.f32 %v4451, %v4563
        %4565 = vmatprep.mubr.bf16.mxu0 %v3689
        %4566 = vmatmul.mubr.bf16.gmra.mxu0 %v3688
        %v4567 = vpop.f32.mrf.mxu0
        %v4568 = vadd.f32 %v4455, %v4567
        %v4569 = vpop.f32.mrf.mxu0
        %v4570 = vadd.f32 %v4457, %v4569
        %v4571 = vpop.f32.mrf.mxu0
        %v4572 = vadd.f32 %v4459, %v4571
        %v4573 = vpop.f32.mrf.mxu0
        %v4574 = vadd.f32 %v4461, %v4573
        %4575 = vmatprep.mubr.bf16.mxu0 %v3693
        %4576 = vmatmul.mubr.bf16.gmra.mxu0 %v3692
        %v4577 = vpop.f32.mrf.mxu0
        %v4578 = vadd.f32 %v4465, %v4577
        %v4579 = vpop.f32.mrf.mxu0
        %v4580 = vadd.f32 %v4467, %v4579
        %v4581 = vpop.f32.mrf.mxu0
        %v4582 = vadd.f32 %v4469, %v4581
        %v4583 = vpop.f32.mrf.mxu0
        %v4584 = vadd.f32 %v4471, %v4583
        %4585 = vmatprep.mubr.bf16.mxu0 %v3697
        %4586 = vmatmul.mubr.bf16.gmra.mxu0 %v3696
        %v4587 = vpop.f32.mrf.mxu0
        %v4588 = vadd.f32 %v4475, %v4587
        %v4589 = vpop.f32.mrf.mxu0
        %v4590 = vadd.f32 %v4477, %v4589
        %v4591 = vpop.f32.mrf.mxu0
        %v4592 = vadd.f32 %v4479, %v4591
        %v4593 = vpop.f32.mrf.mxu0
        %v4594 = vadd.f32 %v4481, %v4593
        %4595 = vdwg.mxu0
        %4596 = vmatprep.subr.bf16.mxu0 %v4145
        %4597 = vmatpush1.bf16.msra.mxu0 %v4144
        %4598 = vmatprep.subr.bf16.mxu0 %v4141
        %4599 = vmatpush1.bf16.msra.mxu0 %v4140
        %4600 = vmatprep.subr.bf16.mxu0 %v4137
        %4601 = vmatpush1.bf16.msra.mxu0 %v4136
        %4602 = vmatprep.subr.bf16.mxu0 %v4133
        %4603 = vmatpush1.bf16.msra.mxu0 %v4132
        %4604 = vmatprep.subr.bf16.mxu0 %v4129
        %4605 = vmatpush1.bf16.msra.mxu0 %v4128
        %4606 = vmatprep.subr.bf16.mxu0 %v4125
        %4607 = vmatpush1.bf16.msra.mxu0 %v4124
        %4608 = vmatprep.subr.bf16.mxu0 %v4121
        %4609 = vmatpush1.bf16.msra.mxu0 %v4120
        %4610 = vmatprep.subr.bf16.mxu0 %v4117
        %4611 = vmatpush1.bf16.msra.mxu0 %v4116
        %4612 = vmatprep.subr.bf16.mxu0 %v4177
        %4613 = vmatpush2.bf16.msra.mxu0 %v4176
        %4614 = vmatprep.subr.bf16.mxu0 %v4173
        %4615 = vmatpush2.bf16.msra.mxu0 %v4172
        %4616 = vmatprep.subr.bf16.mxu0 %v4169
        %4617 = vmatpush2.bf16.msra.mxu0 %v4168
        %4618 = vmatprep.subr.bf16.mxu0 %v4165
        %4619 = vmatpush2.bf16.msra.mxu0 %v4164
        %4620 = vmatprep.subr.bf16.mxu0 %v4161
        %4621 = vmatpush2.bf16.msra.mxu0 %v4160
        %4622 = vmatprep.subr.bf16.mxu0 %v4157
        %4623 = vmatpush2.bf16.msra.mxu0 %v4156
        %4624 = vmatprep.subr.bf16.mxu0 %v4153
        %4625 = vmatpush2.bf16.msra.mxu0 %v4152
        %4626 = vmatprep.subr.bf16.mxu0 %v4149
        %4627 = vmatpush2.bf16.msra.mxu0 %v4148
        %4628 = vmatprep.mubr.bf16.mxu0 %v3667
        %4629 = vmatmul.mubr.bf16.gmra.mxu0 %v3666
        %v4630 = vpop.f32.mrf.mxu0
        %v4631 = vadd.f32 0.0, %v4630
        %v4632 = vpop.f32.mrf.mxu0
        %v4633 = vadd.f32 0.0, %v4632
        %v4634 = vpop.f32.mrf.mxu0
        %v4635 = vadd.f32 0.0, %v4634
        %v4636 = vpop.f32.mrf.mxu0
        %v4637 = vadd.f32 0.0, %v4636
        %4638 = vmatprep.mubr.bf16.mxu0 %v3671
        %4639 = vmatmul.mubr.bf16.gmra.mxu0 %v3670
        %v4640 = vpop.f32.mrf.mxu0
        %v4641 = vadd.f32 0.0, %v4640
        %v4642 = vpop.f32.mrf.mxu0
        %v4643 = vadd.f32 0.0, %v4642
        %v4644 = vpop.f32.mrf.mxu0
        %v4645 = vadd.f32 0.0, %v4644
        %v4646 = vpop.f32.mrf.mxu0
        %v4647 = vadd.f32 0.0, %v4646
        %4648 = vmatprep.mubr.bf16.mxu0 %v3675
        %4649 = vmatmul.mubr.bf16.gmra.mxu0 %v3674
        %v4650 = vpop.f32.mrf.mxu0
        %v4651 = vadd.f32 0.0, %v4650
        %v4652 = vpop.f32.mrf.mxu0
        %v4653 = vadd.f32 0.0, %v4652
        %v4654 = vpop.f32.mrf.mxu0
        %v4655 = vadd.f32 0.0, %v4654
        %v4656 = vpop.f32.mrf.mxu0
        %v4657 = vadd.f32 0.0, %v4656
        %4658 = vmatprep.mubr.bf16.mxu0 %v3679
        %4659 = vmatmul.mubr.bf16.gmra.mxu0 %v3678
        %v4660 = vpop.f32.mrf.mxu0
        %v4661 = vadd.f32 0.0, %v4660
        %v4662 = vpop.f32.mrf.mxu0
        %v4663 = vadd.f32 0.0, %v4662
        %v4664 = vpop.f32.mrf.mxu0
        %v4665 = vadd.f32 0.0, %v4664
        %v4666 = vpop.f32.mrf.mxu0
        %v4667 = vadd.f32 0.0, %v4666
        %4668 = vmatprep.mubr.bf16.mxu0 %v3683
        %4669 = vmatmul.mubr.bf16.gmra.mxu0 %v3682
        %v4670 = vpop.f32.mrf.mxu0
        %v4671 = vadd.f32 0.0, %v4670
        %v4672 = vpop.f32.mrf.mxu0
        %v4673 = vadd.f32 0.0, %v4672
        %v4674 = vpop.f32.mrf.mxu0
        %v4675 = vadd.f32 0.0, %v4674
        %v4676 = vpop.f32.mrf.mxu0
        %v4677 = vadd.f32 0.0, %v4676
        %4678 = vmatprep.mubr.bf16.mxu0 %v3687
        %4679 = vmatmul.mubr.bf16.gmra.mxu0 %v3686
        %v4680 = vpop.f32.mrf.mxu0
        %v4681 = vadd.f32 0.0, %v4680
        %v4682 = vpop.f32.mrf.mxu0
        %v4683 = vadd.f32 0.0, %v4682
        %v4684 = vpop.f32.mrf.mxu0
        %v4685 = vadd.f32 0.0, %v4684
        %v4686 = vpop.f32.mrf.mxu0
        %v4687 = vadd.f32 0.0, %v4686
        %4688 = vmatprep.mubr.bf16.mxu0 %v3691
        %4689 = vmatmul.mubr.bf16.gmra.mxu0 %v3690
        %v4690 = vpop.f32.mrf.mxu0
        %v4691 = vadd.f32 0.0, %v4690
        %v4692 = vpop.f32.mrf.mxu0
        %v4693 = vadd.f32 0.0, %v4692
        %v4694 = vpop.f32.mrf.mxu0
        %v4695 = vadd.f32 0.0, %v4694
        %v4696 = vpop.f32.mrf.mxu0
        %v4697 = vadd.f32 0.0, %v4696
        %4698 = vmatprep.mubr.bf16.mxu0 %v3695
        %4699 = vmatmul.mubr.bf16.gmra.mxu0 %v3694
        %v4700 = vpop.f32.mrf.mxu0
        %v4701 = vadd.f32 0.0, %v4700
        %v4702 = vpop.f32.mrf.mxu0
        %v4703 = vadd.f32 0.0, %v4702
        %v4704 = vpop.f32.mrf.mxu0
        %v4705 = vadd.f32 0.0, %v4704
        %v4706 = vpop.f32.mrf.mxu0
        %v4707 = vadd.f32 0.0, %v4706
        %4708 = vdwg.mxu0
        %4709 = vmatprep.subr.bf16.mxu0 %v4209
        %4710 = vmatpush1.bf16.msra.mxu0 %v4208
        %4711 = vmatprep.subr.bf16.mxu0 %v4205
        %4712 = vmatpush1.bf16.msra.mxu0 %v4204
        %4713 = vmatprep.subr.bf16.mxu0 %v4201
        %4714 = vmatpush1.bf16.msra.mxu0 %v4200
        %4715 = vmatprep.subr.bf16.mxu0 %v4197
        %4716 = vmatpush1.bf16.msra.mxu0 %v4196
        %4717 = vmatprep.subr.bf16.mxu0 %v4193
        %4718 = vmatpush1.bf16.msra.mxu0 %v4192
        %4719 = vmatprep.subr.bf16.mxu0 %v4189
        %4720 = vmatpush1.bf16.msra.mxu0 %v4188
        %4721 = vmatprep.subr.bf16.mxu0 %v4185
        %4722 = vmatpush1.bf16.msra.mxu0 %v4184
        %4723 = vmatprep.subr.bf16.mxu0 %v4181
        %4724 = vmatpush1.bf16.msra.mxu0 %v4180
        %4725 = vmatprep.subr.bf16.mxu0 %v4241
        %4726 = vmatpush2.bf16.msra.mxu0 %v4240
        %4727 = vmatprep.subr.bf16.mxu0 %v4237
        %4728 = vmatpush2.bf16.msra.mxu0 %v4236
        %4729 = vmatprep.subr.bf16.mxu0 %v4233
        %4730 = vmatpush2.bf16.msra.mxu0 %v4232
        %4731 = vmatprep.subr.bf16.mxu0 %v4229
        %4732 = vmatpush2.bf16.msra.mxu0 %v4228
        %4733 = vmatprep.subr.bf16.mxu0 %v4225
        %4734 = vmatpush2.bf16.msra.mxu0 %v4224
        %4735 = vmatprep.subr.bf16.mxu0 %v4221
        %4736 = vmatpush2.bf16.msra.mxu0 %v4220
        %4737 = vmatprep.subr.bf16.mxu0 %v4217
        %4738 = vmatpush2.bf16.msra.mxu0 %v4216
        %4739 = vmatprep.subr.bf16.mxu0 %v4213
        %4740 = vmatpush2.bf16.msra.mxu0 %v4212
        %4741 = vmatprep.mubr.bf16.mxu0 %v3669
        %4742 = vmatmul.mubr.bf16.gmra.mxu0 %v3668
        %v4743 = vpop.f32.mrf.mxu0
        %v4744 = vadd.f32 %v4631, %v4743
        %v4745 = vpop.f32.mrf.mxu0
        %v4746 = vadd.f32 %v4633, %v4745
        %v4747 = vpop.f32.mrf.mxu0
        %v4748 = vadd.f32 %v4635, %v4747
        %v4749 = vpop.f32.mrf.mxu0
        %v4750 = vadd.f32 %v4637, %v4749
        %4751 = vmatprep.mubr.bf16.mxu0 %v3673
        %4752 = vmatmul.mubr.bf16.gmra.mxu0 %v3672
        %v4753 = vpop.f32.mrf.mxu0
        %v4754 = vadd.f32 %v4641, %v4753
        %v4755 = vpop.f32.mrf.mxu0
        %v4756 = vadd.f32 %v4643, %v4755
        %v4757 = vpop.f32.mrf.mxu0
        %v4758 = vadd.f32 %v4645, %v4757
        %v4759 = vpop.f32.mrf.mxu0
        %v4760 = vadd.f32 %v4647, %v4759
        %4761 = vmatprep.mubr.bf16.mxu0 %v3677
        %4762 = vmatmul.mubr.bf16.gmra.mxu0 %v3676
        %v4763 = vpop.f32.mrf.mxu0
        %v4764 = vadd.f32 %v4651, %v4763
        %v4765 = vpop.f32.mrf.mxu0
        %v4766 = vadd.f32 %v4653, %v4765
        %v4767 = vpop.f32.mrf.mxu0
        %v4768 = vadd.f32 %v4655, %v4767
        %v4769 = vpop.f32.mrf.mxu0
        %v4770 = vadd.f32 %v4657, %v4769
        %4771 = vmatprep.mubr.bf16.mxu0 %v3681
        %4772 = vmatmul.mubr.bf16.gmra.mxu0 %v3680
        %v4773 = vpop.f32.mrf.mxu0
        %v4774 = vadd.f32 %v4661, %v4773
        %v4775 = vpop.f32.mrf.mxu0
        %v4776 = vadd.f32 %v4663, %v4775
        %v4777 = vpop.f32.mrf.mxu0
        %v4778 = vadd.f32 %v4665, %v4777
        %v4779 = vpop.f32.mrf.mxu0
        %v4780 = vadd.f32 %v4667, %v4779
        %4781 = vmatprep.mubr.bf16.mxu0 %v3685
        %4782 = vmatmul.mubr.bf16.gmra.mxu0 %v3684
        %v4783 = vpop.f32.mrf.mxu0
        %v4784 = vadd.f32 %v4671, %v4783
        %v4785 = vpop.f32.mrf.mxu0
        %v4786 = vadd.f32 %v4673, %v4785
        %v4787 = vpop.f32.mrf.mxu0
        %v4788 = vadd.f32 %v4675, %v4787
        %v4789 = vpop.f32.mrf.mxu0
        %v4790 = vadd.f32 %v4677, %v4789
        %4791 = vmatprep.mubr.bf16.mxu0 %v3689
        %4792 = vmatmul.mubr.bf16.gmra.mxu0 %v3688
        %v4793 = vpop.f32.mrf.mxu0
        %v4794 = vadd.f32 %v4681, %v4793
        %v4795 = vpop.f32.mrf.mxu0
        %v4796 = vadd.f32 %v4683, %v4795
        %v4797 = vpop.f32.mrf.mxu0
        %v4798 = vadd.f32 %v4685, %v4797
        %v4799 = vpop.f32.mrf.mxu0
        %v4800 = vadd.f32 %v4687, %v4799
        %4801 = vmatprep.mubr.bf16.mxu0 %v3693
        %4802 = vmatmul.mubr.bf16.gmra.mxu0 %v3692
        %v4803 = vpop.f32.mrf.mxu0
        %v4804 = vadd.f32 %v4691, %v4803
        %v4805 = vpop.f32.mrf.mxu0
        %v4806 = vadd.f32 %v4693, %v4805
        %v4807 = vpop.f32.mrf.mxu0
        %v4808 = vadd.f32 %v4695, %v4807
        %v4809 = vpop.f32.mrf.mxu0
        %v4810 = vadd.f32 %v4697, %v4809
        %4811 = vmatprep.mubr.bf16.mxu0 %v3697
        %4812 = vmatmul.mubr.bf16.gmra.mxu0 %v3696
        %v4813 = vpop.f32.mrf.mxu0
        %v4814 = vadd.f32 %v4701, %v4813
        %v4815 = vpop.f32.mrf.mxu0
        %v4816 = vadd.f32 %v4703, %v4815
        %v4817 = vpop.f32.mrf.mxu0
        %v4818 = vadd.f32 %v4705, %v4817
        %v4819 = vpop.f32.mrf.mxu0
        %v4820 = vadd.f32 %v4707, %v4819
        %4821 = vdwg.mxu0
        %4822 = vst [vmem:[%s326] sm:$0xff] %v4518
        %4823 = vst [vmem:[%s326 + $0x8] sm:$0xff] %v4520
        %4824 = vst [vmem:[%s326 + $0x10] sm:$0xff] %v4744
        %4825 = vst [vmem:[%s326 + $0x18] sm:$0xff] %v4746
        %4826 = vst [vmem:[%s326 + $0x20] sm:$0xff] %v4522
        %4827 = vst [vmem:[%s326 + $0x28] sm:$0xff] %v4524
        %4828 = vst [vmem:[%s326 + $0x30] sm:$0xff] %v4748
        %4829 = vst [vmem:[%s326 + $0x38] sm:$0xff] %v4750
        %4830 = vst [vmem:[%s326 + $0x40] sm:$0xff] %v4528
        %4831 = vst [vmem:[%s326 + $0x48] sm:$0xff] %v4530
        %4832 = vst [vmem:[%s326 + $0x50] sm:$0xff] %v4754
        %4833 = vst [vmem:[%s326 + $0x58] sm:$0xff] %v4756
        %4834 = vst [vmem:[%s326 + $0x60] sm:$0xff] %v4532
        %4835 = vst [vmem:[%s326 + $0x68] sm:$0xff] %v4534
        %4836 = vst [vmem:[%s326 + $0x70] sm:$0xff] %v4758
        %4837 = vst [vmem:[%s326 + $0x78] sm:$0xff] %v4760
        %4838 = vst [vmem:[%s326 + $0x80] sm:$0xff] %v4538
        %4839 = vst [vmem:[%s326 + $0x88] sm:$0xff] %v4540
        %4840 = vst [vmem:[%s326 + $0x90] sm:$0xff] %v4764
        %4841 = vst [vmem:[%s326 + $0x98] sm:$0xff] %v4766
        %4842 = vst [vmem:[%s326 + $0xa0] sm:$0xff] %v4542
        %4843 = vst [vmem:[%s326 + $0xa8] sm:$0xff] %v4544
        %4844 = vst [vmem:[%s326 + $0xb0] sm:$0xff] %v4768
        %4845 = vst [vmem:[%s326 + $0xb8] sm:$0xff] %v4770
        %4846 = vst [vmem:[%s326 + $0xc0] sm:$0xff] %v4548
        %4847 = vst [vmem:[%s326 + $0xc8] sm:$0xff] %v4550
        %4848 = vst [vmem:[%s326 + $0xd0] sm:$0xff] %v4774
        %4849 = vst [vmem:[%s326 + $0xd8] sm:$0xff] %v4776
        %4850 = vst [vmem:[%s326 + $0xe0] sm:$0xff] %v4552
        %4851 = vst [vmem:[%s326 + $0xe8] sm:$0xff] %v4554
        %4852 = vst [vmem:[%s326 + $0xf0] sm:$0xff] %v4778
        %4853 = vst [vmem:[%s326 + $0xf8] sm:$0xff] %v4780
        %4854 = vst [vmem:[%s326 + $0x100] sm:$0xff] %v4558
        %4855 = vst [vmem:[%s326 + $0x108] sm:$0xff] %v4560
        %4856 = vst [vmem:[%s326 + $0x110] sm:$0xff] %v4784
        %4857 = vst [vmem:[%s326 + $0x118] sm:$0xff] %v4786
        %4858 = vst [vmem:[%s326 + $0x120] sm:$0xff] %v4562
        %4859 = vst [vmem:[%s326 + $0x128] sm:$0xff] %v4564
        %4860 = vst [vmem:[%s326 + $0x130] sm:$0xff] %v4788
        %4861 = vst [vmem:[%s326 + $0x138] sm:$0xff] %v4790
        %4862 = vst [vmem:[%s326 + $0x140] sm:$0xff] %v4568
        %4863 = vst [vmem:[%s326 + $0x148] sm:$0xff] %v4570
        %4864 = vst [vmem:[%s326 + $0x150] sm:$0xff] %v4794
        %4865 = vst [vmem:[%s326 + $0x158] sm:$0xff] %v4796
        %4866 = vst [vmem:[%s326 + $0x160] sm:$0xff] %v4572
        %4867 = vst [vmem:[%s326 + $0x168] sm:$0xff] %v4574
        %4868 = vst [vmem:[%s326 + $0x170] sm:$0xff] %v4798
        %4869 = vst [vmem:[%s326 + $0x178] sm:$0xff] %v4800
        %4870 = vst [vmem:[%s326 + $0x180] sm:$0xff] %v4578
        %4871 = vst [vmem:[%s326 + $0x188] sm:$0xff] %v4580
        %4872 = vst [vmem:[%s326 + $0x190] sm:$0xff] %v4804
        %4873 = vst [vmem:[%s326 + $0x198] sm:$0xff] %v4806
        %4874 = vst [vmem:[%s326 + $0x1a0] sm:$0xff] %v4582
        %4875 = vst [vmem:[%s326 + $0x1a8] sm:$0xff] %v4584
        %4876 = vst [vmem:[%s326 + $0x1b0] sm:$0xff] %v4808
        %4877 = vst [vmem:[%s326 + $0x1b8] sm:$0xff] %v4810
        %4878 = vst [vmem:[%s326 + $0x1c0] sm:$0xff] %v4588
        %4879 = vst [vmem:[%s326 + $0x1c8] sm:$0xff] %v4590
        %4880 = vst [vmem:[%s326 + $0x1d0] sm:$0xff] %v4814
        %4881 = vst [vmem:[%s326 + $0x1d8] sm:$0xff] %v4816
        %4882 = vst [vmem:[%s326 + $0x1e0] sm:$0xff] %v4592
        %4883 = vst [vmem:[%s326 + $0x1e8] sm:$0xff] %v4594
        %4884 = vst [vmem:[%s326 + $0x1f0] sm:$0xff] %v4818
        %4885 = vst [vmem:[%s326 + $0x1f8] sm:$0xff] %v4820
        %s4886 = sand.u32 %s148, 1
        %s4887 = scalar_lea.sflag [#allocation5], %s4886
        %s4888 = sand.u32 %s148, 1
        %s4889 = smul.addr %s4888, 512
        %s4890 = scalar_lea.vmem [#allocation11], %s4889
        // Predicated region
        $region53: #{tpu_custom_call.1} parent=35 // pred_check
          %p4891 = pneg %p158
        $region54: #{tpu_custom_call.1} parent=35 // pred_check_branch
          %4893 = sbr.rel (%p4891) target = $region56
        $region55: #{tpu_custom_call.1} parent=35 // pred_region
          %s4894 = smul.u32 16, %s30
          %s4896 = ssub.s32 8192, 8192
          %4897 = vsyncadd %s4887, %s4896
          %s4898 = smul.addr %s4894, 4
          %s4899 = smul.addr %s29, 128
          %s4900 = sadd.s32 %s4898, %s4899
          %s4901 = smul.addr %s4900, 128
          %s4902 = scalar_lea.hbm %s4, %s4901
          %s4903 = sshll.u32 %s4890, 4
          %s4904 = int_to_ptr.vmem [resolvable:$true] %s4903
          %4909 = dma.vmem_to_hbm [thread:$0]  %s4904, 8192, %s4902, %s4887, 512, 512, 32
        $region56: #{tpu_custom_call.1} parent=35 // pred_fallthru
          _
      $region36: #{tpu_custom_call.1} parent=5 // pred_fallthru
        _
      %p4910 = scmp.le.s32.totalorder 2, %s20
      // Predicated region
      $region57: #{tpu_custom_call.1} parent=5 // pred_check
        %p4911 = pneg %p4910
      $region58: #{tpu_custom_call.1} parent=5 // pred_check_branch
        %4913 = sbr.rel (%p4911) target = $region60
      $region59: #{tpu_custom_call.1} parent=5 // pred_region
        %s4914 = ssub.s32 %s20, 2
        // Predicated region
        $region61: #{tpu_custom_call.1} parent=59 // pred_check
          %p4915 = pneg %p164
        $region62: #{tpu_custom_call.1} parent=59 // pred_check_branch
          %4917 = sbr.rel (%p4915) target = $region64
        $region63: #{tpu_custom_call.1} parent=59 // pred_region
          %s4918 = sand.u32 %s149, 1
          %s4919 = scalar_lea.sflag [#allocation5], %s4918
          %s4920 = sand.u32 %s149, 1
          %s4921 = smul.addr %s4920, 512
          %s4922 = scalar_lea.vmem [#allocation11], %s4921
          %4923 = dma.done %s4919, 8192
        $region64: #{tpu_custom_call.1} parent=59 // pred_fallthru
          _
      $region60: #{tpu_custom_call.1} parent=5 // pred_fallthru
        _
    $region6: #{tpu_custom_call.1} parent=1 // loop_footer
      %s24 = sadd.s32 1, %s20
    $region7: #{tpu_custom_call.1} parent=1 // loop_footer_branch
      %19 = sbr.rel target = $region3
    $region8: #{tpu_custom_call.1} parent=1 // loop_exit
      _
    %4924 = vsyncpa [#allocation4], 1
    %s4925 = scalar_lea.sflag [#allocation4], 1
    %4926 = vsyncpa %s4925, 1
    %4927 = vsyncpa [#allocation7], 1
    %s4928 = scalar_lea.sflag [#allocation7], 1
    %4929 = vsyncpa %s4928, 1
    %4930 = vsyncpa [#allocation10], 1
    %4931 = vsyncpa [#allocation5], 1
    %s4932 = scalar_lea.sflag [#allocation5], 1
    %4933 = vsyncpa %s4932, 1

</llo_original>
